<compile_context>
chip_gen: v6e
topology: v6e:2x2x1
jax: 0.10.0
libtpu: 0.0.40
codegen_flags: <defaults>
</compile_context>

<pallas_src>
import math
import functools

import jax
import jax.numpy as jnp
from jax import lax
from jax.experimental import pallas as pl
from jax.experimental.pallas import tpu as pltpu


# ----------------------------- in-kernel helpers -----------------------------

def _mm(a, w):
    """MXU matmul: bf16 operands, f32 accumulation."""
    return jnp.dot(a.astype(jnp.bfloat16), w.astype(jnp.bfloat16),
                   preferred_element_type=jnp.float32)


def _layernorm(x, g, b, eps=1e-5):
    mean = jnp.mean(x, axis=-1, keepdims=True)
    var = jnp.mean((x - mean) ** 2, axis=-1, keepdims=True)
    return (x - mean) * lax.rsqrt(var + eps) * g + b


def _silu(x):
    return x * pl.reciprocal(1.0 + jnp.exp(-x), approx=True)


def _softplus(x):
    # numerically stable: max(x, 0) + log(1 + exp(-|x|))
    return jnp.maximum(x, 0.0) + jnp.log(1.0 + jnp.exp(-jnp.abs(x)))


def _gelu(x):
    # TODO(synk): PyTorch nn.GELU() defaults to the exact erf formulation; the
    # tanh approximation is used here (max abs deviation ~1e-3).
    c = math.sqrt(2.0 / math.pi)
    return 0.5 * x * (1.0 + jnp.tanh(c * (x + 0.044715 * x * x * x)))


# --------------------------------- kernel ------------------------------------

def mamba_block_kernel(
    # inputs: (TB, L, D) block of activations + parameters
    x_ref,
    in_x_w_ref, in_z_w_ref, conv_w_ref, conv_b_ref,
    xp_dt_w_ref, xp_b_w_ref, xp_c_w_ref,
    dt_w_ref, dt_b_ref, a_log_ref, d_skip_ref, out_w_ref,
    w_qkv_ref, b_qkv_ref, w_o_ref, b_o_ref,
    g1_ref, be1_ref, g2_ref, be2_ref, g3_ref, be3_ref,
    w1_ref, bf1_ref, w2_ref, bf2_ref,
    # output
    o_ref,
    # optional VMEM scratch (only allocated when L spans > 1 scan chunk)
    *scratch_refs,
    tb, seq_len, d_model, d_state, d_inner, dt_rank, d_conv, num_heads, chunk,
):
    TB, L, D, N, K, H, CH = tb, seq_len, d_model, d_state, d_conv, num_heads, chunk
    dI = d_inner
    R = TB * L
    hd = D // H
    n_chunks = L // CH

    x3 = x_ref[...].astype(jnp.float32)                      # (TB, L, D)
    x2 = x3.reshape(R, D)

    # ------------------------------- Mamba -----------------------------------
    # split in_proj (host-side) -> no unaligned lane slices of the matmul output
    x_in = _mm(x2, in_x_w_ref[...])                          # (R, dI)
    z = _mm(x2, in_z_w_ref[...])                             # (R, dI)

    # depthwise causal conv1d over L: zero-prefix shifted taps (no scratch)
    cw = conv_w_ref[...].astype(jnp.float32)                 # (K, dI)
    x_in3 = x_in.reshape(TB, L, dI)
    acc = x_in3 * cw[K - 1:K, :]
    for k in range(K - 1):
        shift = K - 1 - k                                    # 1 .. K-1
        if shift >= L:
            shifted = jnp.zeros((TB, L, dI), jnp.float32)
        else:
            shifted = jnp.concatenate(
                [jnp.zeros((TB, shift, dI), jnp.float32), x_in3[:, :L - shift, :]],
                axis=1)
        acc = acc + shifted * cw[k:k + 1, :]
    conv_out3 = _silu(acc + conv_b_ref[...])                 # (TB, L, dI)
    conv_out = conv_out3.reshape(R, dI)

    # input-dependent SSM parameters: split x_proj -> lane-aligned outputs
    dt_low = _mm(conv_out, xp_dt_w_ref[...])                 # (R, dt_rank)
    dt = _softplus(_mm(dt_low, dt_w_ref[...]) + dt_b_ref[...])   # (R, dI)
    b_in = _mm(conv_out, xp_b_w_ref[...])                    # (R, N)
    c_in = _mm(conv_out, xp_c_w_ref[...])                    # (R, N)

    a_neg = -jnp.exp(a_log_ref[...].astype(jnp.float32))     # (N, dI)

    def scan_chunk(h, dt_c, x_c, b_c, c_c):
        """Unrolled CH-step recurrence.  h: (TB, N, dI), d_inner on lanes."""
        bT = jnp.swapaxes(b_c, 1, 2)                         # (TB, N, CH)
        dtx_c = dt_c * x_c                                   # (TB, CH, dI)
        ys = []
        for k in range(CH):                                  # unrolled
            da = jnp.exp(dt_c[:, k:k + 1, :] * a_neg)        # (TB, N, dI)
            h = da * h + bT[:, :, k:k + 1] * dtx_c[:, k:k + 1, :]
            # TODO(synk): chunk-parallel (block-scan) formulation would turn
            # this M=1 matvec into a real MXU matmul per chunk.
            ys.append(lax.dot_general(
                c_c[:, k:k + 1, :], h, (((2,), (1,)), ((0,), (0,))),
                preferred_element_type=jnp.float32))          # (TB, 1, dI)
        return h, jnp.concatenate(ys, axis=1)                # (TB, CH, dI)

    h0 = jnp.zeros((TB, N, dI), jnp.float32)
    if n_chunks == 1:
        # consume dt / B / C / conv_out straight from vregs: no scratch stores
        _, y3 = scan_chunk(h0, dt.reshape(TB, L, dI), conv_out3,
                           b_in.reshape(TB, L, N), c_in.reshape(TB, L, N))
        y = y3.reshape(R, dI)
    else:
        conv_s, dt_s, b_s, c_s, y_s = scratch_refs
        conv_s[...] = conv_out3
        dt_s[...] = dt.reshape(TB, L, dI)
        b_s[...] = b_in.reshape(TB, L, N)
        c_s[...] = c_in.reshape(TB, L, N)

        def chunk_body(ci, h):
            t0 = pl.multiple_of(ci * CH, CH)
            h, y_c = scan_chunk(h,
                                dt_s[:, pl.ds(t0, CH), :],
                                conv_s[:, pl.ds(t0, CH), :],
                                b_s[:, pl.ds(t0, CH), :],
                                c_s[:, pl.ds(t0, CH), :])
            y_s[:, pl.ds(t0, CH), :] = y_c
            return h

        lax.fori_loop(0, n_chunks, chunk_body, h0)
        y = y_s[...].reshape(R, dI)

    y = y + conv_out * d_skip_ref[...]
    y = y * _silu(z)
    mamba_out = _mm(y, out_w_ref[...])                       # (R, D)

    # ------------------------- norm1 + self-attention ------------------------
    h1 = _layernorm(mamba_out + x2, g1_ref[...], be1_ref[...])

    qkv = (_mm(h1, w_qkv_ref[...]) + b_qkv_ref[...]).astype(jnp.bfloat16)  # (R, 3D)

    def gather_heads(base):
        # heads folded into the dot_general batch dim: (H*TB, L, hd)
        return jnp.concatenate(
            [qkv[:, base + hh * hd: base + (hh + 1) * hd].reshape(TB, L, hd)
             for hh in range(H)], axis=0)

    q_h = gather_heads(0)
    k_h = gather_heads(D)
    v_h = gather_heads(2 * D)

    s = lax.dot_general(q_h, k_h, (((2,), (2,)), ((0,), (0,))),
                        preferred_element_type=jnp.float32)   # (H*TB, L, L)
    s = s * (1.0 / math.sqrt(hd))
    s = s - jnp.max(s, axis=-1, keepdims=True)
    p = jnp.exp(s)
    p = p / jnp.sum(p, axis=-1, keepdims=True)                # exact softmax
    ctx = lax.dot_general(p.astype(jnp.bfloat16), v_h,
                          (((2,), (1,)), ((0,), (0,))),
                          preferred_element_type=jnp.float32)  # (H*TB, L, hd)
    ctx = jnp.concatenate([ctx[hh * TB:(hh + 1) * TB] for hh in range(H)],
                          axis=-1)                             # (TB, L, D)
    attn_out = _mm(ctx.reshape(R, D), w_o_ref[...]) + b_o_ref[...]

    # --------------------------- norm2 + feedforward --------------------------
    h2 = _layernorm(attn_out + h1, g2_ref[...], be2_ref[...])
    ff = _gelu(_mm(h2, w1_ref[...]) + bf1_ref[...])
    ff_out = _mm(ff, w2_ref[...]) + bf2_ref[...]
    out2 = _layernorm(ff_out + h2, g3_ref[...], be3_ref[...])

    o_ref[...] = out2.reshape(TB, L, D).astype(o_ref.dtype)


# ------------------------------ wrapper / glue --------------------------------

def _pick_chunk(seq_len):
    for ch in (8, 4, 2, 1):
        if seq_len % ch == 0:
            return ch
    return 1


def _vmem_budget_bytes():
    """Per-generation VMEM budget (v7x: 64 MiB phys, v5e/v6e: 128 MiB)."""
    try:
        cap = int(pltpu.get_tpu_info().vmem_capacity_bytes)
    except Exception:
        cap = 64 * 1024 * 1024
    return max(16 * 1024 * 1024, min(int(cap * 0.85), 110 * 1024 * 1024))


def _estimate_vmem_bytes(tb, L, D, d_state, d_inner, num_heads, param_bytes):
    rows = tb * L
    blocks = 2 * rows * D * (2 + 4)                 # double-buffered bf16 in + f32 out
    weights = 2 * param_bytes                       # default double-buffered constants
    scratch = 4 * rows * (3 * d_inner + 2 * d_state)
    temps = 4 * (rows * (3 * D + 4 * D + 4 * d_inner)
                 + num_heads * tb * L * L
                 + tb * d_state * d_inner)
    return blocks + weights + scratch + 2 * temps   # 2x headroom on live temps


def _pick_tb(batch, L, D, d_state, d_inner, num_heads, param_bytes, budget,
             target_rows=512):
    best = 1
    for tb in range(1, batch + 1):
        if batch % tb:
            continue
        if batch >= 2 and batch // tb < 2:
            break            # keep >= 2 grid steps so both v7x TensorCores get work
        if tb > 1 and _estimate_vmem_bytes(tb, L, D, d_state, d_inner,
                                           num_heads, param_bytes) > budget:
            break
        best = tb
        if tb * L >= target_rows:
            break
    return best


def _cost_estimate(batch, L, D, d_inner, d_state, dt_rank, num_heads, x, params):
    rows = batch * L
    mm_cols = (2 * D * d_inner + d_inner * dt_rank + 2 * d_inner * d_state
               + dt_rank * d_inner + d_inner * D + 3 * D * D + D * D + 8 * D * D)
    flops = 2 * rows * mm_cols
    flops += 4 * rows * L * D                        # attention QK^T + PV
    flops += 10 * rows * d_state * d_inner           # selective scan
    transcendentals = (rows * d_state * d_inner
                       + rows * (3 * d_inner + 8 * D)
                       + num_heads * rows * L)
    bytes_accessed = (int(x.size) * (2 + 4)
                      + sum(int(p.size) * p.dtype.itemsize for p in params))
    return pl.CostEstimate(flops=int(flops), transcendentals=int(transcendentals),
                           bytes_accessed=int(bytes_accessed))


def mamba_self_attention_block(x, params, *, d_state, num_heads, d_conv=4):
    B, L, D = x.shape
    d_inner = params["in_proj_w"].shape[1] // 2
    dt_rank = params["dt_proj_w"].shape[0]
    N = d_state
    CH = _pick_chunk(L)

    # host-side weight prep: split packed projections (lane-aligned kernel
    # outputs) and cast matmul weights to bf16 (halves weight DMA / VMEM).
    bf16 = lambda w: w.astype(jnp.bfloat16)
    xp = params["x_proj_w"]
    param_list = [
        bf16(params["in_proj_w"][:, :d_inner]),      # in_x_w
        bf16(params["in_proj_w"][:, d_inner:]),      # in_z_w
        params["conv_w"], params["conv_b"],
        bf16(xp[:, :dt_rank]),                       # xp_dt_w
        bf16(xp[:, dt_rank:dt_rank + N]),            # xp_b_w
        bf16(xp[:, dt_rank + N:]),                   # xp_c_w
        bf16(params["dt_proj_w"]), params["dt_proj_b"],
        params["a_log"], params["d_param"],
        bf16(params["out_proj_w"]),
        bf16(params["w_qkv"]), params["b_qkv"],
        bf16(params["w_o"]), params["b_o"],
        params["g1"], params["be1"], params["g2"], params["be2"],
        params["g3"], params["be3"],
        bf16(params["w1"]), params["bf1"],
        bf16(params["w2"]), params["bf2"],
    ]
    param_bytes = sum(int(p.size) * p.dtype.itemsize for p in param_list)

    budget = _vmem_budget_bytes()
    TB = _pick_tb(B, L, D, N, d_inner, num_heads, param_bytes, budget)

    kernel = functools.partial(
        mamba_block_kernel,
        tb=TB, seq_len=L, d_model=D, d_state=N, d_inner=d_inner,
        dt_rank=dt_rank, d_conv=d_conv, num_heads=num_heads, chunk=CH)

    in_specs = [pl.BlockSpec((TB, L, D), lambda i: (i, 0, 0))]
    # all parameters are 2D, passed whole each grid step
    # TODO(synk): single-buffer these constant weight inputs (pl.Buffered(1))
    # once pipeline_mode is plumbed through pallas_call, to halve weight VMEM
    # on v7x's 64 MiB.
    in_specs += [pl.BlockSpec(p.shape, lambda i: (0, 0)) for p in param_list]

    # scan scratch is only needed when L spans more than one chunk
    if L // CH > 1:
        scratch_shapes = [
            pltpu.VMEM((TB, L, d_inner), jnp.float32),   # conv_out
            pltpu.VMEM((TB, L, d_inner), jnp.float32),   # dt
            pltpu.VMEM((TB, L, N), jnp.float32),         # B
            pltpu.VMEM((TB, L, N), jnp.float32),         # C
            pltpu.VMEM((TB, L, d_inner), jnp.float32),   # y
        ]
    else:
        scratch_shapes = []

    x_bf = x.astype(jnp.bfloat16)   # halve activation DMA bytes

    return pl.pallas_call(
        kernel,
        out_shape=jax.ShapeDtypeStruct((B, L, D), jnp.float32),
        grid=(B // TB,),
        in_specs=in_specs,
        out_specs=pl.BlockSpec((TB, L, D), lambda i: (i, 0, 0)),
        scratch_shapes=scratch_shapes,
        compiler_params=pltpu.CompilerParams(
            dimension_semantics=("parallel",),
            vmem_limit_bytes=budget),
        cost_estimate=_cost_estimate(B, L, D, d_inner, N, dt_rank, num_heads,
                                     x, param_list),
    )(x_bf, *param_list)


# ------------------------ deterministic parameter init ------------------------

def init_params(key, d_model, d_state, num_heads, expand=2, d_conv=4):
    d_inner = expand * d_model
    dt_rank = math.ceil(d_model / 16)
    ks = jax.random.split(key, 10)

    def rnd(k, shape, fan_in):
        return jax.random.normal(k, shape, jnp.float32) * (1.0 / math.sqrt(fan_in))

    p = {}
    # Mamba
    p["in_proj_w"] = rnd(ks[0], (d_model, 2 * d_inner), d_model)
    p["conv_w"] = rnd(ks[1], (d_conv, d_inner), d_conv)          # depthwise taps
    p["conv_b"] = jnp.zeros((1, d_inner), jnp.float32)
    p["x_proj_w"] = rnd(ks[2], (d_inner, dt_rank + 2 * d_state), d_inner)
    p["dt_proj_w"] = rnd(ks[3], (dt_rank, d_inner), dt_rank)
    p["dt_proj_b"] = jnp.full((1, d_inner), -4.0, jnp.float32)   # softplus -> small dt
    # A_log stored transposed as (d_state, d_inner) so the scan keeps d_inner on lanes
    p["a_log"] = jnp.log(jnp.broadcast_to(
        jnp.arange(1, d_state + 1, dtype=jnp.float32)[:, None], (d_state, d_inner)))
    p["d_param"] = jnp.ones((1, d_inner), jnp.float32)
    p["out_proj_w"] = rnd(ks[4], (d_inner, d_model), d_inner)
    # Multi-head attention (weights pre-transposed: x @ W)
    p["w_qkv"] = rnd(ks[5], (d_model, 3 * d_model), d_model)
    p["b_qkv"] = jnp.zeros((1, 3 * d_model), jnp.float32)
    p["w_o"] = rnd(ks[6], (d_model, d_model), d_model)
    p["b_o"] = jnp.zeros((1, d_model), jnp.float32)
    # LayerNorms
    for name_g, name_b in (("g1", "be1"), ("g2", "be2"), ("g3", "be3")):
        p[name_g] = jnp.ones((1, d_model), jnp.float32)
        p[name_b] = jnp.zeros((1, d_model), jnp.float32)
    # FeedForward
    p["w1"] = rnd(ks[7], (d_model, 4 * d_model), d_model)
    p["bf1"] = jnp.zeros((1, 4 * d_model), jnp.float32)
    p["w2"] = rnd(ks[8], (4 * d_model, d_model), 4 * d_model)
    p["bf2"] = jnp.zeros((1, d_model), jnp.float32)
    return p


if __name__ == "__main__":
    d_model, n_state, num_heads = 32, 16, 4
    batch, seq = 2, 8

    key = jax.random.PRNGKey(0)
    kx, kp = jax.random.split(key)
    x = jax.random.normal(kx, (batch, seq, d_model), jnp.float32)
    params = init_params(kp, d_model, n_state, num_heads)

    out = mamba_self_attention_block(x, params, d_state=n_state, num_heads=num_heads)
    out = jax.block_until_ready(out)

    assert out.shape == (batch, seq, d_model)
    assert jnp.all(jnp.isfinite(out))
    print("KERNEL_OK")
</pallas_src>

<mosaic_0001>
module attributes {stable_mosaic.version = 11 : i64} {
  func.func @mamba_block_kernel(%arg0: i32, %arg1: memref<1x8x32xbf16, #tpu.memory_space<vmem>>, %arg2: memref<32x64xbf16, #tpu.memory_space<vmem>>, %arg3: memref<32x64xbf16, #tpu.memory_space<vmem>>, %arg4: memref<4x64xf32, #tpu.memory_space<vmem>>, %arg5: memref<1x64xf32, #tpu.memory_space<vmem>>, %arg6: memref<64x2xbf16, #tpu.memory_space<vmem>>, %arg7: memref<64x16xbf16, #tpu.memory_space<vmem>>, %arg8: memref<64x16xbf16, #tpu.memory_space<vmem>>, %arg9: memref<2x64xbf16, #tpu.memory_space<vmem>>, %arg10: memref<1x64xf32, #tpu.memory_space<vmem>>, %arg11: memref<16x64xf32, #tpu.memory_space<vmem>>, %arg12: memref<1x64xf32, #tpu.memory_space<vmem>>, %arg13: memref<64x32xbf16, #tpu.memory_space<vmem>>, %arg14: memref<32x96xbf16, #tpu.memory_space<vmem>>, %arg15: memref<1x96xf32, #tpu.memory_space<vmem>>, %arg16: memref<32x32xbf16, #tpu.memory_space<vmem>>, %arg17: memref<1x32xf32, #tpu.memory_space<vmem>>, %arg18: memref<1x32xf32, #tpu.memory_space<vmem>>, %arg19: memref<1x32xf32, #tpu.memory_space<vmem>>, %arg20: memref<1x32xf32, #tpu.memory_space<vmem>>, %arg21: memref<1x32xf32, #tpu.memory_space<vmem>>, %arg22: memref<1x32xf32, #tpu.memory_space<vmem>>, %arg23: memref<1x32xf32, #tpu.memory_space<vmem>>, %arg24: memref<32x128xbf16, #tpu.memory_space<vmem>>, %arg25: memref<1x128xf32, #tpu.memory_space<vmem>>, %arg26: memref<128x32xbf16, #tpu.memory_space<vmem>>, %arg27: memref<1x32xf32, #tpu.memory_space<vmem>>, %arg28: memref<1x8x32xf32, #tpu.memory_space<vmem>>) attributes {dimension_semantics = [#tpu.dimension_semantics<parallel>], iteration_bounds = array<i64: 2>, scalar_prefetch = 0 : i64, scratch_operands = 0 : i64, tpu.core_type = #tpu.core_type<tc>, window_params = [{transform_indices = @transform_0, window_bounds = array<i64: 1, 8, 32>}, {pipeline_mode = #tpu.pipeline_mode<synchronous>, transform_indices = @transform_1, window_bounds = array<i64: 32, 64>}, {pipeline_mode = #tpu.pipeline_mode<synchronous>, transform_indices = @transform_2, window_bounds = array<i64: 32, 64>}, {pipeline_mode = #tpu.pipeline_mode<synchronous>, transform_indices = @transform_3, window_bounds = array<i64: 4, 64>}, {pipeline_mode = #tpu.pipeline_mode<synchronous>, transform_indices = @transform_4, window_bounds = array<i64: 1, 64>}, {pipeline_mode = #tpu.pipeline_mode<synchronous>, transform_indices = @transform_5, window_bounds = array<i64: 64, 2>}, {pipeline_mode = #tpu.pipeline_mode<synchronous>, transform_indices = @transform_6, window_bounds = array<i64: 64, 16>}, {pipeline_mode = #tpu.pipeline_mode<synchronous>, transform_indices = @transform_7, window_bounds = array<i64: 64, 16>}, {pipeline_mode = #tpu.pipeline_mode<synchronous>, transform_indices = @transform_8, window_bounds = array<i64: 2, 64>}, {pipeline_mode = #tpu.pipeline_mode<synchronous>, transform_indices = @transform_9, window_bounds = array<i64: 1, 64>}, {pipeline_mode = #tpu.pipeline_mode<synchronous>, transform_indices = @transform_10, window_bounds = array<i64: 16, 64>}, {pipeline_mode = #tpu.pipeline_mode<synchronous>, transform_indices = @transform_11, window_bounds = array<i64: 1, 64>}, {pipeline_mode = #tpu.pipeline_mode<synchronous>, transform_indices = @transform_12, window_bounds = array<i64: 64, 32>}, {pipeline_mode = #tpu.pipeline_mode<synchronous>, transform_indices = @transform_13, window_bounds = array<i64: 32, 96>}, {pipeline_mode = #tpu.pipeline_mode<synchronous>, transform_indices = @transform_14, window_bounds = array<i64: 1, 96>}, {pipeline_mode = #tpu.pipeline_mode<synchronous>, transform_indices = @transform_15, window_bounds = array<i64: 32, 32>}, {pipeline_mode = #tpu.pipeline_mode<synchronous>, transform_indices = @transform_16, window_bounds = array<i64: 1, 32>}, {pipeline_mode = #tpu.pipeline_mode<synchronous>, transform_indices = @transform_17, window_bounds = array<i64: 1, 32>}, {pipeline_mode = #tpu.pipeline_mode<synchronous>, transform_indices = @transform_18, window_bounds = array<i64: 1, 32>}, {pipeline_mode = #tpu.pipeline_mode<synchronous>, transform_indices = @transform_19, window_bounds = array<i64: 1, 32>}, {pipeline_mode = #tpu.pipeline_mode<synchronous>, transform_indices = @transform_20, window_bounds = array<i64: 1, 32>}, {pipeline_mode = #tpu.pipeline_mode<synchronous>, transform_indices = @transform_21, window_bounds = array<i64: 1, 32>}, {pipeline_mode = #tpu.pipeline_mode<synchronous>, transform_indices = @transform_22, window_bounds = array<i64: 1, 32>}, {pipeline_mode = #tpu.pipeline_mode<synchronous>, transform_indices = @transform_23, window_bounds = array<i64: 32, 128>}, {pipeline_mode = #tpu.pipeline_mode<synchronous>, transform_indices = @transform_24, window_bounds = array<i64: 1, 128>}, {pipeline_mode = #tpu.pipeline_mode<synchronous>, transform_indices = @transform_25, window_bounds = array<i64: 128, 32>}, {pipeline_mode = #tpu.pipeline_mode<synchronous>, transform_indices = @transform_26, window_bounds = array<i64: 1, 32>}, {transform_indices = @transform_27, window_bounds = array<i64: 1, 8, 32>}]} {
    %c0 = arith.constant 0 : index
    %c0_0 = arith.constant 0 : index
    %c0_1 = arith.constant 0 : index
    %0 = vector.load %arg1[%c0, %c0_0, %c0_1] : memref<1x8x32xbf16, #tpu.memory_space<vmem>>, vector<1x8x32xbf16>
    %1 = arith.extf %0 : vector<1x8x32xbf16> to vector<1x8x32xf32>
    %2 = vector.shape_cast %1 : vector<1x8x32xf32> to vector<8x32xf32>
    %c0_2 = arith.constant 0 : index
    %c0_3 = arith.constant 0 : index
    %3 = vector.load %arg2[%c0_2, %c0_3] : memref<32x64xbf16, #tpu.memory_space<vmem>>, vector<32x64xbf16>
    %4 = arith.truncf %2 : vector<8x32xf32> to vector<8x32xbf16>
    %cst = arith.constant dense<0.000000e+00> : vector<8x64xf32>
    %5 = tpu.matmul %4, %3, %cst {dimension_numbers = #tpu.dot_dimension_numbers<[1], [0], [0], [1], [0, 0, 1, 1], [], []>} : vector<8x32xbf16>, vector<32x64xbf16>, vector<8x64xf32> -> vector<8x64xf32>
    %c0_4 = arith.constant 0 : index
    %c0_5 = arith.constant 0 : index
    %6 = vector.load %arg3[%c0_4, %c0_5] : memref<32x64xbf16, #tpu.memory_space<vmem>>, vector<32x64xbf16>
    %7 = arith.truncf %2 : vector<8x32xf32> to vector<8x32xbf16>
    %cst_6 = arith.constant dense<0.000000e+00> : vector<8x64xf32>
    %8 = tpu.matmul %7, %6, %cst_6 {dimension_numbers = #tpu.dot_dimension_numbers<[1], [0], [0], [1], [0, 0, 1, 1], [], []>} : vector<8x32xbf16>, vector<32x64xbf16>, vector<8x64xf32> -> vector<8x64xf32>
    %c0_7 = arith.constant 0 : index
    %c0_8 = arith.constant 0 : index
    %9 = vector.load %arg4[%c0_7, %c0_8] : memref<4x64xf32, #tpu.memory_space<vmem>>, vector<4x64xf32>
    %10 = vector.shape_cast %5 : vector<8x64xf32> to vector<1x8x64xf32>
    %11 = vector.extract_strided_slice %9 {offsets = [3, 0], sizes = [1, 64], strides = [1, 1]} : vector<4x64xf32> to vector<1x64xf32>
    %12 = vector.shape_cast %11 : vector<1x64xf32> to vector<1x1x64xf32>
    %13 = vector.broadcast %12 : vector<1x1x64xf32> to vector<1x8x64xf32>
    %14 = arith.mulf %10, %13 : vector<1x8x64xf32>
    %cst_9 = arith.constant 0.000000e+00 : f32
    %15 = vector.broadcast %cst_9 : f32 to vector<1x3x64xf32>
    %16 = vector.extract_strided_slice %10 {offsets = [0, 0, 0], sizes = [1, 5, 64], strides = [1, 1, 1]} : vector<1x8x64xf32> to vector<1x5x64xf32>
    %17 = tpu.concatenate %15, %16 in 1 : vector<1x3x64xf32>, vector<1x5x64xf32> -> vector<1x8x64xf32>
    %18 = vector.extract_strided_slice %9 {offsets = [0, 0], sizes = [1, 64], strides = [1, 1]} : vector<4x64xf32> to vector<1x64xf32>
    %19 = vector.shape_cast %18 : vector<1x64xf32> to vector<1x1x64xf32>
    %20 = vector.broadcast %19 : vector<1x1x64xf32> to vector<1x8x64xf32>
    %21 = arith.mulf %17, %20 : vector<1x8x64xf32>
    %22 = arith.addf %14, %21 : vector<1x8x64xf32>
    %cst_10 = arith.constant 0.000000e+00 : f32
    %23 = vector.broadcast %cst_10 : f32 to vector<1x2x64xf32>
    %24 = vector.extract_strided_slice %10 {offsets = [0, 0, 0], sizes = [1, 6, 64], strides = [1, 1, 1]} : vector<1x8x64xf32> to vector<1x6x64xf32>
    %25 = tpu.concatenate %23, %24 in 1 : vector<1x2x64xf32>, vector<1x6x64xf32> -> vector<1x8x64xf32>
    %26 = vector.extract_strided_slice %9 {offsets = [1, 0], sizes = [1, 64], strides = [1, 1]} : vector<4x64xf32> to vector<1x64xf32>
    %27 = vector.shape_cast %26 : vector<1x64xf32> to vector<1x1x64xf32>
    %28 = vector.broadcast %27 : vector<1x1x64xf32> to vector<1x8x64xf32>
    %29 = arith.mulf %25, %28 : vector<1x8x64xf32>
    %30 = arith.addf %22, %29 : vector<1x8x64xf32>
    %cst_11 = arith.constant 0.000000e+00 : f32
    %31 = vector.broadcast %cst_11 : f32 to vector<1x1x64xf32>
    %32 = vector.extract_strided_slice %10 {offsets = [0, 0, 0], sizes = [1, 7, 64], strides = [1, 1, 1]} : vector<1x8x64xf32> to vector<1x7x64xf32>
    %33 = tpu.concatenate %31, %32 in 1 : vector<1x1x64xf32>, vector<1x7x64xf32> -> vector<1x8x64xf32>
    %34 = vector.extract_strided_slice %9 {offsets = [2, 0], sizes = [1, 64], strides = [1, 1]} : vector<4x64xf32> to vector<1x64xf32>
    %35 = vector.shape_cast %34 : vector<1x64xf32> to vector<1x1x64xf32>
    %36 = vector.broadcast %35 : vector<1x1x64xf32> to vector<1x8x64xf32>
    %37 = arith.mulf %33, %36 : vector<1x8x64xf32>
    %38 = arith.addf %30, %37 : vector<1x8x64xf32>
    %c0_12 = arith.constant 0 : index
    %c0_13 = arith.constant 0 : index
    %39 = vector.load %arg5[%c0_12, %c0_13] : memref<1x64xf32, #tpu.memory_space<vmem>>, vector<1x64xf32>
    %40 = vector.shape_cast %39 : vector<1x64xf32> to vector<1x1x64xf32>
    %41 = vector.broadcast %40 : vector<1x1x64xf32> to vector<1x8x64xf32>
    %42 = arith.addf %38, %41 : vector<1x8x64xf32>
    %cst_14 = arith.constant 0.000000e+00 : f32
    %43 = vector.broadcast %cst_14 : f32 to vector<1x8x64xf32>
    %44 = arith.subf %43, %42 : vector<1x8x64xf32>
    %45 = math.exp %44 : vector<1x8x64xf32>
    %cst_15 = arith.constant 1.000000e+00 : f32
    %46 = vector.broadcast %cst_15 : f32 to vector<1x8x64xf32>
    %47 = arith.addf %46, %45 : vector<1x8x64xf32>
    %48 = tpu.reciprocal %47 {approx = true} : vector<1x8x64xf32> -> vector<1x8x64xf32>
    %49 = arith.mulf %42, %48 : vector<1x8x64xf32>
    %50 = vector.shape_cast %49 : vector<1x8x64xf32> to vector<8x64xf32>
    %c0_16 = arith.constant 0 : index
    %c0_17 = arith.constant 0 : index
    %51 = vector.load %arg6[%c0_16, %c0_17] : memref<64x2xbf16, #tpu.memory_space<vmem>>, vector<64x2xbf16>
    %52 = arith.truncf %50 : vector<8x64xf32> to vector<8x64xbf16>
    %cst_18 = arith.constant dense<0.000000e+00> : vector<8x2xf32>
    %53 = tpu.matmul %52, %51, %cst_18 {dimension_numbers = #tpu.dot_dimension_numbers<[1], [0], [0], [1], [0, 0, 1, 1], [], []>} : vector<8x64xbf16>, vector<64x2xbf16>, vector<8x2xf32> -> vector<8x2xf32>
    %c0_19 = arith.constant 0 : index
    %c0_20 = arith.constant 0 : index
    %54 = vector.load %arg9[%c0_19, %c0_20] : memref<2x64xbf16, #tpu.memory_space<vmem>>, vector<2x64xbf16>
    %55 = arith.truncf %53 : vector<8x2xf32> to vector<8x2xbf16>
    %cst_21 = arith.constant dense<0.000000e+00> : vector<8x64xf32>
    %56 = tpu.matmul %55, %54, %cst_21 {dimension_numbers = #tpu.dot_dimension_numbers<[1], [0], [0], [1], [0, 0, 1, 1], [], []>} : vector<8x2xbf16>, vector<2x64xbf16>, vector<8x64xf32> -> vector<8x64xf32>
    %c0_22 = arith.constant 0 : index
    %c0_23 = arith.constant 0 : index
    %57 = vector.load %arg10[%c0_22, %c0_23] : memref<1x64xf32, #tpu.memory_space<vmem>>, vector<1x64xf32>
    %58 = vector.broadcast %57 : vector<1x64xf32> to vector<8x64xf32>
    %59 = arith.addf %56, %58 : vector<8x64xf32>
    %cst_24 = arith.constant 0.000000e+00 : f32
    %60 = vector.broadcast %cst_24 : f32 to vector<8x64xf32>
    %61 = arith.maximumf %59, %60 : vector<8x64xf32>
    %62 = math.absf %59 : vector<8x64xf32>
    %cst_25 = arith.constant 0.000000e+00 : f32
    %63 = vector.broadcast %cst_25 : f32 to vector<8x64xf32>
    %64 = arith.subf %63, %62 : vector<8x64xf32>
    %65 = math.exp %64 : vector<8x64xf32>
    %cst_26 = arith.constant 1.000000e+00 : f32
    %66 = vector.broadcast %cst_26 : f32 to vector<8x64xf32>
    %67 = arith.addf %66, %65 : vector<8x64xf32>
    %68 = math.log %67 : vector<8x64xf32>
    %69 = arith.addf %61, %68 : vector<8x64xf32>
    %c0_27 = arith.constant 0 : index
    %c0_28 = arith.constant 0 : index
    %70 = vector.load %arg7[%c0_27, %c0_28] : memref<64x16xbf16, #tpu.memory_space<vmem>>, vector<64x16xbf16>
    %71 = arith.truncf %50 : vector<8x64xf32> to vector<8x64xbf16>
    %cst_29 = arith.constant dense<0.000000e+00> : vector<8x16xf32>
    %72 = tpu.matmul %71, %70, %cst_29 {dimension_numbers = #tpu.dot_dimension_numbers<[1], [0], [0], [1], [0, 0, 1, 1], [], []>} : vector<8x64xbf16>, vector<64x16xbf16>, vector<8x16xf32> -> vector<8x16xf32>
    %c0_30 = arith.constant 0 : index
    %c0_31 = arith.constant 0 : index
    %73 = vector.load %arg8[%c0_30, %c0_31] : memref<64x16xbf16, #tpu.memory_space<vmem>>, vector<64x16xbf16>
    %74 = arith.truncf %50 : vector<8x64xf32> to vector<8x64xbf16>
    %cst_32 = arith.constant dense<0.000000e+00> : vector<8x16xf32>
    %75 = tpu.matmul %74, %73, %cst_32 {dimension_numbers = #tpu.dot_dimension_numbers<[1], [0], [0], [1], [0, 0, 1, 1], [], []>} : vector<8x64xbf16>, vector<64x16xbf16>, vector<8x16xf32> -> vector<8x16xf32>
    %c0_33 = arith.constant 0 : index
    %c0_34 = arith.constant 0 : index
    %76 = vector.load %arg11[%c0_33, %c0_34] : memref<16x64xf32, #tpu.memory_space<vmem>>, vector<16x64xf32>
    %77 = math.exp %76 : vector<16x64xf32>
    %cst_35 = arith.constant 0.000000e+00 : f32
    %78 = vector.broadcast %cst_35 : f32 to vector<16x64xf32>
    %79 = arith.subf %78, %77 : vector<16x64xf32>
    %cst_36 = arith.constant 0.000000e+00 : f32
    %80 = vector.broadcast %cst_36 : f32 to vector<1x16x64xf32>
    %81 = vector.shape_cast %69 : vector<8x64xf32> to vector<1x8x64xf32>
    %82 = vector.shape_cast %72 : vector<8x16xf32> to vector<1x8x16xf32>
    %83 = vector.shape_cast %75 : vector<8x16xf32> to vector<1x8x16xf32>
    %84 = tpu.transpose %82, [0, 2, 1] : vector<1x8x16xf32> -> vector<1x16x8xf32>
    %85 = arith.mulf %81, %49 : vector<1x8x64xf32>
    %86 = vector.extract_strided_slice %81 {offsets = [0, 0, 0], sizes = [1, 1, 64], strides = [1, 1, 1]} : vector<1x8x64xf32> to vector<1x1x64xf32>
    %87 = vector.shape_cast %79 : vector<16x64xf32> to vector<1x16x64xf32>
    %88 = vector.broadcast %86 : vector<1x1x64xf32> to vector<1x16x64xf32>
    %89 = arith.mulf %88, %87 : vector<1x16x64xf32>
    %90 = math.exp %89 : vector<1x16x64xf32>
    %91 = arith.mulf %90, %80 : vector<1x16x64xf32>
    %92 = vector.extract_strided_slice %84 {offsets = [0, 0, 0], sizes = [1, 16, 1], strides = [1, 1, 1]} : vector<1x16x8xf32> to vector<1x16x1xf32>
    %93 = vector.extract_strided_slice %85 {offsets = [0, 0, 0], sizes = [1, 1, 64], strides = [1, 1, 1]} : vector<1x8x64xf32> to vector<1x1x64xf32>
    %94 = vector.broadcast %92 : vector<1x16x1xf32> to vector<1x16x64xf32>
    %95 = vector.broadcast %93 : vector<1x1x64xf32> to vector<1x16x64xf32>
    %96 = arith.mulf %94, %95 : vector<1x16x64xf32>
    %97 = arith.addf %91, %96 : vector<1x16x64xf32>
    %98 = vector.extract_strided_slice %83 {offsets = [0, 0, 0], sizes = [1, 1, 16], strides = [1, 1, 1]} : vector<1x8x16xf32> to vector<1x1x16xf32>
    %cst_37 = arith.constant dense<0.000000e+00> : vector<1x1x64xf32>
    %99 = tpu.matmul %98, %97, %cst_37 {dimension_numbers = #tpu.dot_dimension_numbers<[2], [1], [1], [2], [0, 0, 0, 1, 1, 2], [0], [0]>} : vector<1x1x16xf32>, vector<1x16x64xf32>, vector<1x1x64xf32> -> vector<1x1x64xf32>
    %100 = vector.extract_strided_slice %81 {offsets = [0, 1, 0], sizes = [1, 1, 64], strides = [1, 1, 1]} : vector<1x8x64xf32> to vector<1x1x64xf32>
    %101 = vector.shape_cast %79 : vector<16x64xf32> to vector<1x16x64xf32>
    %102 = vector.broadcast %100 : vector<1x1x64xf32> to vector<1x16x64xf32>
    %103 = arith.mulf %102, %101 : vector<1x16x64xf32>
    %104 = math.exp %103 : vector<1x16x64xf32>
    %105 = arith.mulf %104, %97 : vector<1x16x64xf32>
    %106 = vector.extract_strided_slice %84 {offsets = [0, 0, 1], sizes = [1, 16, 1], strides = [1, 1, 1]} : vector<1x16x8xf32> to vector<1x16x1xf32>
    %107 = vector.extract_strided_slice %85 {offsets = [0, 1, 0], sizes = [1, 1, 64], strides = [1, 1, 1]} : vector<1x8x64xf32> to vector<1x1x64xf32>
    %108 = vector.broadcast %106 : vector<1x16x1xf32> to vector<1x16x64xf32>
    %109 = vector.broadcast %107 : vector<1x1x64xf32> to vector<1x16x64xf32>
    %110 = arith.mulf %108, %109 : vector<1x16x64xf32>
    %111 = arith.addf %105, %110 : vector<1x16x64xf32>
    %112 = vector.extract_strided_slice %83 {offsets = [0, 1, 0], sizes = [1, 1, 16], strides = [1, 1, 1]} : vector<1x8x16xf32> to vector<1x1x16xf32>
    %cst_38 = arith.constant dense<0.000000e+00> : vector<1x1x64xf32>
    %113 = tpu.matmul %112, %111, %cst_38 {dimension_numbers = #tpu.dot_dimension_numbers<[2], [1], [1], [2], [0, 0, 0, 1, 1, 2], [0], [0]>} : vector<1x1x16xf32>, vector<1x16x64xf32>, vector<1x1x64xf32> -> vector<1x1x64xf32>
    %114 = vector.extract_strided_slice %81 {offsets = [0, 2, 0], sizes = [1, 1, 64], strides = [1, 1, 1]} : vector<1x8x64xf32> to vector<1x1x64xf32>
    %115 = vector.shape_cast %79 : vector<16x64xf32> to vector<1x16x64xf32>
    %116 = vector.broadcast %114 : vector<1x1x64xf32> to vector<1x16x64xf32>
    %117 = arith.mulf %116, %115 : vector<1x16x64xf32>
    %118 = math.exp %117 : vector<1x16x64xf32>
    %119 = arith.mulf %118, %111 : vector<1x16x64xf32>
    %120 = vector.extract_strided_slice %84 {offsets = [0, 0, 2], sizes = [1, 16, 1], strides = [1, 1, 1]} : vector<1x16x8xf32> to vector<1x16x1xf32>
    %121 = vector.extract_strided_slice %85 {offsets = [0, 2, 0], sizes = [1, 1, 64], strides = [1, 1, 1]} : vector<1x8x64xf32> to vector<1x1x64xf32>
    %122 = vector.broadcast %120 : vector<1x16x1xf32> to vector<1x16x64xf32>
    %123 = vector.broadcast %121 : vector<1x1x64xf32> to vector<1x16x64xf32>
    %124 = arith.mulf %122, %123 : vector<1x16x64xf32>
    %125 = arith.addf %119, %124 : vector<1x16x64xf32>
    %126 = vector.extract_strided_slice %83 {offsets = [0, 2, 0], sizes = [1, 1, 16], strides = [1, 1, 1]} : vector<1x8x16xf32> to vector<1x1x16xf32>
    %cst_39 = arith.constant dense<0.000000e+00> : vector<1x1x64xf32>
    %127 = tpu.matmul %126, %125, %cst_39 {dimension_numbers = #tpu.dot_dimension_numbers<[2], [1], [1], [2], [0, 0, 0, 1, 1, 2], [0], [0]>} : vector<1x1x16xf32>, vector<1x16x64xf32>, vector<1x1x64xf32> -> vector<1x1x64xf32>
    %128 = vector.extract_strided_slice %81 {offsets = [0, 3, 0], sizes = [1, 1, 64], strides = [1, 1, 1]} : vector<1x8x64xf32> to vector<1x1x64xf32>
    %129 = vector.shape_cast %79 : vector<16x64xf32> to vector<1x16x64xf32>
    %130 = vector.broadcast %128 : vector<1x1x64xf32> to vector<1x16x64xf32>
    %131 = arith.mulf %130, %129 : vector<1x16x64xf32>
    %132 = math.exp %131 : vector<1x16x64xf32>
    %133 = arith.mulf %132, %125 : vector<1x16x64xf32>
    %134 = vector.extract_strided_slice %84 {offsets = [0, 0, 3], sizes = [1, 16, 1], strides = [1, 1, 1]} : vector<1x16x8xf32> to vector<1x16x1xf32>
    %135 = vector.extract_strided_slice %85 {offsets = [0, 3, 0], sizes = [1, 1, 64], strides = [1, 1, 1]} : vector<1x8x64xf32> to vector<1x1x64xf32>
    %136 = vector.broadcast %134 : vector<1x16x1xf32> to vector<1x16x64xf32>
    %137 = vector.broadcast %135 : vector<1x1x64xf32> to vector<1x16x64xf32>
    %138 = arith.mulf %136, %137 : vector<1x16x64xf32>
    %139 = arith.addf %133, %138 : vector<1x16x64xf32>
    %140 = vector.extract_strided_slice %83 {offsets = [0, 3, 0], sizes = [1, 1, 16], strides = [1, 1, 1]} : vector<1x8x16xf32> to vector<1x1x16xf32>
    %cst_40 = arith.constant dense<0.000000e+00> : vector<1x1x64xf32>
    %141 = tpu.matmul %140, %139, %cst_40 {dimension_numbers = #tpu.dot_dimension_numbers<[2], [1], [1], [2], [0, 0, 0, 1, 1, 2], [0], [0]>} : vector<1x1x16xf32>, vector<1x16x64xf32>, vector<1x1x64xf32> -> vector<1x1x64xf32>
    %142 = vector.extract_strided_slice %81 {offsets = [0, 4, 0], sizes = [1, 1, 64], strides = [1, 1, 1]} : vector<1x8x64xf32> to vector<1x1x64xf32>
    %143 = vector.shape_cast %79 : vector<16x64xf32> to vector<1x16x64xf32>
    %144 = vector.broadcast %142 : vector<1x1x64xf32> to vector<1x16x64xf32>
    %145 = arith.mulf %144, %143 : vector<1x16x64xf32>
    %146 = math.exp %145 : vector<1x16x64xf32>
    %147 = arith.mulf %146, %139 : vector<1x16x64xf32>
    %148 = vector.extract_strided_slice %84 {offsets = [0, 0, 4], sizes = [1, 16, 1], strides = [1, 1, 1]} : vector<1x16x8xf32> to vector<1x16x1xf32>
    %149 = vector.extract_strided_slice %85 {offsets = [0, 4, 0], sizes = [1, 1, 64], strides = [1, 1, 1]} : vector<1x8x64xf32> to vector<1x1x64xf32>
    %150 = vector.broadcast %148 : vector<1x16x1xf32> to vector<1x16x64xf32>
    %151 = vector.broadcast %149 : vector<1x1x64xf32> to vector<1x16x64xf32>
    %152 = arith.mulf %150, %151 : vector<1x16x64xf32>
    %153 = arith.addf %147, %152 : vector<1x16x64xf32>
    %154 = vector.extract_strided_slice %83 {offsets = [0, 4, 0], sizes = [1, 1, 16], strides = [1, 1, 1]} : vector<1x8x16xf32> to vector<1x1x16xf32>
    %cst_41 = arith.constant dense<0.000000e+00> : vector<1x1x64xf32>
    %155 = tpu.matmul %154, %153, %cst_41 {dimension_numbers = #tpu.dot_dimension_numbers<[2], [1], [1], [2], [0, 0, 0, 1, 1, 2], [0], [0]>} : vector<1x1x16xf32>, vector<1x16x64xf32>, vector<1x1x64xf32> -> vector<1x1x64xf32>
    %156 = vector.extract_strided_slice %81 {offsets = [0, 5, 0], sizes = [1, 1, 64], strides = [1, 1, 1]} : vector<1x8x64xf32> to vector<1x1x64xf32>
    %157 = vector.shape_cast %79 : vector<16x64xf32> to vector<1x16x64xf32>
    %158 = vector.broadcast %156 : vector<1x1x64xf32> to vector<1x16x64xf32>
    %159 = arith.mulf %158, %157 : vector<1x16x64xf32>
    %160 = math.exp %159 : vector<1x16x64xf32>
    %161 = arith.mulf %160, %153 : vector<1x16x64xf32>
    %162 = vector.extract_strided_slice %84 {offsets = [0, 0, 5], sizes = [1, 16, 1], strides = [1, 1, 1]} : vector<1x16x8xf32> to vector<1x16x1xf32>
    %163 = vector.extract_strided_slice %85 {offsets = [0, 5, 0], sizes = [1, 1, 64], strides = [1, 1, 1]} : vector<1x8x64xf32> to vector<1x1x64xf32>
    %164 = vector.broadcast %162 : vector<1x16x1xf32> to vector<1x16x64xf32>
    %165 = vector.broadcast %163 : vector<1x1x64xf32> to vector<1x16x64xf32>
    %166 = arith.mulf %164, %165 : vector<1x16x64xf32>
    %167 = arith.addf %161, %166 : vector<1x16x64xf32>
    %168 = vector.extract_strided_slice %83 {offsets = [0, 5, 0], sizes = [1, 1, 16], strides = [1, 1, 1]} : vector<1x8x16xf32> to vector<1x1x16xf32>
    %cst_42 = arith.constant dense<0.000000e+00> : vector<1x1x64xf32>
    %169 = tpu.matmul %168, %167, %cst_42 {dimension_numbers = #tpu.dot_dimension_numbers<[2], [1], [1], [2], [0, 0, 0, 1, 1, 2], [0], [0]>} : vector<1x1x16xf32>, vector<1x16x64xf32>, vector<1x1x64xf32> -> vector<1x1x64xf32>
    %170 = vector.extract_strided_slice %81 {offsets = [0, 6, 0], sizes = [1, 1, 64], strides = [1, 1, 1]} : vector<1x8x64xf32> to vector<1x1x64xf32>
    %171 = vector.shape_cast %79 : vector<16x64xf32> to vector<1x16x64xf32>
    %172 = vector.broadcast %170 : vector<1x1x64xf32> to vector<1x16x64xf32>
    %173 = arith.mulf %172, %171 : vector<1x16x64xf32>
    %174 = math.exp %173 : vector<1x16x64xf32>
    %175 = arith.mulf %174, %167 : vector<1x16x64xf32>
    %176 = vector.extract_strided_slice %84 {offsets = [0, 0, 6], sizes = [1, 16, 1], strides = [1, 1, 1]} : vector<1x16x8xf32> to vector<1x16x1xf32>
    %177 = vector.extract_strided_slice %85 {offsets = [0, 6, 0], sizes = [1, 1, 64], strides = [1, 1, 1]} : vector<1x8x64xf32> to vector<1x1x64xf32>
    %178 = vector.broadcast %176 : vector<1x16x1xf32> to vector<1x16x64xf32>
    %179 = vector.broadcast %177 : vector<1x1x64xf32> to vector<1x16x64xf32>
    %180 = arith.mulf %178, %179 : vector<1x16x64xf32>
    %181 = arith.addf %175, %180 : vector<1x16x64xf32>
    %182 = vector.extract_strided_slice %83 {offsets = [0, 6, 0], sizes = [1, 1, 16], strides = [1, 1, 1]} : vector<1x8x16xf32> to vector<1x1x16xf32>
    %cst_43 = arith.constant dense<0.000000e+00> : vector<1x1x64xf32>
    %183 = tpu.matmul %182, %181, %cst_43 {dimension_numbers = #tpu.dot_dimension_numbers<[2], [1], [1], [2], [0, 0, 0, 1, 1, 2], [0], [0]>} : vector<1x1x16xf32>, vector<1x16x64xf32>, vector<1x1x64xf32> -> vector<1x1x64xf32>
    %184 = vector.extract_strided_slice %81 {offsets = [0, 7, 0], sizes = [1, 1, 64], strides = [1, 1, 1]} : vector<1x8x64xf32> to vector<1x1x64xf32>
    %185 = vector.shape_cast %79 : vector<16x64xf32> to vector<1x16x64xf32>
    %186 = vector.broadcast %184 : vector<1x1x64xf32> to vector<1x16x64xf32>
    %187 = arith.mulf %186, %185 : vector<1x16x64xf32>
    %188 = math.exp %187 : vector<1x16x64xf32>
    %189 = arith.mulf %188, %181 : vector<1x16x64xf32>
    %190 = vector.extract_strided_slice %84 {offsets = [0, 0, 7], sizes = [1, 16, 1], strides = [1, 1, 1]} : vector<1x16x8xf32> to vector<1x16x1xf32>
    %191 = vector.extract_strided_slice %85 {offsets = [0, 7, 0], sizes = [1, 1, 64], strides = [1, 1, 1]} : vector<1x8x64xf32> to vector<1x1x64xf32>
    %192 = vector.broadcast %190 : vector<1x16x1xf32> to vector<1x16x64xf32>
    %193 = vector.broadcast %191 : vector<1x1x64xf32> to vector<1x16x64xf32>
    %194 = arith.mulf %192, %193 : vector<1x16x64xf32>
    %195 = arith.addf %189, %194 : vector<1x16x64xf32>
    %196 = vector.extract_strided_slice %83 {offsets = [0, 7, 0], sizes = [1, 1, 16], strides = [1, 1, 1]} : vector<1x8x16xf32> to vector<1x1x16xf32>
    %cst_44 = arith.constant dense<0.000000e+00> : vector<1x1x64xf32>
    %197 = tpu.matmul %196, %195, %cst_44 {dimension_numbers = #tpu.dot_dimension_numbers<[2], [1], [1], [2], [0, 0, 0, 1, 1, 2], [0], [0]>} : vector<1x1x16xf32>, vector<1x16x64xf32>, vector<1x1x64xf32> -> vector<1x1x64xf32>
    %198 = tpu.concatenate %99, %113, %127, %141, %155, %169, %183, %197 in 1 : vector<1x1x64xf32>, vector<1x1x64xf32>, vector<1x1x64xf32>, vector<1x1x64xf32>, vector<1x1x64xf32>, vector<1x1x64xf32>, vector<1x1x64xf32>, vector<1x1x64xf32> -> vector<1x8x64xf32>
    %199 = vector.shape_cast %198 : vector<1x8x64xf32> to vector<8x64xf32>
    %c0_45 = arith.constant 0 : index
    %c0_46 = arith.constant 0 : index
    %200 = vector.load %arg12[%c0_45, %c0_46] : memref<1x64xf32, #tpu.memory_space<vmem>>, vector<1x64xf32>
    %201 = vector.broadcast %200 : vector<1x64xf32> to vector<8x64xf32>
    %202 = arith.mulf %50, %201 : vector<8x64xf32>
    %203 = arith.addf %199, %202 : vector<8x64xf32>
    %cst_47 = arith.constant 0.000000e+00 : f32
    %204 = vector.broadcast %cst_47 : f32 to vector<8x64xf32>
    %205 = arith.subf %204, %8 : vector<8x64xf32>
    %206 = math.exp %205 : vector<8x64xf32>
    %cst_48 = arith.constant 1.000000e+00 : f32
    %207 = vector.broadcast %cst_48 : f32 to vector<8x64xf32>
    %208 = arith.addf %207, %206 : vector<8x64xf32>
    %209 = tpu.reciprocal %208 {approx = true} : vector<8x64xf32> -> vector<8x64xf32>
    %210 = arith.mulf %8, %209 : vector<8x64xf32>
    %211 = arith.mulf %203, %210 : vector<8x64xf32>
    %c0_49 = arith.constant 0 : index
    %c0_50 = arith.constant 0 : index
    %212 = vector.load %arg13[%c0_49, %c0_50] : memref<64x32xbf16, #tpu.memory_space<vmem>>, vector<64x32xbf16>
    %213 = arith.truncf %211 : vector<8x64xf32> to vector<8x64xbf16>
    %cst_51 = arith.constant dense<0.000000e+00> : vector<8x32xf32>
    %214 = tpu.matmul %213, %212, %cst_51 {dimension_numbers = #tpu.dot_dimension_numbers<[1], [0], [0], [1], [0, 0, 1, 1], [], []>} : vector<8x64xbf16>, vector<64x32xbf16>, vector<8x32xf32> -> vector<8x32xf32>
    %215 = arith.addf %214, %2 : vector<8x32xf32>
    %c0_52 = arith.constant 0 : index
    %c0_53 = arith.constant 0 : index
    %216 = vector.load %arg18[%c0_52, %c0_53] : memref<1x32xf32, #tpu.memory_space<vmem>>, vector<1x32xf32>
    %c0_54 = arith.constant 0 : index
    %c0_55 = arith.constant 0 : index
    %217 = vector.load %arg19[%c0_54, %c0_55] : memref<1x32xf32, #tpu.memory_space<vmem>>, vector<1x32xf32>
    %cst_56 = arith.constant dense<0.000000e+00> : vector<8xf32>
    %218 = vector.multi_reduction <add>, %215, %cst_56 [1] : vector<8x32xf32> to vector<8xf32>
    %219 = vector.shape_cast %218 : vector<8xf32> to vector<8x1xf32>
    %cst_57 = arith.constant 3.200000e+01 : f32
    %220 = vector.broadcast %cst_57 : f32 to vector<8x1xf32>
    %221 = arith.divf %219, %220 : vector<8x1xf32>
    %222 = vector.broadcast %221 : vector<8x1xf32> to vector<8x32xf32>
    %223 = arith.subf %215, %222 : vector<8x32xf32>
    %224 = arith.mulf %223, %223 : vector<8x32xf32>
    %cst_58 = arith.constant dense<0.000000e+00> : vector<8xf32>
    %225 = vector.multi_reduction <add>, %224, %cst_58 [1] : vector<8x32xf32> to vector<8xf32>
    %226 = vector.shape_cast %225 : vector<8xf32> to vector<8x1xf32>
    %cst_59 = arith.constant 3.200000e+01 : f32
    %227 = vector.broadcast %cst_59 : f32 to vector<8x1xf32>
    %228 = arith.divf %226, %227 : vector<8x1xf32>
    %229 = vector.broadcast %221 : vector<8x1xf32> to vector<8x32xf32>
    %230 = arith.subf %215, %229 : vector<8x32xf32>
    %cst_60 = arith.constant 9.99999974E-6 : f32
    %231 = vector.broadcast %cst_60 : f32 to vector<8x1xf32>
    %232 = arith.addf %228, %231 : vector<8x1xf32>
    %233 = math.rsqrt %232 : vector<8x1xf32>
    %234 = vector.broadcast %233 : vector<8x1xf32> to vector<8x32xf32>
    %235 = arith.mulf %230, %234 : vector<8x32xf32>
    %236 = vector.broadcast %216 : vector<1x32xf32> to vector<8x32xf32>
    %237 = arith.mulf %235, %236 : vector<8x32xf32>
    %238 = vector.broadcast %217 : vector<1x32xf32> to vector<8x32xf32>
    %239 = arith.addf %237, %238 : vector<8x32xf32>
    %c0_61 = arith.constant 0 : index
    %c0_62 = arith.constant 0 : index
    %240 = vector.load %arg14[%c0_61, %c0_62] : memref<32x96xbf16, #tpu.memory_space<vmem>>, vector<32x96xbf16>
    %241 = arith.truncf %239 : vector<8x32xf32> to vector<8x32xbf16>
    %cst_63 = arith.constant dense<0.000000e+00> : vector<8x96xf32>
    %242 = tpu.matmul %241, %240, %cst_63 {dimension_numbers = #tpu.dot_dimension_numbers<[1], [0], [0], [1], [0, 0, 1, 1], [], []>} : vector<8x32xbf16>, vector<32x96xbf16>, vector<8x96xf32> -> vector<8x96xf32>
    %c0_64 = arith.constant 0 : index
    %c0_65 = arith.constant 0 : index
    %243 = vector.load %arg15[%c0_64, %c0_65] : memref<1x96xf32, #tpu.memory_space<vmem>>, vector<1x96xf32>
    %244 = vector.broadcast %243 : vector<1x96xf32> to vector<8x96xf32>
    %245 = arith.addf %242, %244 : vector<8x96xf32>
    %246 = arith.truncf %245 : vector<8x96xf32> to vector<8x96xbf16>
    %247 = vector.extract_strided_slice %246 {offsets = [0, 0], sizes = [8, 8], strides = [1, 1]} : vector<8x96xbf16> to vector<8x8xbf16>
    %248 = vector.shape_cast %247 : vector<8x8xbf16> to vector<1x8x8xbf16>
    %249 = vector.extract_strided_slice %246 {offsets = [0, 8], sizes = [8, 8], strides = [1, 1]} : vector<8x96xbf16> to vector<8x8xbf16>
    %250 = vector.shape_cast %249 : vector<8x8xbf16> to vector<1x8x8xbf16>
    %251 = vector.extract_strided_slice %246 {offsets = [0, 16], sizes = [8, 8], strides = [1, 1]} : vector<8x96xbf16> to vector<8x8xbf16>
    %252 = vector.shape_cast %251 : vector<8x8xbf16> to vector<1x8x8xbf16>
    %253 = vector.extract_strided_slice %246 {offsets = [0, 24], sizes = [8, 8], strides = [1, 1]} : vector<8x96xbf16> to vector<8x8xbf16>
    %254 = vector.shape_cast %253 : vector<8x8xbf16> to vector<1x8x8xbf16>
    %255 = tpu.concatenate %248, %250, %252, %254 in 0 : vector<1x8x8xbf16>, vector<1x8x8xbf16>, vector<1x8x8xbf16>, vector<1x8x8xbf16> -> vector<4x8x8xbf16>
    %256 = vector.extract_strided_slice %246 {offsets = [0, 32], sizes = [8, 8], strides = [1, 1]} : vector<8x96xbf16> to vector<8x8xbf16>
    %257 = vector.shape_cast %256 : vector<8x8xbf16> to vector<1x8x8xbf16>
    %258 = vector.extract_strided_slice %246 {offsets = [0, 40], sizes = [8, 8], strides = [1, 1]} : vector<8x96xbf16> to vector<8x8xbf16>
    %259 = vector.shape_cast %258 : vector<8x8xbf16> to vector<1x8x8xbf16>
    %260 = vector.extract_strided_slice %246 {offsets = [0, 48], sizes = [8, 8], strides = [1, 1]} : vector<8x96xbf16> to vector<8x8xbf16>
    %261 = vector.shape_cast %260 : vector<8x8xbf16> to vector<1x8x8xbf16>
    %262 = vector.extract_strided_slice %246 {offsets = [0, 56], sizes = [8, 8], strides = [1, 1]} : vector<8x96xbf16> to vector<8x8xbf16>
    %263 = vector.shape_cast %262 : vector<8x8xbf16> to vector<1x8x8xbf16>
    %264 = tpu.concatenate %257, %259, %261, %263 in 0 : vector<1x8x8xbf16>, vector<1x8x8xbf16>, vector<1x8x8xbf16>, vector<1x8x8xbf16> -> vector<4x8x8xbf16>
    %265 = vector.extract_strided_slice %246 {offsets = [0, 64], sizes = [8, 8], strides = [1, 1]} : vector<8x96xbf16> to vector<8x8xbf16>
    %266 = vector.shape_cast %265 : vector<8x8xbf16> to vector<1x8x8xbf16>
    %267 = vector.extract_strided_slice %246 {offsets = [0, 72], sizes = [8, 8], strides = [1, 1]} : vector<8x96xbf16> to vector<8x8xbf16>
    %268 = vector.shape_cast %267 : vector<8x8xbf16> to vector<1x8x8xbf16>
    %269 = vector.extract_strided_slice %246 {offsets = [0, 80], sizes = [8, 8], strides = [1, 1]} : vector<8x96xbf16> to vector<8x8xbf16>
    %270 = vector.shape_cast %269 : vector<8x8xbf16> to vector<1x8x8xbf16>
    %271 = vector.extract_strided_slice %246 {offsets = [0, 88], sizes = [8, 8], strides = [1, 1]} : vector<8x96xbf16> to vector<8x8xbf16>
    %272 = vector.shape_cast %271 : vector<8x8xbf16> to vector<1x8x8xbf16>
    %273 = tpu.concatenate %266, %268, %270, %272 in 0 : vector<1x8x8xbf16>, vector<1x8x8xbf16>, vector<1x8x8xbf16>, vector<1x8x8xbf16> -> vector<4x8x8xbf16>
    %cst_66 = arith.constant dense<0.000000e+00> : vector<4x8x8xf32>
    %274 = tpu.matmul %255, %264, %cst_66 {dimension_numbers = #tpu.dot_dimension_numbers<[2], [2], [1], [1], [0, 0, 0, 1, 1, 1], [0], [0]>} : vector<4x8x8xbf16>, vector<4x8x8xbf16>, vector<4x8x8xf32> -> vector<4x8x8xf32>
    %cst_67 = arith.constant 0.353553385 : f32
    %275 = vector.broadcast %cst_67 : f32 to vector<4x8x8xf32>
    %276 = arith.mulf %274, %275 : vector<4x8x8xf32>
    %cst_68 = arith.constant dense<0xFF800000> : vector<4x8xf32>
    %277 = vector.multi_reduction <maximumf>, %276, %cst_68 [2] : vector<4x8x8xf32> to vector<4x8xf32>
    %278 = vector.shape_cast %277 : vector<4x8xf32> to vector<4x8x1xf32>
    %279 = vector.broadcast %278 : vector<4x8x1xf32> to vector<4x8x8xf32>
    %280 = arith.subf %276, %279 : vector<4x8x8xf32>
    %281 = math.exp %280 : vector<4x8x8xf32>
    %cst_69 = arith.constant dense<0.000000e+00> : vector<4x8xf32>
    %282 = vector.multi_reduction <add>, %281, %cst_69 [2] : vector<4x8x8xf32> to vector<4x8xf32>
    %283 = vector.shape_cast %282 : vector<4x8xf32> to vector<4x8x1xf32>
    %284 = vector.broadcast %283 : vector<4x8x1xf32> to vector<4x8x8xf32>
    %285 = arith.divf %281, %284 : vector<4x8x8xf32>
    %286 = arith.truncf %285 : vector<4x8x8xf32> to vector<4x8x8xbf16>
    %cst_70 = arith.constant dense<0.000000e+00> : vector<4x8x8xf32>
    %287 = tpu.matmul %286, %273, %cst_70 {dimension_numbers = #tpu.dot_dimension_numbers<[2], [1], [1], [2], [0, 0, 0, 1, 1, 2], [0], [0]>} : vector<4x8x8xbf16>, vector<4x8x8xbf16>, vector<4x8x8xf32> -> vector<4x8x8xf32>
    %288 = vector.extract_strided_slice %287 {offsets = [0, 0, 0], sizes = [1, 8, 8], strides = [1, 1, 1]} : vector<4x8x8xf32> to vector<1x8x8xf32>
    %289 = vector.extract_strided_slice %287 {offsets = [1, 0, 0], sizes = [1, 8, 8], strides = [1, 1, 1]} : vector<4x8x8xf32> to vector<1x8x8xf32>
    %290 = vector.extract_strided_slice %287 {offsets = [2, 0, 0], sizes = [1, 8, 8], strides = [1, 1, 1]} : vector<4x8x8xf32> to vector<1x8x8xf32>
    %291 = vector.extract_strided_slice %287 {offsets = [3, 0, 0], sizes = [1, 8, 8], strides = [1, 1, 1]} : vector<4x8x8xf32> to vector<1x8x8xf32>
    %292 = tpu.concatenate %288, %289, %290, %291 in 2 : vector<1x8x8xf32>, vector<1x8x8xf32>, vector<1x8x8xf32>, vector<1x8x8xf32> -> vector<1x8x32xf32>
    %293 = vector.shape_cast %292 : vector<1x8x32xf32> to vector<8x32xf32>
    %c0_71 = arith.constant 0 : index
    %c0_72 = arith.constant 0 : index
    %294 = vector.load %arg16[%c0_71, %c0_72] : memref<32x32xbf16, #tpu.memory_space<vmem>>, vector<32x32xbf16>
    %295 = arith.truncf %293 : vector<8x32xf32> to vector<8x32xbf16>
    %cst_73 = arith.constant dense<0.000000e+00> : vector<8x32xf32>
    %296 = tpu.matmul %295, %294, %cst_73 {dimension_numbers = #tpu.dot_dimension_numbers<[1], [0], [0], [1], [0, 0, 1, 1], [], []>} : vector<8x32xbf16>, vector<32x32xbf16>, vector<8x32xf32> -> vector<8x32xf32>
    %c0_74 = arith.constant 0 : index
    %c0_75 = arith.constant 0 : index
    %297 = vector.load %arg17[%c0_74, %c0_75] : memref<1x32xf32, #tpu.memory_space<vmem>>, vector<1x32xf32>
    %298 = vector.broadcast %297 : vector<1x32xf32> to vector<8x32xf32>
    %299 = arith.addf %296, %298 : vector<8x32xf32>
    %300 = arith.addf %299, %239 : vector<8x32xf32>
    %c0_76 = arith.constant 0 : index
    %c0_77 = arith.constant 0 : index
    %301 = vector.load %arg20[%c0_76, %c0_77] : memref<1x32xf32, #tpu.memory_space<vmem>>, vector<1x32xf32>
    %c0_78 = arith.constant 0 : index
    %c0_79 = arith.constant 0 : index
    %302 = vector.load %arg21[%c0_78, %c0_79] : memref<1x32xf32, #tpu.memory_space<vmem>>, vector<1x32xf32>
    %cst_80 = arith.constant dense<0.000000e+00> : vector<8xf32>
    %303 = vector.multi_reduction <add>, %300, %cst_80 [1] : vector<8x32xf32> to vector<8xf32>
    %304 = vector.shape_cast %303 : vector<8xf32> to vector<8x1xf32>
    %cst_81 = arith.constant 3.200000e+01 : f32
    %305 = vector.broadcast %cst_81 : f32 to vector<8x1xf32>
    %306 = arith.divf %304, %305 : vector<8x1xf32>
    %307 = vector.broadcast %306 : vector<8x1xf32> to vector<8x32xf32>
    %308 = arith.subf %300, %307 : vector<8x32xf32>
    %309 = arith.mulf %308, %308 : vector<8x32xf32>
    %cst_82 = arith.constant dense<0.000000e+00> : vector<8xf32>
    %310 = vector.multi_reduction <add>, %309, %cst_82 [1] : vector<8x32xf32> to vector<8xf32>
    %311 = vector.shape_cast %310 : vector<8xf32> to vector<8x1xf32>
    %cst_83 = arith.constant 3.200000e+01 : f32
    %312 = vector.broadcast %cst_83 : f32 to vector<8x1xf32>
    %313 = arith.divf %311, %312 : vector<8x1xf32>
    %314 = vector.broadcast %306 : vector<8x1xf32> to vector<8x32xf32>
    %315 = arith.subf %300, %314 : vector<8x32xf32>
    %cst_84 = arith.constant 9.99999974E-6 : f32
    %316 = vector.broadcast %cst_84 : f32 to vector<8x1xf32>
    %317 = arith.addf %313, %316 : vector<8x1xf32>
    %318 = math.rsqrt %317 : vector<8x1xf32>
    %319 = vector.broadcast %318 : vector<8x1xf32> to vector<8x32xf32>
    %320 = arith.mulf %315, %319 : vector<8x32xf32>
    %321 = vector.broadcast %301 : vector<1x32xf32> to vector<8x32xf32>
    %322 = arith.mulf %320, %321 : vector<8x32xf32>
    %323 = vector.broadcast %302 : vector<1x32xf32> to vector<8x32xf32>
    %324 = arith.addf %322, %323 : vector<8x32xf32>
    %c0_85 = arith.constant 0 : index
    %c0_86 = arith.constant 0 : index
    %325 = vector.load %arg24[%c0_85, %c0_86] : memref<32x128xbf16, #tpu.memory_space<vmem>>, vector<32x128xbf16>
    %326 = arith.truncf %324 : vector<8x32xf32> to vector<8x32xbf16>
    %cst_87 = arith.constant dense<0.000000e+00> : vector<8x128xf32>
    %327 = tpu.matmul %326, %325, %cst_87 {dimension_numbers = #tpu.dot_dimension_numbers<[1], [0], [0], [1], [0, 0, 1, 1], [], []>} : vector<8x32xbf16>, vector<32x128xbf16>, vector<8x128xf32> -> vector<8x128xf32>
    %c0_88 = arith.constant 0 : index
    %c0_89 = arith.constant 0 : index
    %328 = vector.load %arg25[%c0_88, %c0_89] : memref<1x128xf32, #tpu.memory_space<vmem>>, vector<1x128xf32>
    %329 = vector.broadcast %328 : vector<1x128xf32> to vector<8x128xf32>
    %330 = arith.addf %327, %329 : vector<8x128xf32>
    %cst_90 = arith.constant 5.000000e-01 : f32
    %331 = vector.broadcast %cst_90 : f32 to vector<8x128xf32>
    %332 = arith.mulf %331, %330 : vector<8x128xf32>
    %cst_91 = arith.constant 4.471500e-02 : f32
    %333 = vector.broadcast %cst_91 : f32 to vector<8x128xf32>
    %334 = arith.mulf %333, %330 : vector<8x128xf32>
    %335 = arith.mulf %334, %330 : vector<8x128xf32>
    %336 = arith.mulf %335, %330 : vector<8x128xf32>
    %337 = arith.addf %330, %336 : vector<8x128xf32>
    %cst_92 = arith.constant 0.797884583 : f32
    %338 = vector.broadcast %cst_92 : f32 to vector<8x128xf32>
    %339 = arith.mulf %338, %337 : vector<8x128xf32>
    %340 = math.tanh %339 : vector<8x128xf32>
    %cst_93 = arith.constant 1.000000e+00 : f32
    %341 = vector.broadcast %cst_93 : f32 to vector<8x128xf32>
    %342 = arith.addf %341, %340 : vector<8x128xf32>
    %343 = arith.mulf %332, %342 : vector<8x128xf32>
    %c0_94 = arith.constant 0 : index
    %c0_95 = arith.constant 0 : index
    %344 = vector.load %arg26[%c0_94, %c0_95] : memref<128x32xbf16, #tpu.memory_space<vmem>>, vector<128x32xbf16>
    %345 = arith.truncf %343 : vector<8x128xf32> to vector<8x128xbf16>
    %cst_96 = arith.constant dense<0.000000e+00> : vector<8x32xf32>
    %346 = tpu.matmul %345, %344, %cst_96 {dimension_numbers = #tpu.dot_dimension_numbers<[1], [0], [0], [1], [0, 0, 1, 1], [], []>} : vector<8x128xbf16>, vector<128x32xbf16>, vector<8x32xf32> -> vector<8x32xf32>
    %c0_97 = arith.constant 0 : index
    %c0_98 = arith.constant 0 : index
    %347 = vector.load %arg27[%c0_97, %c0_98] : memref<1x32xf32, #tpu.memory_space<vmem>>, vector<1x32xf32>
    %348 = vector.broadcast %347 : vector<1x32xf32> to vector<8x32xf32>
    %349 = arith.addf %346, %348 : vector<8x32xf32>
    %350 = arith.addf %349, %324 : vector<8x32xf32>
    %c0_99 = arith.constant 0 : index
    %c0_100 = arith.constant 0 : index
    %351 = vector.load %arg22[%c0_99, %c0_100] : memref<1x32xf32, #tpu.memory_space<vmem>>, vector<1x32xf32>
    %c0_101 = arith.constant 0 : index
    %c0_102 = arith.constant 0 : index
    %352 = vector.load %arg23[%c0_101, %c0_102] : memref<1x32xf32, #tpu.memory_space<vmem>>, vector<1x32xf32>
    %cst_103 = arith.constant dense<0.000000e+00> : vector<8xf32>
    %353 = vector.multi_reduction <add>, %350, %cst_103 [1] : vector<8x32xf32> to vector<8xf32>
    %354 = vector.shape_cast %353 : vector<8xf32> to vector<8x1xf32>
    %cst_104 = arith.constant 3.200000e+01 : f32
    %355 = vector.broadcast %cst_104 : f32 to vector<8x1xf32>
    %356 = arith.divf %354, %355 : vector<8x1xf32>
    %357 = vector.broadcast %356 : vector<8x1xf32> to vector<8x32xf32>
    %358 = arith.subf %350, %357 : vector<8x32xf32>
    %359 = arith.mulf %358, %358 : vector<8x32xf32>
    %cst_105 = arith.constant dense<0.000000e+00> : vector<8xf32>
    %360 = vector.multi_reduction <add>, %359, %cst_105 [1] : vector<8x32xf32> to vector<8xf32>
    %361 = vector.shape_cast %360 : vector<8xf32> to vector<8x1xf32>
    %cst_106 = arith.constant 3.200000e+01 : f32
    %362 = vector.broadcast %cst_106 : f32 to vector<8x1xf32>
    %363 = arith.divf %361, %362 : vector<8x1xf32>
    %364 = vector.broadcast %356 : vector<8x1xf32> to vector<8x32xf32>
    %365 = arith.subf %350, %364 : vector<8x32xf32>
    %cst_107 = arith.constant 9.99999974E-6 : f32
    %366 = vector.broadcast %cst_107 : f32 to vector<8x1xf32>
    %367 = arith.addf %363, %366 : vector<8x1xf32>
    %368 = math.rsqrt %367 : vector<8x1xf32>
    %369 = vector.broadcast %368 : vector<8x1xf32> to vector<8x32xf32>
    %370 = arith.mulf %365, %369 : vector<8x32xf32>
    %371 = vector.broadcast %351 : vector<1x32xf32> to vector<8x32xf32>
    %372 = arith.mulf %370, %371 : vector<8x32xf32>
    %373 = vector.broadcast %352 : vector<1x32xf32> to vector<8x32xf32>
    %374 = arith.addf %372, %373 : vector<8x32xf32>
    %375 = vector.shape_cast %374 : vector<8x32xf32> to vector<1x8x32xf32>
    %c0_108 = arith.constant 0 : index
    %c0_109 = arith.constant 0 : index
    %c0_110 = arith.constant 0 : index
    %376 = vector.load %arg28[%c0_108, %c0_109, %c0_110] : memref<1x8x32xf32, #tpu.memory_space<vmem>>, vector<1x8x32xf32>
    tpu.vector_store %arg28[%c0_108, %c0_109, %c0_110], %375 {strides = array<i32>} : memref<1x8x32xf32, #tpu.memory_space<vmem>>, vector<1x8x32xf32>,
    return
  }
  func.func @transform_0(%arg0: i32) -> (i32, i32, i32) {
    %c0_i32 = arith.constant 0 : i32
    %c0_i32_0 = arith.constant 0 : i32
    %c0_i32_1 = arith.constant 0 : i32
    return %arg0, %c0_i32, %c0_i32_0 : i32, i32, i32
  }
  func.func @transform_1(%arg0: i32) -> (i32, i32) {
    %c0_i32 = arith.constant 0 : i32
    %c0_i32_0 = arith.constant 0 : i32
    %c0_i32_1 = arith.constant 0 : i32
    return %c0_i32, %c0_i32_0 : i32, i32
  }
  func.func @transform_2(%arg0: i32) -> (i32, i32) {
    %c0_i32 = arith.constant 0 : i32
    %c0_i32_0 = arith.constant 0 : i32
    %c0_i32_1 = arith.constant 0 : i32
    return %c0_i32, %c0_i32_0 : i32, i32
  }
  func.func @transform_3(%arg0: i32) -> (i32, i32) {
    %c0_i32 = arith.constant 0 : i32
    %c0_i32_0 = arith.constant 0 : i32
    %c0_i32_1 = arith.constant 0 : i32
    return %c0_i32, %c0_i32_0 : i32, i32
  }
  func.func @transform_4(%arg0: i32) -> (i32, i32) {
    %c0_i32 = arith.constant 0 : i32
    %c0_i32_0 = arith.constant 0 : i32
    %c0_i32_1 = arith.constant 0 : i32
    return %c0_i32, %c0_i32_0 : i32, i32
  }
  func.func @transform_5(%arg0: i32) -> (i32, i32) {
    %c0_i32 = arith.constant 0 : i32
    %c0_i32_0 = arith.constant 0 : i32
    %c0_i32_1 = arith.constant 0 : i32
    return %c0_i32, %c0_i32_0 : i32, i32
  }
  func.func @transform_6(%arg0: i32) -> (i32, i32) {
    %c0_i32 = arith.constant 0 : i32
    %c0_i32_0 = arith.constant 0 : i32
    %c0_i32_1 = arith.constant 0 : i32
    return %c0_i32, %c0_i32_0 : i32, i32
  }
  func.func @transform_7(%arg0: i32) -> (i32, i32) {
    %c0_i32 = arith.constant 0 : i32
    %c0_i32_0 = arith.constant 0 : i32
    %c0_i32_1 = arith.constant 0 : i32
    return %c0_i32, %c0_i32_0 : i32, i32
  }
  func.func @transform_8(%arg0: i32) -> (i32, i32) {
    %c0_i32 = arith.constant 0 : i32
    %c0_i32_0 = arith.constant 0 : i32
    %c0_i32_1 = arith.constant 0 : i32
    return %c0_i32, %c0_i32_0 : i32, i32
  }
  func.func @transform_9(%arg0: i32) -> (i32, i32) {
    %c0_i32 = arith.constant 0 : i32
    %c0_i32_0 = arith.constant 0 : i32
    %c0_i32_1 = arith.constant 0 : i32
    return %c0_i32, %c0_i32_0 : i32, i32
  }
  func.func @transform_10(%arg0: i32) -> (i32, i32) {
    %c0_i32 = arith.constant 0 : i32
    %c0_i32_0 = arith.constant 0 : i32
    %c0_i32_1 = arith.constant 0 : i32
    return %c0_i32, %c0_i32_0 : i32, i32
  }
  func.func @transform_11(%arg0: i32) -> (i32, i32) {
    %c0_i32 = arith.constant 0 : i32
    %c0_i32_0 = arith.constant 0 : i32
    %c0_i32_1 = arith.constant 0 : i32
    return %c0_i32, %c0_i32_0 : i32, i32
  }
  func.func @transform_12(%arg0: i32) -> (i32, i32) {
    %c0_i32 = arith.constant 0 : i32
    %c0_i32_0 = arith.constant 0 : i32
    %c0_i32_1 = arith.constant 0 : i32
    return %c0_i32, %c0_i32_0 : i32, i32
  }
  func.func @transform_13(%arg0: i32) -> (i32, i32) {
    %c0_i32 = arith.constant 0 : i32
    %c0_i32_0 = arith.constant 0 : i32
    %c0_i32_1 = arith.constant 0 : i32
    return %c0_i32, %c0_i32_0 : i32, i32
  }
  func.func @transform_14(%arg0: i32) -> (i32, i32) {
    %c0_i32 = arith.constant 0 : i32
    %c0_i32_0 = arith.constant 0 : i32
    %c0_i32_1 = arith.constant 0 : i32
    return %c0_i32, %c0_i32_0 : i32, i32
  }
  func.func @transform_15(%arg0: i32) -> (i32, i32) {
    %c0_i32 = arith.constant 0 : i32
    %c0_i32_0 = arith.constant 0 : i32
    %c0_i32_1 = arith.constant 0 : i32
    return %c0_i32, %c0_i32_0 : i32, i32
  }
  func.func @transform_16(%arg0: i32) -> (i32, i32) {
    %c0_i32 = arith.constant 0 : i32
    %c0_i32_0 = arith.constant 0 : i32
    %c0_i32_1 = arith.constant 0 : i32
    return %c0_i32, %c0_i32_0 : i32, i32
  }
  func.func @transform_17(%arg0: i32) -> (i32, i32) {
    %c0_i32 = arith.constant 0 : i32
    %c0_i32_0 = arith.constant 0 : i32
    %c0_i32_1 = arith.constant 0 : i32
    return %c0_i32, %c0_i32_0 : i32, i32
  }
  func.func @transform_18(%arg0: i32) -> (i32, i32) {
    %c0_i32 = arith.constant 0 : i32
    %c0_i32_0 = arith.constant 0 : i32
    %c0_i32_1 = arith.constant 0 : i32
    return %c0_i32, %c0_i32_0 : i32, i32
  }
  func.func @transform_19(%arg0: i32) -> (i32, i32) {
    %c0_i32 = arith.constant 0 : i32
    %c0_i32_0 = arith.constant 0 : i32
    %c0_i32_1 = arith.constant 0 : i32
    return %c0_i32, %c0_i32_0 : i32, i32
  }
  func.func @transform_20(%arg0: i32) -> (i32, i32) {
    %c0_i32 = arith.constant 0 : i32
    %c0_i32_0 = arith.constant 0 : i32
    %c0_i32_1 = arith.constant 0 : i32
    return %c0_i32, %c0_i32_0 : i32, i32
  }
  func.func @transform_21(%arg0: i32) -> (i32, i32) {
    %c0_i32 = arith.constant 0 : i32
    %c0_i32_0 = arith.constant 0 : i32
    %c0_i32_1 = arith.constant 0 : i32
    return %c0_i32, %c0_i32_0 : i32, i32
  }
  func.func @transform_22(%arg0: i32) -> (i32, i32) {
    %c0_i32 = arith.constant 0 : i32
    %c0_i32_0 = arith.constant 0 : i32
    %c0_i32_1 = arith.constant 0 : i32
    return %c0_i32, %c0_i32_0 : i32, i32
  }
  func.func @transform_23(%arg0: i32) -> (i32, i32) {
    %c0_i32 = arith.constant 0 : i32
    %c0_i32_0 = arith.constant 0 : i32
    %c0_i32_1 = arith.constant 0 : i32
    return %c0_i32, %c0_i32_0 : i32, i32
  }
  func.func @transform_24(%arg0: i32) -> (i32, i32) {
    %c0_i32 = arith.constant 0 : i32
    %c0_i32_0 = arith.constant 0 : i32
    %c0_i32_1 = arith.constant 0 : i32
    return %c0_i32, %c0_i32_0 : i32, i32
  }
  func.func @transform_25(%arg0: i32) -> (i32, i32) {
    %c0_i32 = arith.constant 0 : i32
    %c0_i32_0 = arith.constant 0 : i32
    %c0_i32_1 = arith.constant 0 : i32
    return %c0_i32, %c0_i32_0 : i32, i32
  }
  func.func @transform_26(%arg0: i32) -> (i32, i32) {
    %c0_i32 = arith.constant 0 : i32
    %c0_i32_0 = arith.constant 0 : i32
    %c0_i32_1 = arith.constant 0 : i32
    return %c0_i32, %c0_i32_0 : i32, i32
  }
  func.func @transform_27(%arg0: i32) -> (i32, i32, i32) {
    %c0_i32 = arith.constant 0 : i32
    %c0_i32_0 = arith.constant 0 : i32
    %c0_i32_1 = arith.constant 0 : i32
    return %arg0, %c0_i32, %c0_i32_0 : i32, i32, i32
  }
}

</mosaic_0001>

<llo_original>
// kernel: tpu_custom_call.1
$region0: #{tpu_custom_call.1}
  #allocation0 [shape = 'u32[]', space=smem, size = 0x4, offset = 0x4, fixed_abs, tag = 'smem constant byte address 0x4 - core index']
  #allocation1 [shape = 'u32[144,128]{1,0:T(1,128)}', space=vmem, size = 0x12000, scoped, tag = 'internal scratch']
  %s0 = inlined_call_operand.vmem [shape: bf16[2,8,32], index: 0, kind: input, shape index: {}]
  %s1 = inlined_call_operand.vmem [shape: bf16[32,64], index: 1, kind: input, shape index: {}]
  %s2 = inlined_call_operand.vmem [shape: bf16[32,64], index: 2, kind: input, shape index: {}]
  %s3 = inlined_call_operand.vmem [shape: f32[4,64], index: 3, kind: input, shape index: {}]
  %s4 = inlined_call_operand.vmem [shape: f32[1,64], index: 4, kind: input, shape index: {}]
  %s5 = inlined_call_operand.vmem [shape: bf16[64,2], index: 5, kind: input, shape index: {}]
  %s6 = inlined_call_operand.vmem [shape: bf16[64,16], index: 6, kind: input, shape index: {}]
  %s7 = inlined_call_operand.vmem [shape: bf16[64,16], index: 7, kind: input, shape index: {}]
  %s8 = inlined_call_operand.vmem [shape: bf16[2,64], index: 8, kind: input, shape index: {}]
  %s9 = inlined_call_operand.vmem [shape: f32[1,64], index: 9, kind: input, shape index: {}]
  %s10 = inlined_call_operand.vmem [shape: f32[16,64], index: 10, kind: input, shape index: {}]
  %s11 = inlined_call_operand.vmem [shape: f32[1,64], index: 11, kind: input, shape index: {}]
  %s12 = inlined_call_operand.vmem [shape: bf16[64,32], index: 12, kind: input, shape index: {}]
  %s13 = inlined_call_operand.vmem [shape: bf16[32,96], index: 13, kind: input, shape index: {}]
  %s14 = inlined_call_operand.vmem [shape: f32[1,96], index: 14, kind: input, shape index: {}]
  %s15 = inlined_call_operand.vmem [shape: bf16[32,32], index: 15, kind: input, shape index: {}]
  %s16 = inlined_call_operand.vmem [shape: f32[1,32], index: 16, kind: input, shape index: {}]
  %s17 = inlined_call_operand.vmem [shape: f32[1,32], index: 17, kind: input, shape index: {}]
  %s18 = inlined_call_operand.vmem [shape: f32[1,32], index: 18, kind: input, shape index: {}]
  %s19 = inlined_call_operand.vmem [shape: f32[1,32], index: 19, kind: input, shape index: {}]
  %s20 = inlined_call_operand.vmem [shape: f32[1,32], index: 20, kind: input, shape index: {}]
  %s21 = inlined_call_operand.vmem [shape: f32[1,32], index: 21, kind: input, shape index: {}]
  %s22 = inlined_call_operand.vmem [shape: f32[1,32], index: 22, kind: input, shape index: {}]
  %s23 = inlined_call_operand.vmem [shape: bf16[32,128], index: 23, kind: input, shape index: {}]
  %s24 = inlined_call_operand.vmem [shape: f32[1,128], index: 24, kind: input, shape index: {}]
  %s25 = inlined_call_operand.vmem [shape: bf16[128,32], index: 25, kind: input, shape index: {}]
  %s26 = inlined_call_operand.vmem [shape: f32[1,32], index: 26, kind: input, shape index: {}]
  %s27 = inlined_call_operand.hbm [shape: f32[2,8,32], index: 27, kind: output, shape index: {}]
  %s28 = sld [smem:[#allocation0]]
  $region141: #{tpu_custom_call.1} parent=0
    _
  %s30 = ssub.s32 1, %s28
  %s31 = scalar_select 0, %s30, %s28
  $region1: #{tpu_custom_call.1} parent=0
    #allocation2 [shape = 'u8[8192]{0}', space=vmem, size = 0x2000, scoped, tag = 'output window, operand 0']
    #allocation3 [shape = 's32[2]{0}', space=sflag, size = 0x8, scoped, tag = 'scoped memory for tpu_custom_call.1']
    %32 = vsyncpa [#allocation3], 0
    %s33 = scalar_lea.sflag [#allocation3], 1
    %34 = vsyncpa %s33, 0
    loop: start=0, step=1, limit=4
    $region2: #{tpu_custom_call.1} parent=1 // loop_pre_header
      _
    $region3: #{tpu_custom_call.1} parent=1 // loop_header
      %s36 = sphi 0, %s40
      %p37 = scmp.ge.s32.totalorder %s36, 4
      %s46 = sphi 0, %s48
      %s49 = sphi 0, %s46
      %s50 = sphi 0, %s49
      %s66 = sphi 0, %s50
      %s70 = sphi 0, %s70
      %s72 = sphi 0, %s70
      %s73 = sphi 0, %s72
      %s87 = sphi 0, %s73
      %s91 = sphi 0, %s91
      %s93 = sphi 0, %s91
      %s94 = sphi 0, %s93
      %s108 = sphi 0, %s94
      %s112 = sphi 0, %s112
      %s114 = sphi 0, %s112
      %s115 = sphi 0, %s114
      %s129 = sphi 0, %s115
      %s133 = sphi 0, %s133
      %s135 = sphi 0, %s133
      %s136 = sphi 0, %s135
      %s150 = sphi 0, %s136
      %s154 = sphi 0, %s154
      %s156 = sphi 0, %s154
      %s157 = sphi 0, %s156
      %s171 = sphi 0, %s157
      %s175 = sphi 0, %s175
      %s177 = sphi 0, %s175
      %s178 = sphi 0, %s177
      %s192 = sphi 0, %s178
      %s196 = sphi 0, %s196
      %s198 = sphi 0, %s196
      %s199 = sphi 0, %s198
      %s213 = sphi 0, %s199
      %s217 = sphi 0, %s217
      %s219 = sphi 0, %s217
      %s220 = sphi 0, %s219
      %s234 = sphi 0, %s220
      %s238 = sphi 0, %s238
      %s240 = sphi 0, %s238
      %s241 = sphi 0, %s240
      %s255 = sphi 0, %s241
      %s259 = sphi 0, %s259
      %s261 = sphi 0, %s259
      %s262 = sphi 0, %s261
      %s276 = sphi 0, %s262
      %s280 = sphi 0, %s280
      %s282 = sphi 0, %s280
      %s283 = sphi 0, %s282
      %s297 = sphi 0, %s283
      %s301 = sphi 0, %s301
      %s303 = sphi 0, %s301
      %s304 = sphi 0, %s303
      %s318 = sphi 0, %s304
      %s322 = sphi 0, %s322
      %s324 = sphi 0, %s322
      %s325 = sphi 0, %s324
      %s339 = sphi 0, %s325
      %s343 = sphi 0, %s343
      %s345 = sphi 0, %s343
      %s346 = sphi 0, %s345
      %s360 = sphi 0, %s346
      %s364 = sphi 0, %s364
      %s366 = sphi 0, %s364
      %s367 = sphi 0, %s366
      %s381 = sphi 0, %s367
      %s385 = sphi 0, %s385
      %s387 = sphi 0, %s385
      %s388 = sphi 0, %s387
      %s402 = sphi 0, %s388
      %s406 = sphi 0, %s406
      %s408 = sphi 0, %s406
      %s409 = sphi 0, %s408
      %s423 = sphi 0, %s409
      %s427 = sphi 0, %s427
      %s429 = sphi 0, %s427
      %s430 = sphi 0, %s429
      %s444 = sphi 0, %s430
      %s448 = sphi 0, %s448
      %s450 = sphi 0, %s448
      %s451 = sphi 0, %s450
      %s465 = sphi 0, %s451
      %s469 = sphi 0, %s469
      %s471 = sphi 0, %s469
      %s472 = sphi 0, %s471
      %s486 = sphi 0, %s472
      %s490 = sphi 0, %s490
      %s492 = sphi 0, %s490
      %s493 = sphi 0, %s492
      %s507 = sphi 0, %s493
      %s511 = sphi 0, %s511
      %s513 = sphi 0, %s511
      %s514 = sphi 0, %s513
      %s528 = sphi 0, %s514
      %s532 = sphi 0, %s532
      %s534 = sphi 0, %s532
      %s535 = sphi 0, %s534
      %s549 = sphi 0, %s535
      %s553 = sphi 0, %s553
      %s555 = sphi 0, %s553
      %s556 = sphi 0, %s555
      %s570 = sphi 0, %s556
      %s574 = sphi 0, %s574
      %s576 = sphi 0, %s574
      %s577 = sphi 0, %s576
      %s591 = sphi 0, %s577
      %s595 = sphi 0, %s595
      %s597 = sphi 0, %s595
      %s598 = sphi 0, %s597
      %s612 = sphi 0, %s598
      %s618 = sphi 0, %s620
      %s621 = sphi 0, %s618
      %s622 = sphi 0, %s621
      %s638 = sphi 0, %s622
    $region4: #{tpu_custom_call.1} parent=1 // loop_header_branch
      %39 = sbr.rel (%p37) target = $region8
    $region5: #{tpu_custom_call.1} parent=1 // loop_body
      %s41 = ssub.s32 %s36, 1
      %s42 = ssub.s32 %s36, 2
      %s43 = sadd.s32 %s36, 1
      %s44 = ssub.s32 %s36, %s43
      %p45 = scmp.eq.s32.totalorder %s44, 0
      %s47 = sadd.s32 %s46, 1
      %s48 = scalar_select %p45, %s46, %s47
      %p51 = pneg %p45
      %p52 = scmp.eq.s32.totalorder %s36, 1
      %p53 = por %p51, %p52
      %p54 = scmp.ne.s32.totalorder %s46, %s49
      %p55 = scmp.eq.s32.totalorder %s36, 0
      %p56 = por %p54, %p55
      %p57 = scmp.ne.s32.totalorder %s46, %s49
      %p58 = scmp.eq.s32.totalorder %s41, 1
      %p59 = por %p57, %p58
      %p60 = scmp.ne.s32.totalorder %s49, %s50
      %p61 = scmp.eq.s32.totalorder %s41, 0
      %p62 = por %p60, %p61
      %p63 = scmp.ne.s32.totalorder %s49, %s50
      %p64 = scmp.eq.s32.totalorder %s42, 1
      %p65 = por %p63, %p64
      %p67 = scmp.ne.s32.totalorder %s50, %s66
      %p68 = scmp.eq.s32.totalorder %s42, 0
      %p69 = por %p67, %p68
      %s71 = sadd.s32 %s70, 1
      %p74 = scmp.eq.s32.totalorder %s36, 1
      %p75 = scmp.ne.s32.totalorder %s70, %s72
      %p76 = scmp.eq.s32.totalorder %s36, 0
      %p77 = por %p75, %p76
      %p78 = scmp.ne.s32.totalorder %s70, %s72
      %p79 = scmp.eq.s32.totalorder %s41, 1
      %p80 = por %p78, %p79
      %p81 = scmp.ne.s32.totalorder %s72, %s73
      %p82 = scmp.eq.s32.totalorder %s41, 0
      %p83 = por %p81, %p82
      %p84 = scmp.ne.s32.totalorder %s72, %s73
      %p85 = scmp.eq.s32.totalorder %s42, 1
      %p86 = por %p84, %p85
      %p88 = scmp.ne.s32.totalorder %s73, %s87
      %p89 = scmp.eq.s32.totalorder %s42, 0
      %p90 = por %p88, %p89
      %s92 = sadd.s32 %s91, 1
      %p95 = scmp.eq.s32.totalorder %s36, 1
      %p96 = scmp.ne.s32.totalorder %s91, %s93
      %p97 = scmp.eq.s32.totalorder %s36, 0
      %p98 = por %p96, %p97
      %p99 = scmp.ne.s32.totalorder %s91, %s93
      %p100 = scmp.eq.s32.totalorder %s41, 1
      %p101 = por %p99, %p100
      %p102 = scmp.ne.s32.totalorder %s93, %s94
      %p103 = scmp.eq.s32.totalorder %s41, 0
      %p104 = por %p102, %p103
      %p105 = scmp.ne.s32.totalorder %s93, %s94
      %p106 = scmp.eq.s32.totalorder %s42, 1
      %p107 = por %p105, %p106
      %p109 = scmp.ne.s32.totalorder %s94, %s108
      %p110 = scmp.eq.s32.totalorder %s42, 0
      %p111 = por %p109, %p110
      %s113 = sadd.s32 %s112, 1
      %p116 = scmp.eq.s32.totalorder %s36, 1
      %p117 = scmp.ne.s32.totalorder %s112, %s114
      %p118 = scmp.eq.s32.totalorder %s36, 0
      %p119 = por %p117, %p118
      %p120 = scmp.ne.s32.totalorder %s112, %s114
      %p121 = scmp.eq.s32.totalorder %s41, 1
      %p122 = por %p120, %p121
      %p123 = scmp.ne.s32.totalorder %s114, %s115
      %p124 = scmp.eq.s32.totalorder %s41, 0
      %p125 = por %p123, %p124
      %p126 = scmp.ne.s32.totalorder %s114, %s115
      %p127 = scmp.eq.s32.totalorder %s42, 1
      %p128 = por %p126, %p127
      %p130 = scmp.ne.s32.totalorder %s115, %s129
      %p131 = scmp.eq.s32.totalorder %s42, 0
      %p132 = por %p130, %p131
      %s134 = sadd.s32 %s133, 1
      %p137 = scmp.eq.s32.totalorder %s36, 1
      %p138 = scmp.ne.s32.totalorder %s133, %s135
      %p139 = scmp.eq.s32.totalorder %s36, 0
      %p140 = por %p138, %p139
      %p141 = scmp.ne.s32.totalorder %s133, %s135
      %p142 = scmp.eq.s32.totalorder %s41, 1
      %p143 = por %p141, %p142
      %p144 = scmp.ne.s32.totalorder %s135, %s136
      %p145 = scmp.eq.s32.totalorder %s41, 0
      %p146 = por %p144, %p145
      %p147 = scmp.ne.s32.totalorder %s135, %s136
      %p148 = scmp.eq.s32.totalorder %s42, 1
      %p149 = por %p147, %p148
      %p151 = scmp.ne.s32.totalorder %s136, %s150
      %p152 = scmp.eq.s32.totalorder %s42, 0
      %p153 = por %p151, %p152
      %s155 = sadd.s32 %s154, 1
      %p158 = scmp.eq.s32.totalorder %s36, 1
      %p159 = scmp.ne.s32.totalorder %s154, %s156
      %p160 = scmp.eq.s32.totalorder %s36, 0
      %p161 = por %p159, %p160
      %p162 = scmp.ne.s32.totalorder %s154, %s156
      %p163 = scmp.eq.s32.totalorder %s41, 1
      %p164 = por %p162, %p163
      %p165 = scmp.ne.s32.totalorder %s156, %s157
      %p166 = scmp.eq.s32.totalorder %s41, 0
      %p167 = por %p165, %p166
      %p168 = scmp.ne.s32.totalorder %s156, %s157
      %p169 = scmp.eq.s32.totalorder %s42, 1
      %p170 = por %p168, %p169
      %p172 = scmp.ne.s32.totalorder %s157, %s171
      %p173 = scmp.eq.s32.totalorder %s42, 0
      %p174 = por %p172, %p173
      %s176 = sadd.s32 %s175, 1
      %p179 = scmp.eq.s32.totalorder %s36, 1
      %p180 = scmp.ne.s32.totalorder %s175, %s177
      %p181 = scmp.eq.s32.totalorder %s36, 0
      %p182 = por %p180, %p181
      %p183 = scmp.ne.s32.totalorder %s175, %s177
      %p184 = scmp.eq.s32.totalorder %s41, 1
      %p185 = por %p183, %p184
      %p186 = scmp.ne.s32.totalorder %s177, %s178
      %p187 = scmp.eq.s32.totalorder %s41, 0
      %p188 = por %p186, %p187
      %p189 = scmp.ne.s32.totalorder %s177, %s178
      %p190 = scmp.eq.s32.totalorder %s42, 1
      %p191 = por %p189, %p190
      %p193 = scmp.ne.s32.totalorder %s178, %s192
      %p194 = scmp.eq.s32.totalorder %s42, 0
      %p195 = por %p193, %p194
      %s197 = sadd.s32 %s196, 1
      %p200 = scmp.eq.s32.totalorder %s36, 1
      %p201 = scmp.ne.s32.totalorder %s196, %s198
      %p202 = scmp.eq.s32.totalorder %s36, 0
      %p203 = por %p201, %p202
      %p204 = scmp.ne.s32.totalorder %s196, %s198
      %p205 = scmp.eq.s32.totalorder %s41, 1
      %p206 = por %p204, %p205
      %p207 = scmp.ne.s32.totalorder %s198, %s199
      %p208 = scmp.eq.s32.totalorder %s41, 0
      %p209 = por %p207, %p208
      %p210 = scmp.ne.s32.totalorder %s198, %s199
      %p211 = scmp.eq.s32.totalorder %s42, 1
      %p212 = por %p210, %p211
      %p214 = scmp.ne.s32.totalorder %s199, %s213
      %p215 = scmp.eq.s32.totalorder %s42, 0
      %p216 = por %p214, %p215
      %s218 = sadd.s32 %s217, 1
      %p221 = scmp.eq.s32.totalorder %s36, 1
      %p222 = scmp.ne.s32.totalorder %s217, %s219
      %p223 = scmp.eq.s32.totalorder %s36, 0
      %p224 = por %p222, %p223
      %p225 = scmp.ne.s32.totalorder %s217, %s219
      %p226 = scmp.eq.s32.totalorder %s41, 1
      %p227 = por %p225, %p226
      %p228 = scmp.ne.s32.totalorder %s219, %s220
      %p229 = scmp.eq.s32.totalorder %s41, 0
      %p230 = por %p228, %p229
      %p231 = scmp.ne.s32.totalorder %s219, %s220
      %p232 = scmp.eq.s32.totalorder %s42, 1
      %p233 = por %p231, %p232
      %p235 = scmp.ne.s32.totalorder %s220, %s234
      %p236 = scmp.eq.s32.totalorder %s42, 0
      %p237 = por %p235, %p236
      %s239 = sadd.s32 %s238, 1
      %p242 = scmp.eq.s32.totalorder %s36, 1
      %p243 = scmp.ne.s32.totalorder %s238, %s240
      %p244 = scmp.eq.s32.totalorder %s36, 0
      %p245 = por %p243, %p244
      %p246 = scmp.ne.s32.totalorder %s238, %s240
      %p247 = scmp.eq.s32.totalorder %s41, 1
      %p248 = por %p246, %p247
      %p249 = scmp.ne.s32.totalorder %s240, %s241
      %p250 = scmp.eq.s32.totalorder %s41, 0
      %p251 = por %p249, %p250
      %p252 = scmp.ne.s32.totalorder %s240, %s241
      %p253 = scmp.eq.s32.totalorder %s42, 1
      %p254 = por %p252, %p253
      %p256 = scmp.ne.s32.totalorder %s241, %s255
      %p257 = scmp.eq.s32.totalorder %s42, 0
      %p258 = por %p256, %p257
      %s260 = sadd.s32 %s259, 1
      %p263 = scmp.eq.s32.totalorder %s36, 1
      %p264 = scmp.ne.s32.totalorder %s259, %s261
      %p265 = scmp.eq.s32.totalorder %s36, 0
      %p266 = por %p264, %p265
      %p267 = scmp.ne.s32.totalorder %s259, %s261
      %p268 = scmp.eq.s32.totalorder %s41, 1
      %p269 = por %p267, %p268
      %p270 = scmp.ne.s32.totalorder %s261, %s262
      %p271 = scmp.eq.s32.totalorder %s41, 0
      %p272 = por %p270, %p271
      %p273 = scmp.ne.s32.totalorder %s261, %s262
      %p274 = scmp.eq.s32.totalorder %s42, 1
      %p275 = por %p273, %p274
      %p277 = scmp.ne.s32.totalorder %s262, %s276
      %p278 = scmp.eq.s32.totalorder %s42, 0
      %p279 = por %p277, %p278
      %s281 = sadd.s32 %s280, 1
      %p284 = scmp.eq.s32.totalorder %s36, 1
      %p285 = scmp.ne.s32.totalorder %s280, %s282
      %p286 = scmp.eq.s32.totalorder %s36, 0
      %p287 = por %p285, %p286
      %p288 = scmp.ne.s32.totalorder %s280, %s282
      %p289 = scmp.eq.s32.totalorder %s41, 1
      %p290 = por %p288, %p289
      %p291 = scmp.ne.s32.totalorder %s282, %s283
      %p292 = scmp.eq.s32.totalorder %s41, 0
      %p293 = por %p291, %p292
      %p294 = scmp.ne.s32.totalorder %s282, %s283
      %p295 = scmp.eq.s32.totalorder %s42, 1
      %p296 = por %p294, %p295
      %p298 = scmp.ne.s32.totalorder %s283, %s297
      %p299 = scmp.eq.s32.totalorder %s42, 0
      %p300 = por %p298, %p299
      %s302 = sadd.s32 %s301, 1
      %p305 = scmp.eq.s32.totalorder %s36, 1
      %p306 = scmp.ne.s32.totalorder %s301, %s303
      %p307 = scmp.eq.s32.totalorder %s36, 0
      %p308 = por %p306, %p307
      %p309 = scmp.ne.s32.totalorder %s301, %s303
      %p310 = scmp.eq.s32.totalorder %s41, 1
      %p311 = por %p309, %p310
      %p312 = scmp.ne.s32.totalorder %s303, %s304
      %p313 = scmp.eq.s32.totalorder %s41, 0
      %p314 = por %p312, %p313
      %p315 = scmp.ne.s32.totalorder %s303, %s304
      %p316 = scmp.eq.s32.totalorder %s42, 1
      %p317 = por %p315, %p316
      %p319 = scmp.ne.s32.totalorder %s304, %s318
      %p320 = scmp.eq.s32.totalorder %s42, 0
      %p321 = por %p319, %p320
      %s323 = sadd.s32 %s322, 1
      %p326 = scmp.eq.s32.totalorder %s36, 1
      %p327 = scmp.ne.s32.totalorder %s322, %s324
      %p328 = scmp.eq.s32.totalorder %s36, 0
      %p329 = por %p327, %p328
      %p330 = scmp.ne.s32.totalorder %s322, %s324
      %p331 = scmp.eq.s32.totalorder %s41, 1
      %p332 = por %p330, %p331
      %p333 = scmp.ne.s32.totalorder %s324, %s325
      %p334 = scmp.eq.s32.totalorder %s41, 0
      %p335 = por %p333, %p334
      %p336 = scmp.ne.s32.totalorder %s324, %s325
      %p337 = scmp.eq.s32.totalorder %s42, 1
      %p338 = por %p336, %p337
      %p340 = scmp.ne.s32.totalorder %s325, %s339
      %p341 = scmp.eq.s32.totalorder %s42, 0
      %p342 = por %p340, %p341
      %s344 = sadd.s32 %s343, 1
      %p347 = scmp.eq.s32.totalorder %s36, 1
      %p348 = scmp.ne.s32.totalorder %s343, %s345
      %p349 = scmp.eq.s32.totalorder %s36, 0
      %p350 = por %p348, %p349
      %p351 = scmp.ne.s32.totalorder %s343, %s345
      %p352 = scmp.eq.s32.totalorder %s41, 1
      %p353 = por %p351, %p352
      %p354 = scmp.ne.s32.totalorder %s345, %s346
      %p355 = scmp.eq.s32.totalorder %s41, 0
      %p356 = por %p354, %p355
      %p357 = scmp.ne.s32.totalorder %s345, %s346
      %p358 = scmp.eq.s32.totalorder %s42, 1
      %p359 = por %p357, %p358
      %p361 = scmp.ne.s32.totalorder %s346, %s360
      %p362 = scmp.eq.s32.totalorder %s42, 0
      %p363 = por %p361, %p362
      %s365 = sadd.s32 %s364, 1
      %p368 = scmp.eq.s32.totalorder %s36, 1
      %p369 = scmp.ne.s32.totalorder %s364, %s366
      %p370 = scmp.eq.s32.totalorder %s36, 0
      %p371 = por %p369, %p370
      %p372 = scmp.ne.s32.totalorder %s364, %s366
      %p373 = scmp.eq.s32.totalorder %s41, 1
      %p374 = por %p372, %p373
      %p375 = scmp.ne.s32.totalorder %s366, %s367
      %p376 = scmp.eq.s32.totalorder %s41, 0
      %p377 = por %p375, %p376
      %p378 = scmp.ne.s32.totalorder %s366, %s367
      %p379 = scmp.eq.s32.totalorder %s42, 1
      %p380 = por %p378, %p379
      %p382 = scmp.ne.s32.totalorder %s367, %s381
      %p383 = scmp.eq.s32.totalorder %s42, 0
      %p384 = por %p382, %p383
      %s386 = sadd.s32 %s385, 1
      %p389 = scmp.eq.s32.totalorder %s36, 1
      %p390 = scmp.ne.s32.totalorder %s385, %s387
      %p391 = scmp.eq.s32.totalorder %s36, 0
      %p392 = por %p390, %p391
      %p393 = scmp.ne.s32.totalorder %s385, %s387
      %p394 = scmp.eq.s32.totalorder %s41, 1
      %p395 = por %p393, %p394
      %p396 = scmp.ne.s32.totalorder %s387, %s388
      %p397 = scmp.eq.s32.totalorder %s41, 0
      %p398 = por %p396, %p397
      %p399 = scmp.ne.s32.totalorder %s387, %s388
      %p400 = scmp.eq.s32.totalorder %s42, 1
      %p401 = por %p399, %p400
      %p403 = scmp.ne.s32.totalorder %s388, %s402
      %p404 = scmp.eq.s32.totalorder %s42, 0
      %p405 = por %p403, %p404
      %s407 = sadd.s32 %s406, 1
      %p410 = scmp.eq.s32.totalorder %s36, 1
      %p411 = scmp.ne.s32.totalorder %s406, %s408
      %p412 = scmp.eq.s32.totalorder %s36, 0
      %p413 = por %p411, %p412
      %p414 = scmp.ne.s32.totalorder %s406, %s408
      %p415 = scmp.eq.s32.totalorder %s41, 1
      %p416 = por %p414, %p415
      %p417 = scmp.ne.s32.totalorder %s408, %s409
      %p418 = scmp.eq.s32.totalorder %s41, 0
      %p419 = por %p417, %p418
      %p420 = scmp.ne.s32.totalorder %s408, %s409
      %p421 = scmp.eq.s32.totalorder %s42, 1
      %p422 = por %p420, %p421
      %p424 = scmp.ne.s32.totalorder %s409, %s423
      %p425 = scmp.eq.s32.totalorder %s42, 0
      %p426 = por %p424, %p425
      %s428 = sadd.s32 %s427, 1
      %p431 = scmp.eq.s32.totalorder %s36, 1
      %p432 = scmp.ne.s32.totalorder %s427, %s429
      %p433 = scmp.eq.s32.totalorder %s36, 0
      %p434 = por %p432, %p433
      %p435 = scmp.ne.s32.totalorder %s427, %s429
      %p436 = scmp.eq.s32.totalorder %s41, 1
      %p437 = por %p435, %p436
      %p438 = scmp.ne.s32.totalorder %s429, %s430
      %p439 = scmp.eq.s32.totalorder %s41, 0
      %p440 = por %p438, %p439
      %p441 = scmp.ne.s32.totalorder %s429, %s430
      %p442 = scmp.eq.s32.totalorder %s42, 1
      %p443 = por %p441, %p442
      %p445 = scmp.ne.s32.totalorder %s430, %s444
      %p446 = scmp.eq.s32.totalorder %s42, 0
      %p447 = por %p445, %p446
      %s449 = sadd.s32 %s448, 1
      %p452 = scmp.eq.s32.totalorder %s36, 1
      %p453 = scmp.ne.s32.totalorder %s448, %s450
      %p454 = scmp.eq.s32.totalorder %s36, 0
      %p455 = por %p453, %p454
      %p456 = scmp.ne.s32.totalorder %s448, %s450
      %p457 = scmp.eq.s32.totalorder %s41, 1
      %p458 = por %p456, %p457
      %p459 = scmp.ne.s32.totalorder %s450, %s451
      %p460 = scmp.eq.s32.totalorder %s41, 0
      %p461 = por %p459, %p460
      %p462 = scmp.ne.s32.totalorder %s450, %s451
      %p463 = scmp.eq.s32.totalorder %s42, 1
      %p464 = por %p462, %p463
      %p466 = scmp.ne.s32.totalorder %s451, %s465
      %p467 = scmp.eq.s32.totalorder %s42, 0
      %p468 = por %p466, %p467
      %s470 = sadd.s32 %s469, 1
      %p473 = scmp.eq.s32.totalorder %s36, 1
      %p474 = scmp.ne.s32.totalorder %s469, %s471
      %p475 = scmp.eq.s32.totalorder %s36, 0
      %p476 = por %p474, %p475
      %p477 = scmp.ne.s32.totalorder %s469, %s471
      %p478 = scmp.eq.s32.totalorder %s41, 1
      %p479 = por %p477, %p478
      %p480 = scmp.ne.s32.totalorder %s471, %s472
      %p481 = scmp.eq.s32.totalorder %s41, 0
      %p482 = por %p480, %p481
      %p483 = scmp.ne.s32.totalorder %s471, %s472
      %p484 = scmp.eq.s32.totalorder %s42, 1
      %p485 = por %p483, %p484
      %p487 = scmp.ne.s32.totalorder %s472, %s486
      %p488 = scmp.eq.s32.totalorder %s42, 0
      %p489 = por %p487, %p488
      %s491 = sadd.s32 %s490, 1
      %p494 = scmp.eq.s32.totalorder %s36, 1
      %p495 = scmp.ne.s32.totalorder %s490, %s492
      %p496 = scmp.eq.s32.totalorder %s36, 0
      %p497 = por %p495, %p496
      %p498 = scmp.ne.s32.totalorder %s490, %s492
      %p499 = scmp.eq.s32.totalorder %s41, 1
      %p500 = por %p498, %p499
      %p501 = scmp.ne.s32.totalorder %s492, %s493
      %p502 = scmp.eq.s32.totalorder %s41, 0
      %p503 = por %p501, %p502
      %p504 = scmp.ne.s32.totalorder %s492, %s493
      %p505 = scmp.eq.s32.totalorder %s42, 1
      %p506 = por %p504, %p505
      %p508 = scmp.ne.s32.totalorder %s493, %s507
      %p509 = scmp.eq.s32.totalorder %s42, 0
      %p510 = por %p508, %p509
      %s512 = sadd.s32 %s511, 1
      %p515 = scmp.eq.s32.totalorder %s36, 1
      %p516 = scmp.ne.s32.totalorder %s511, %s513
      %p517 = scmp.eq.s32.totalorder %s36, 0
      %p518 = por %p516, %p517
      %p519 = scmp.ne.s32.totalorder %s511, %s513
      %p520 = scmp.eq.s32.totalorder %s41, 1
      %p521 = por %p519, %p520
      %p522 = scmp.ne.s32.totalorder %s513, %s514
      %p523 = scmp.eq.s32.totalorder %s41, 0
      %p524 = por %p522, %p523
      %p525 = scmp.ne.s32.totalorder %s513, %s514
      %p526 = scmp.eq.s32.totalorder %s42, 1
      %p527 = por %p525, %p526
      %p529 = scmp.ne.s32.totalorder %s514, %s528
      %p530 = scmp.eq.s32.totalorder %s42, 0
      %p531 = por %p529, %p530
      %s533 = sadd.s32 %s532, 1
      %p536 = scmp.eq.s32.totalorder %s36, 1
      %p537 = scmp.ne.s32.totalorder %s532, %s534
      %p538 = scmp.eq.s32.totalorder %s36, 0
      %p539 = por %p537, %p538
      %p540 = scmp.ne.s32.totalorder %s532, %s534
      %p541 = scmp.eq.s32.totalorder %s41, 1
      %p542 = por %p540, %p541
      %p543 = scmp.ne.s32.totalorder %s534, %s535
      %p544 = scmp.eq.s32.totalorder %s41, 0
      %p545 = por %p543, %p544
      %p546 = scmp.ne.s32.totalorder %s534, %s535
      %p547 = scmp.eq.s32.totalorder %s42, 1
      %p548 = por %p546, %p547
      %p550 = scmp.ne.s32.totalorder %s535, %s549
      %p551 = scmp.eq.s32.totalorder %s42, 0
      %p552 = por %p550, %p551
      %s554 = sadd.s32 %s553, 1
      %p557 = scmp.eq.s32.totalorder %s36, 1
      %p558 = scmp.ne.s32.totalorder %s553, %s555
      %p559 = scmp.eq.s32.totalorder %s36, 0
      %p560 = por %p558, %p559
      %p561 = scmp.ne.s32.totalorder %s553, %s555
      %p562 = scmp.eq.s32.totalorder %s41, 1
      %p563 = por %p561, %p562
      %p564 = scmp.ne.s32.totalorder %s555, %s556
      %p565 = scmp.eq.s32.totalorder %s41, 0
      %p566 = por %p564, %p565
      %p567 = scmp.ne.s32.totalorder %s555, %s556
      %p568 = scmp.eq.s32.totalorder %s42, 1
      %p569 = por %p567, %p568
      %p571 = scmp.ne.s32.totalorder %s556, %s570
      %p572 = scmp.eq.s32.totalorder %s42, 0
      %p573 = por %p571, %p572
      %s575 = sadd.s32 %s574, 1
      %p578 = scmp.eq.s32.totalorder %s36, 1
      %p579 = scmp.ne.s32.totalorder %s574, %s576
      %p580 = scmp.eq.s32.totalorder %s36, 0
      %p581 = por %p579, %p580
      %p582 = scmp.ne.s32.totalorder %s574, %s576
      %p583 = scmp.eq.s32.totalorder %s41, 1
      %p584 = por %p582, %p583
      %p585 = scmp.ne.s32.totalorder %s576, %s577
      %p586 = scmp.eq.s32.totalorder %s41, 0
      %p587 = por %p585, %p586
      %p588 = scmp.ne.s32.totalorder %s576, %s577
      %p589 = scmp.eq.s32.totalorder %s42, 1
      %p590 = por %p588, %p589
      %p592 = scmp.ne.s32.totalorder %s577, %s591
      %p593 = scmp.eq.s32.totalorder %s42, 0
      %p594 = por %p592, %p593
      %s596 = sadd.s32 %s595, 1
      %p599 = scmp.eq.s32.totalorder %s36, 1
      %p600 = scmp.ne.s32.totalorder %s595, %s597
      %p601 = scmp.eq.s32.totalorder %s36, 0
      %p602 = por %p600, %p601
      %p603 = scmp.ne.s32.totalorder %s595, %s597
      %p604 = scmp.eq.s32.totalorder %s41, 1
      %p605 = por %p603, %p604
      %p606 = scmp.ne.s32.totalorder %s597, %s598
      %p607 = scmp.eq.s32.totalorder %s41, 0
      %p608 = por %p606, %p607
      %p609 = scmp.ne.s32.totalorder %s597, %s598
      %p610 = scmp.eq.s32.totalorder %s42, 1
      %p611 = por %p609, %p610
      %p613 = scmp.ne.s32.totalorder %s598, %s612
      %p614 = scmp.eq.s32.totalorder %s42, 0
      %p615 = por %p613, %p614
      %s616 = ssub.s32 %s36, %s43
      %p617 = scmp.eq.s32.totalorder %s616, 0
      %s619 = sadd.s32 %s618, 1
      %s620 = scalar_select %p617, %s618, %s619
      %p623 = pneg %p617
      %p624 = scmp.eq.s32.totalorder %s36, 1
      %p625 = por %p623, %p624
      %p626 = scmp.ne.s32.totalorder %s618, %s621
      %p627 = scmp.eq.s32.totalorder %s36, 0
      %p628 = por %p626, %p627
      %p629 = scmp.ne.s32.totalorder %s618, %s621
      %p630 = scmp.eq.s32.totalorder %s41, 1
      %p631 = por %p629, %p630
      %p632 = scmp.ne.s32.totalorder %s621, %s622
      %p633 = scmp.eq.s32.totalorder %s41, 0
      %p634 = por %p632, %p633
      %p635 = scmp.ne.s32.totalorder %s621, %s622
      %p636 = scmp.eq.s32.totalorder %s42, 1
      %p637 = por %p635, %p636
      %p639 = scmp.ne.s32.totalorder %s622, %s638
      %p640 = scmp.eq.s32.totalorder %s42, 0
      %p641 = por %p639, %p640
      %p642 = scmp.le.s32.totalorder 1, %s36
      %p643 = scmp.lt.s32.totalorder %s36, 3
      %p644 = pnand %p642, %p643
      %p645 = pneg %p644
      // Predicated region
      $region9: #{tpu_custom_call.1} parent=5 // pred_check
        _
      $region10: #{tpu_custom_call.1} parent=5 // pred_check_branch
        %647 = sbr.rel (%p644) target = $region12
      $region11: #{tpu_custom_call.1} parent=5 // pred_region
        %s648 = ssub.s32 %s36, 1
        // Predicated region
        $region13: #{tpu_custom_call.1} parent=11 // pred_check
          %p649 = pneg %p83
        $region14: #{tpu_custom_call.1} parent=11 // pred_check_branch
          %651 = sbr.rel (%p649) target = $region16
        $region15: #{tpu_custom_call.1} parent=11 // pred_region
          _
        $region16: #{tpu_custom_call.1} parent=11 // pred_fallthru
          _
        // Predicated region
        $region17: #{tpu_custom_call.1} parent=11 // pred_check
          %p652 = pneg %p104
        $region18: #{tpu_custom_call.1} parent=11 // pred_check_branch
          %654 = sbr.rel (%p652) target = $region20
        $region19: #{tpu_custom_call.1} parent=11 // pred_region
          _
        $region20: #{tpu_custom_call.1} parent=11 // pred_fallthru
          _
        // Predicated region
        $region21: #{tpu_custom_call.1} parent=11 // pred_check
          %p655 = pneg %p125
        $region22: #{tpu_custom_call.1} parent=11 // pred_check_branch
          %657 = sbr.rel (%p655) target = $region24
        $region23: #{tpu_custom_call.1} parent=11 // pred_region
          _
        $region24: #{tpu_custom_call.1} parent=11 // pred_fallthru
          _
        // Predicated region
        $region25: #{tpu_custom_call.1} parent=11 // pred_check
          %p658 = pneg %p146
        $region26: #{tpu_custom_call.1} parent=11 // pred_check_branch
          %660 = sbr.rel (%p658) target = $region28
        $region27: #{tpu_custom_call.1} parent=11 // pred_region
          _
        $region28: #{tpu_custom_call.1} parent=11 // pred_fallthru
          _
        // Predicated region
        $region29: #{tpu_custom_call.1} parent=11 // pred_check
          %p661 = pneg %p167
        $region30: #{tpu_custom_call.1} parent=11 // pred_check_branch
          %663 = sbr.rel (%p661) target = $region32
        $region31: #{tpu_custom_call.1} parent=11 // pred_region
          _
        $region32: #{tpu_custom_call.1} parent=11 // pred_fallthru
          _
        // Predicated region
        $region33: #{tpu_custom_call.1} parent=11 // pred_check
          %p664 = pneg %p188
        $region34: #{tpu_custom_call.1} parent=11 // pred_check_branch
          %666 = sbr.rel (%p664) target = $region36
        $region35: #{tpu_custom_call.1} parent=11 // pred_region
          _
        $region36: #{tpu_custom_call.1} parent=11 // pred_fallthru
          _
        // Predicated region
        $region37: #{tpu_custom_call.1} parent=11 // pred_check
          %p667 = pneg %p209
        $region38: #{tpu_custom_call.1} parent=11 // pred_check_branch
          %669 = sbr.rel (%p667) target = $region40
        $region39: #{tpu_custom_call.1} parent=11 // pred_region
          _
        $region40: #{tpu_custom_call.1} parent=11 // pred_fallthru
          _
        // Predicated region
        $region41: #{tpu_custom_call.1} parent=11 // pred_check
          %p670 = pneg %p230
        $region42: #{tpu_custom_call.1} parent=11 // pred_check_branch
          %672 = sbr.rel (%p670) target = $region44
        $region43: #{tpu_custom_call.1} parent=11 // pred_region
          _
        $region44: #{tpu_custom_call.1} parent=11 // pred_fallthru
          _
        // Predicated region
        $region45: #{tpu_custom_call.1} parent=11 // pred_check
          %p673 = pneg %p251
        $region46: #{tpu_custom_call.1} parent=11 // pred_check_branch
          %675 = sbr.rel (%p673) target = $region48
        $region47: #{tpu_custom_call.1} parent=11 // pred_region
          _
        $region48: #{tpu_custom_call.1} parent=11 // pred_fallthru
          _
        // Predicated region
        $region49: #{tpu_custom_call.1} parent=11 // pred_check
          %p676 = pneg %p272
        $region50: #{tpu_custom_call.1} parent=11 // pred_check_branch
          %678 = sbr.rel (%p676) target = $region52
        $region51: #{tpu_custom_call.1} parent=11 // pred_region
          _
        $region52: #{tpu_custom_call.1} parent=11 // pred_fallthru
          _
        // Predicated region
        $region53: #{tpu_custom_call.1} parent=11 // pred_check
          %p679 = pneg %p293
        $region54: #{tpu_custom_call.1} parent=11 // pred_check_branch
          %681 = sbr.rel (%p679) target = $region56
        $region55: #{tpu_custom_call.1} parent=11 // pred_region
          _
        $region56: #{tpu_custom_call.1} parent=11 // pred_fallthru
          _
        // Predicated region
        $region57: #{tpu_custom_call.1} parent=11 // pred_check
          %p682 = pneg %p314
        $region58: #{tpu_custom_call.1} parent=11 // pred_check_branch
          %684 = sbr.rel (%p682) target = $region60
        $region59: #{tpu_custom_call.1} parent=11 // pred_region
          _
        $region60: #{tpu_custom_call.1} parent=11 // pred_fallthru
          _
        // Predicated region
        $region61: #{tpu_custom_call.1} parent=11 // pred_check
          %p685 = pneg %p335
        $region62: #{tpu_custom_call.1} parent=11 // pred_check_branch
          %687 = sbr.rel (%p685) target = $region64
        $region63: #{tpu_custom_call.1} parent=11 // pred_region
          _
        $region64: #{tpu_custom_call.1} parent=11 // pred_fallthru
          _
        // Predicated region
        $region65: #{tpu_custom_call.1} parent=11 // pred_check
          %p688 = pneg %p356
        $region66: #{tpu_custom_call.1} parent=11 // pred_check_branch
          %690 = sbr.rel (%p688) target = $region68
        $region67: #{tpu_custom_call.1} parent=11 // pred_region
          _
        $region68: #{tpu_custom_call.1} parent=11 // pred_fallthru
          _
        // Predicated region
        $region69: #{tpu_custom_call.1} parent=11 // pred_check
          %p691 = pneg %p377
        $region70: #{tpu_custom_call.1} parent=11 // pred_check_branch
          %693 = sbr.rel (%p691) target = $region72
        $region71: #{tpu_custom_call.1} parent=11 // pred_region
          _
        $region72: #{tpu_custom_call.1} parent=11 // pred_fallthru
          _
        // Predicated region
        $region73: #{tpu_custom_call.1} parent=11 // pred_check
          %p694 = pneg %p398
        $region74: #{tpu_custom_call.1} parent=11 // pred_check_branch
          %696 = sbr.rel (%p694) target = $region76
        $region75: #{tpu_custom_call.1} parent=11 // pred_region
          _
        $region76: #{tpu_custom_call.1} parent=11 // pred_fallthru
          _
        // Predicated region
        $region77: #{tpu_custom_call.1} parent=11 // pred_check
          %p697 = pneg %p419
        $region78: #{tpu_custom_call.1} parent=11 // pred_check_branch
          %699 = sbr.rel (%p697) target = $region80
        $region79: #{tpu_custom_call.1} parent=11 // pred_region
          _
        $region80: #{tpu_custom_call.1} parent=11 // pred_fallthru
          _
        // Predicated region
        $region81: #{tpu_custom_call.1} parent=11 // pred_check
          %p700 = pneg %p440
        $region82: #{tpu_custom_call.1} parent=11 // pred_check_branch
          %702 = sbr.rel (%p700) target = $region84
        $region83: #{tpu_custom_call.1} parent=11 // pred_region
          _
        $region84: #{tpu_custom_call.1} parent=11 // pred_fallthru
          _
        // Predicated region
        $region85: #{tpu_custom_call.1} parent=11 // pred_check
          %p703 = pneg %p461
        $region86: #{tpu_custom_call.1} parent=11 // pred_check_branch
          %705 = sbr.rel (%p703) target = $region88
        $region87: #{tpu_custom_call.1} parent=11 // pred_region
          _
        $region88: #{tpu_custom_call.1} parent=11 // pred_fallthru
          _
        // Predicated region
        $region89: #{tpu_custom_call.1} parent=11 // pred_check
          %p706 = pneg %p482
        $region90: #{tpu_custom_call.1} parent=11 // pred_check_branch
          %708 = sbr.rel (%p706) target = $region92
        $region91: #{tpu_custom_call.1} parent=11 // pred_region
          _
        $region92: #{tpu_custom_call.1} parent=11 // pred_fallthru
          _
        // Predicated region
        $region93: #{tpu_custom_call.1} parent=11 // pred_check
          %p709 = pneg %p503
        $region94: #{tpu_custom_call.1} parent=11 // pred_check_branch
          %711 = sbr.rel (%p709) target = $region96
        $region95: #{tpu_custom_call.1} parent=11 // pred_region
          _
        $region96: #{tpu_custom_call.1} parent=11 // pred_fallthru
          _
        // Predicated region
        $region97: #{tpu_custom_call.1} parent=11 // pred_check
          %p712 = pneg %p524
        $region98: #{tpu_custom_call.1} parent=11 // pred_check_branch
          %714 = sbr.rel (%p712) target = $region100
        $region99: #{tpu_custom_call.1} parent=11 // pred_region
          _
        $region100: #{tpu_custom_call.1} parent=11 // pred_fallthru
          _
        // Predicated region
        $region101: #{tpu_custom_call.1} parent=11 // pred_check
          %p715 = pneg %p545
        $region102: #{tpu_custom_call.1} parent=11 // pred_check_branch
          %717 = sbr.rel (%p715) target = $region104
        $region103: #{tpu_custom_call.1} parent=11 // pred_region
          _
        $region104: #{tpu_custom_call.1} parent=11 // pred_fallthru
          _
        // Predicated region
        $region105: #{tpu_custom_call.1} parent=11 // pred_check
          %p718 = pneg %p566
        $region106: #{tpu_custom_call.1} parent=11 // pred_check_branch
          %720 = sbr.rel (%p718) target = $region108
        $region107: #{tpu_custom_call.1} parent=11 // pred_region
          _
        $region108: #{tpu_custom_call.1} parent=11 // pred_fallthru
          _
        // Predicated region
        $region109: #{tpu_custom_call.1} parent=11 // pred_check
          %p721 = pneg %p587
        $region110: #{tpu_custom_call.1} parent=11 // pred_check_branch
          %723 = sbr.rel (%p721) target = $region112
        $region111: #{tpu_custom_call.1} parent=11 // pred_region
          _
        $region112: #{tpu_custom_call.1} parent=11 // pred_fallthru
          _
        // Predicated region
        $region113: #{tpu_custom_call.1} parent=11 // pred_check
          %p724 = pneg %p608
        $region114: #{tpu_custom_call.1} parent=11 // pred_check_branch
          %726 = sbr.rel (%p724) target = $region116
        $region115: #{tpu_custom_call.1} parent=11 // pred_region
          _
        $region116: #{tpu_custom_call.1} parent=11 // pred_fallthru
          _
      $region12: #{tpu_custom_call.1} parent=5 // pred_fallthru
        _
      %p727 = scmp.lt.s32.totalorder %s36, 2
      // Predicated region
      $region117: #{tpu_custom_call.1} parent=5 // pred_check
        %p728 = pneg %p727
      $region118: #{tpu_custom_call.1} parent=5 // pred_check_branch
        %730 = sbr.rel (%p728) target = $region120
      $region119: #{tpu_custom_call.1} parent=5 // pred_region
        // Predicated region
        $region121: #{tpu_custom_call.1} parent=119 // pred_check
          %p731 = pneg %p56
        $region122: #{tpu_custom_call.1} parent=119 // pred_check_branch
          %733 = sbr.rel (%p731) target = $region124
        $region123: #{tpu_custom_call.1} parent=119 // pred_region
          %p734 = scmp.lt.s32.totalorder %s36, 1
          %s735 = scalar_select %p734, %s36, 1
          %s736 = smul.addr %s735, 4
          %s737 = scalar_lea.vmem %s0, %s736
        $region124: #{tpu_custom_call.1} parent=119 // pred_fallthru
          _
      $region120: #{tpu_custom_call.1} parent=5 // pred_fallthru
        _
      %p738 = scmp.le.s32.totalorder 1, %s36
      %p739 = scmp.lt.s32.totalorder %s36, 3
      %p740 = pnand %p738, %p739
      %p741 = pneg %p740
      // Predicated region
      $region125: #{tpu_custom_call.1} parent=5 // pred_check
        _
      $region126: #{tpu_custom_call.1} parent=5 // pred_check_branch
        %743 = sbr.rel (%p740) target = $region128
      $region127: #{tpu_custom_call.1} parent=5 // pred_region
        %s744 = ssub.s32 %s36, 1
        %p745 = scmp.lt.s32.totalorder %s41, 1
        %s746 = scalar_select %p745, %s41, 1
        %s747 = smul.addr %s746, 4
        %s748 = scalar_lea.vmem %s0, %s747
        %p749 = pneg %p62
        %p750 = pneg %p59
        %p751 = pneg %p83
        %p752 = pneg %p80
        %p753 = pneg %p104
        %p754 = pneg %p101
        %p755 = pneg %p125
        %p756 = pneg %p122
        %p757 = pneg %p146
        %p758 = pneg %p143
        %p759 = pneg %p167
        %p760 = pneg %p164
        %p761 = pneg %p188
        %p762 = pneg %p185
        %p763 = pneg %p209
        %p764 = pneg %p206
        %p765 = pneg %p230
        %p766 = pneg %p227
        %p767 = pneg %p251
        %p768 = pneg %p248
        %p769 = pneg %p272
        %p770 = pneg %p269
        %p771 = pneg %p293
        %p772 = pneg %p290
        %p773 = pneg %p314
        %p774 = pneg %p311
        %p775 = pneg %p335
        %p776 = pneg %p332
        %p777 = pneg %p356
        %p778 = pneg %p353
        %p779 = pneg %p377
        %p780 = pneg %p374
        %p781 = pneg %p398
        %p782 = pneg %p395
        %p783 = pneg %p419
        %p784 = pneg %p416
        %p785 = pneg %p440
        %p786 = pneg %p437
        %p787 = pneg %p461
        %p788 = pneg %p458
        %p789 = pneg %p482
        %p790 = pneg %p479
        %p791 = pneg %p503
        %p792 = pneg %p500
        %p793 = pneg %p524
        %p794 = pneg %p521
        %p795 = pneg %p545
        %p796 = pneg %p542
        %p797 = pneg %p566
        %p798 = pneg %p563
        %p799 = pneg %p587
        %p800 = pneg %p584
        %p801 = pneg %p608
        %p802 = pneg %p605
        %p803 = pneg %p634
        %p804 = pneg %p631
        %s805 = sand.u32 %s621, 1
        %s806 = scalar_lea.sflag [#allocation3], %s805
        %s807 = sand.u32 %s621, 1
        %s808 = smul.addr %s807, 8
        %s809 = scalar_lea.vmem [#allocation2], %s808
        %p810 = scmp.lt.s32.totalorder %s41, 1
        %s811 = scalar_select %p810, %s41, 1
        %s812 = smul.addr %s811, 4
        %s813 = scalar_lea.vmem %s0, %s812
        %v815 = vld [vmem:[%s813] sm:$0xf]
        %v816 = vunpack.c.l.bf16 %v815
        %v817 = vld [vmem:[%s1] sm:$0xf]
        %v818 = vld [vmem:[%s1 + $0x4] sm:$0xf]
        %v819 = vld [vmem:[%s1 + $0x8] sm:$0xf]
        %v820 = vld [vmem:[%s1 + $0xc] sm:$0xf]
        %v821 = vpack.c.bf16 %v816, %v816
        %v826 = vunpack.c.l.b16 %v817
        %v827 = vunpack.c.l.b16 %v818
        %v828 = vunpack.c.l.b16 %v819
        %v829 = vunpack.c.l.b16 %v820
        %v830 = vpack.c.b16 %v827, %v826
        %v831 = vpack.c.b16 %v829, %v828
        %vm834 = vcmask 261120
        %v836 = vsel %vm834, %v821, 0
        %838 = vmatprep.subr.bf16.mxu0 0
        %839 = vmatpush1.bf16.msra.mxu0 0
        %840 = vmatprep.subr.bf16.mxu0 0
        %841 = vmatpush1.bf16.msra.mxu0 0
        %842 = vmatprep.subr.bf16.mxu0 0
        %843 = vmatpush1.bf16.msra.mxu0 0
        %844 = vmatprep.subr.bf16.mxu0 0
        %845 = vmatpush1.bf16.msra.mxu0 0
        %846 = vmatprep.subr.bf16.mxu0 0
        %847 = vmatpush1.bf16.msra.mxu0 0
        %848 = vmatprep.subr.bf16.mxu0 0
        %849 = vmatpush1.bf16.msra.mxu0 0
        %850 = vmatprep.subr.bf16.mxu0 0
        %851 = vmatpush1.bf16.msra.mxu0 %v831
        %852 = vmatprep.subr.bf16.mxu0 0
        %853 = vmatpush1.bf16.msra.mxu0 %v830
        %854 = vmatprep.subr.bf16.mxu0 0
        %855 = vmatpush2.bf16.msra.mxu0 0
        %856 = vmatprep.subr.bf16.mxu0 0
        %857 = vmatpush2.bf16.msra.mxu0 0
        %858 = vmatprep.subr.bf16.mxu0 0
        %859 = vmatpush2.bf16.msra.mxu0 0
        %860 = vmatprep.subr.bf16.mxu0 0
        %861 = vmatpush2.bf16.msra.mxu0 0
        %862 = vmatprep.subr.bf16.mxu0 0
        %863 = vmatpush2.bf16.msra.mxu0 0
        %864 = vmatprep.subr.bf16.mxu0 0
        %865 = vmatpush2.bf16.msra.mxu0 0
        %866 = vmatprep.subr.bf16.mxu0 0
        %867 = vmatpush2.bf16.msra.mxu0 0
        %868 = vmatprep.subr.bf16.mxu0 0
        %869 = vmatpush2.bf16.msra.mxu0 0
        %870 = vmatprep.mubr.bf16.mxu0 0
        %871 = vmatmul.mubr.bf16.gmra.mxu0 %v836
        %v872 = vpop.f32.mrf.mxu0
        %v873 = vadd.f32 0.0, %v872
        %v874 = vpop.f32.mrf.mxu0
        %v875 = vpop.f32.mrf.mxu0
        %v876 = vpop.f32.mrf.mxu0
        %877 = vdwg.mxu0
        %v878 = vld [vmem:[%s2] sm:$0xf]
        %v879 = vld [vmem:[%s2 + $0x4] sm:$0xf]
        %v880 = vld [vmem:[%s2 + $0x8] sm:$0xf]
        %v881 = vld [vmem:[%s2 + $0xc] sm:$0xf]
        %v886 = vunpack.c.l.b16 %v878
        %v887 = vunpack.c.l.b16 %v879
        %v888 = vunpack.c.l.b16 %v880
        %v889 = vunpack.c.l.b16 %v881
        %v890 = vpack.c.b16 %v887, %v886
        %v891 = vpack.c.b16 %v889, %v888
        %894 = vmatprep.subr.bf16.mxu0 0
        %895 = vmatpush1.bf16.msra.mxu0 0
        %896 = vmatprep.subr.bf16.mxu0 0
        %897 = vmatpush1.bf16.msra.mxu0 0
        %898 = vmatprep.subr.bf16.mxu0 0
        %899 = vmatpush1.bf16.msra.mxu0 0
        %900 = vmatprep.subr.bf16.mxu0 0
        %901 = vmatpush1.bf16.msra.mxu0 0
        %902 = vmatprep.subr.bf16.mxu0 0
        %903 = vmatpush1.bf16.msra.mxu0 0
        %904 = vmatprep.subr.bf16.mxu0 0
        %905 = vmatpush1.bf16.msra.mxu0 0
        %906 = vmatprep.subr.bf16.mxu0 0
        %907 = vmatpush1.bf16.msra.mxu0 %v891
        %908 = vmatprep.subr.bf16.mxu0 0
        %909 = vmatpush1.bf16.msra.mxu0 %v890
        %910 = vmatprep.subr.bf16.mxu0 0
        %911 = vmatpush2.bf16.msra.mxu0 0
        %912 = vmatprep.subr.bf16.mxu0 0
        %913 = vmatpush2.bf16.msra.mxu0 0
        %914 = vmatprep.subr.bf16.mxu0 0
        %915 = vmatpush2.bf16.msra.mxu0 0
        %916 = vmatprep.subr.bf16.mxu0 0
        %917 = vmatpush2.bf16.msra.mxu0 0
        %918 = vmatprep.subr.bf16.mxu0 0
        %919 = vmatpush2.bf16.msra.mxu0 0
        %920 = vmatprep.subr.bf16.mxu0 0
        %921 = vmatpush2.bf16.msra.mxu0 0
        %922 = vmatprep.subr.bf16.mxu0 0
        %923 = vmatpush2.bf16.msra.mxu0 0
        %924 = vmatprep.subr.bf16.mxu0 0
        %925 = vmatpush2.bf16.msra.mxu0 0
        %926 = vmatprep.mubr.bf16.mxu0 0
        %927 = vmatmul.mubr.bf16.gmra.mxu0 %v836
        %v928 = vpop.f32.mrf.mxu0
        %v929 = vadd.f32 0.0, %v928
        %v930 = vpop.f32.mrf.mxu0
        %v931 = vpop.f32.mrf.mxu0
        %v932 = vpop.f32.mrf.mxu0
        %933 = vdwg.mxu0
        %v934 = vld [vmem:[%s3] sm:$0xf]
        %v935 = vlaneseq
        %v936 = vshrl.u32 %v935, 7
        %v937 = vsub.s32 3, %v936
        %v938 = vrot.slane %v934, %v937
        %v939 = vmul.f32 %v873, %v938
        %v941 = vrot.slane %v873, 5
        %vm943 = vcmask 1042432
        %v944 = vsel %vm943, 0.0, %v941
        %v945 = vlaneseq
        %v946 = vshrl.u32 %v945, 7
        %v947 = vsub.s32 0, %v946
        %v948 = vrot.slane %v934, %v947
        %v949 = vmul.f32 %v944, %v948
        %v950 = vadd.f32 %v939, %v949
        %v951 = vrot.slane %v873, 6
        %vm953 = vcmask 1041408
        %v954 = vsel %vm953, 0.0, %v951
        %v955 = vlaneseq
        %v956 = vshrl.u32 %v955, 7
        %v957 = vsub.s32 1, %v956
        %v958 = vrot.slane %v934, %v957
        %v959 = vmul.f32 %v954, %v958
        %v960 = vadd.f32 %v950, %v959
        %v961 = vrot.slane %v873, 7
        %vm963 = vcmask 1040384
        %v964 = vsel %vm963, 0.0, %v961
        %v965 = vlaneseq
        %v966 = vshrl.u32 %v965, 7
        %v967 = vsub.s32 2, %v966
        %v968 = vrot.slane %v934, %v967
        %v969 = vmul.f32 %v964, %v968
        %v970 = vadd.f32 %v960, %v969
        %v971 = vld [vmem:[%s4] sm:$0x1]
        %v973 = vlaneseq
        %v974 = vshrl.u32 %v973, 7
        %v975 = vsub.s32 0, %v974
        %v976 = vrot.slane %v971, %v975
        %v978 = vadd.f32 %v970, %v976
        %v979 = vsub.f32 0.0, %v978
        %v980 = vmul.f32 %v979, 1.442695
        %v981 = vpow.pop %v980
        %v982 = vadd.f32 %v981, 1.0
        %v983 = vrcp.pop %v982
        %v984 = vmul.f32 %v978, %v983
        %v985 = vld [vmem:[%s5] sm:$0xf]
        %v986 = vld [vmem:[%s5 + $0x4] sm:$0xf]
        %v987 = vld [vmem:[%s5 + $0x8] sm:$0xf]
        %v988 = vld [vmem:[%s5 + $0xc] sm:$0xf]
        %v989 = vld [vmem:[%s5 + $0x10] sm:$0xf]
        %v990 = vld [vmem:[%s5 + $0x14] sm:$0xf]
        %v991 = vld [vmem:[%s5 + $0x18] sm:$0xf]
        %v992 = vld [vmem:[%s5 + $0x1c] sm:$0xf]
        %v993 = vpack.c.bf16 %v984, %v984
        %v1002 = vunpack.c.l.b16 %v985
        %v1003 = vunpack.c.l.b16 %v986
        %v1004 = vunpack.c.l.b16 %v987
        %v1005 = vunpack.c.l.b16 %v988
        %v1006 = vunpack.c.l.b16 %v989
        %v1007 = vunpack.c.l.b16 %v990
        %v1008 = vunpack.c.l.b16 %v991
        %v1009 = vunpack.c.l.b16 %v992
        %v1010 = vpack.c.b16 %v1003, %v1002
        %v1011 = vpack.c.b16 %v1005, %v1004
        %v1012 = vpack.c.b16 %v1007, %v1006
        %v1013 = vpack.c.b16 %v1009, %v1008
        %vm1018 = vcmask 523264
        %v1020 = vsel %vm1018, %v993, 0
        %1022 = vmatprep.subr.bf16.mxu0 0
        %1023 = vmatpush1.bf16.msra.mxu0 0
        %1024 = vmatprep.subr.bf16.mxu0 0
        %1025 = vmatpush1.bf16.msra.mxu0 0
        %1026 = vmatprep.subr.bf16.mxu0 0
        %1027 = vmatpush1.bf16.msra.mxu0 0
        %1028 = vmatprep.subr.bf16.mxu0 0
        %1029 = vmatpush1.bf16.msra.mxu0 0
        %1030 = vmatprep.subr.bf16.mxu0 0
        %1031 = vmatpush1.bf16.msra.mxu0 %v1013
        %1032 = vmatprep.subr.bf16.mxu0 0
        %1033 = vmatpush1.bf16.msra.mxu0 %v1012
        %1034 = vmatprep.subr.bf16.mxu0 0
        %1035 = vmatpush1.bf16.msra.mxu0 %v1011
        %1036 = vmatprep.subr.bf16.mxu0 0
        %1037 = vmatpush1.bf16.msra.mxu0 %v1010
        %1038 = vmatprep.subr.bf16.mxu0 0
        %1039 = vmatpush2.bf16.msra.mxu0 0
        %1040 = vmatprep.subr.bf16.mxu0 0
        %1041 = vmatpush2.bf16.msra.mxu0 0
        %1042 = vmatprep.subr.bf16.mxu0 0
        %1043 = vmatpush2.bf16.msra.mxu0 0
        %1044 = vmatprep.subr.bf16.mxu0 0
        %1045 = vmatpush2.bf16.msra.mxu0 0
        %1046 = vmatprep.subr.bf16.mxu0 0
        %1047 = vmatpush2.bf16.msra.mxu0 0
        %1048 = vmatprep.subr.bf16.mxu0 0
        %1049 = vmatpush2.bf16.msra.mxu0 0
        %1050 = vmatprep.subr.bf16.mxu0 0
        %1051 = vmatpush2.bf16.msra.mxu0 0
        %1052 = vmatprep.subr.bf16.mxu0 0
        %1053 = vmatpush2.bf16.msra.mxu0 0
        %1054 = vmatprep.mubr.bf16.mxu0 0
        %1055 = vmatmul.mubr.bf16.gmra.mxu0 %v1020
        %v1056 = vpop.f32.mrf.mxu0
        %v1057 = vadd.f32 0.0, %v1056
        %v1058 = vpop.f32.mrf.mxu0
        %v1059 = vpop.f32.mrf.mxu0
        %v1060 = vpop.f32.mrf.mxu0
        %1061 = vdwg.mxu0
        %v1062 = vld [vmem:[%s8] sm:$0x1]
        %v1063 = vpack.c.bf16 %v1057, %v1057
        %v1064 = vld [vmem:[%s9] sm:$0x1]
        %v1066 = vlaneseq
        %v1067 = vshrl.u32 %v1066, 7
        %v1068 = vsub.s32 0, %v1067
        %v1069 = vrot.slane %v1064, %v1068
        %vm1071 = vcmask 15360
        %v1073 = vsel %vm1071, %v1063, 0
        %v1076 = vsel %vm963, %v1062, 0
        %1078 = vmatprep.subr.bf16.mxu0 0
        %1079 = vmatpush1.bf16.msra.mxu0 0
        %1080 = vmatprep.subr.bf16.mxu0 0
        %1081 = vmatpush1.bf16.msra.mxu0 0
        %1082 = vmatprep.subr.bf16.mxu0 0
        %1083 = vmatpush1.bf16.msra.mxu0 0
        %1084 = vmatprep.subr.bf16.mxu0 0
        %1085 = vmatpush1.bf16.msra.mxu0 0
        %1086 = vmatprep.subr.bf16.mxu0 0
        %1087 = vmatpush1.bf16.msra.mxu0 0
        %1088 = vmatprep.subr.bf16.mxu0 0
        %1089 = vmatpush1.bf16.msra.mxu0 0
        %1090 = vmatprep.subr.bf16.mxu0 0
        %1091 = vmatpush1.bf16.msra.mxu0 0
        %1092 = vmatprep.subr.bf16.mxu0 0
        %1093 = vmatpush1.bf16.msra.mxu0 %v1076
        %1094 = vmatprep.subr.bf16.mxu0 0
        %1095 = vmatpush2.bf16.msra.mxu0 0
        %1096 = vmatprep.subr.bf16.mxu0 0
        %1097 = vmatpush2.bf16.msra.mxu0 0
        %1098 = vmatprep.subr.bf16.mxu0 0
        %1099 = vmatpush2.bf16.msra.mxu0 0
        %1100 = vmatprep.subr.bf16.mxu0 0
        %1101 = vmatpush2.bf16.msra.mxu0 0
        %1102 = vmatprep.subr.bf16.mxu0 0
        %1103 = vmatpush2.bf16.msra.mxu0 0
        %1104 = vmatprep.subr.bf16.mxu0 0
        %1105 = vmatpush2.bf16.msra.mxu0 0
        %1106 = vmatprep.subr.bf16.mxu0 0
        %1107 = vmatpush2.bf16.msra.mxu0 0
        %1108 = vmatprep.subr.bf16.mxu0 0
        %1109 = vmatpush2.bf16.msra.mxu0 0
        %1110 = vmatprep.mubr.bf16.mxu0 0
        %1111 = vmatmul.mubr.bf16.gmra.mxu0 %v1073
        %v1112 = vpop.f32.mrf.mxu0
        %v1113 = vadd.f32 %v1069, %v1112
        %v1114 = vpop.f32.mrf.mxu0
        %v1115 = vpop.f32.mrf.mxu0
        %v1116 = vpop.f32.mrf.mxu0
        %1117 = vdwg.mxu0
        %v1118 = vmax.f32 %v1113, 0.0
        %v1119 = vand.u32 2147483647, %v1113
        %v1120 = vsub.f32 0.0, %v1119
        %v1121 = vmul.f32 %v1120, 1.442695
        %v1122 = vpow.pop %v1121
        %v1123 = vadd.f32 %v1122, 1.0
        %v1124 = vlog2.pop %v1123
        %v1125 = vmul.f32 %v1124, 0.6931472
        %v1126 = vadd.f32 %v1118, %v1125
        %v1127 = vld [vmem:[%s6] sm:$0xf]
        %v1128 = vld [vmem:[%s6 + $0x4] sm:$0xf]
        %v1129 = vld [vmem:[%s6 + $0x8] sm:$0xf]
        %v1130 = vld [vmem:[%s6 + $0xc] sm:$0xf]
        %v1131 = vld [vmem:[%s6 + $0x10] sm:$0xf]
        %v1132 = vld [vmem:[%s6 + $0x14] sm:$0xf]
        %v1133 = vld [vmem:[%s6 + $0x18] sm:$0xf]
        %v1134 = vld [vmem:[%s6 + $0x1c] sm:$0xf]
        %v1143 = vunpack.c.l.b16 %v1127
        %v1144 = vunpack.c.l.b16 %v1128
        %v1145 = vunpack.c.l.b16 %v1129
        %v1146 = vunpack.c.l.b16 %v1130
        %v1147 = vunpack.c.l.b16 %v1131
        %v1148 = vunpack.c.l.b16 %v1132
        %v1149 = vunpack.c.l.b16 %v1133
        %v1150 = vunpack.c.l.b16 %v1134
        %v1151 = vpack.c.b16 %v1144, %v1143
        %v1152 = vpack.c.b16 %v1146, %v1145
        %v1153 = vpack.c.b16 %v1148, %v1147
        %v1154 = vpack.c.b16 %v1150, %v1149
        %1159 = vmatprep.subr.bf16.mxu0 0
        %1160 = vmatpush1.bf16.msra.mxu0 0
        %1161 = vmatprep.subr.bf16.mxu0 0
        %1162 = vmatpush1.bf16.msra.mxu0 0
        %1163 = vmatprep.subr.bf16.mxu0 0
        %1164 = vmatpush1.bf16.msra.mxu0 0
        %1165 = vmatprep.subr.bf16.mxu0 0
        %1166 = vmatpush1.bf16.msra.mxu0 0
        %1167 = vmatprep.subr.bf16.mxu0 0
        %1168 = vmatpush1.bf16.msra.mxu0 %v1154
        %1169 = vmatprep.subr.bf16.mxu0 0
        %1170 = vmatpush1.bf16.msra.mxu0 %v1153
        %1171 = vmatprep.subr.bf16.mxu0 0
        %1172 = vmatpush1.bf16.msra.mxu0 %v1152
        %1173 = vmatprep.subr.bf16.mxu0 0
        %1174 = vmatpush1.bf16.msra.mxu0 %v1151
        %1175 = vmatprep.subr.bf16.mxu0 0
        %1176 = vmatpush2.bf16.msra.mxu0 0
        %1177 = vmatprep.subr.bf16.mxu0 0
        %1178 = vmatpush2.bf16.msra.mxu0 0
        %1179 = vmatprep.subr.bf16.mxu0 0
        %1180 = vmatpush2.bf16.msra.mxu0 0
        %1181 = vmatprep.subr.bf16.mxu0 0
        %1182 = vmatpush2.bf16.msra.mxu0 0
        %1183 = vmatprep.subr.bf16.mxu0 0
        %1184 = vmatpush2.bf16.msra.mxu0 0
        %1185 = vmatprep.subr.bf16.mxu0 0
        %1186 = vmatpush2.bf16.msra.mxu0 0
        %1187 = vmatprep.subr.bf16.mxu0 0
        %1188 = vmatpush2.bf16.msra.mxu0 0
        %1189 = vmatprep.subr.bf16.mxu0 0
        %1190 = vmatpush2.bf16.msra.mxu0 0
        %1191 = vmatprep.mubr.bf16.mxu0 0
        %1192 = vmatmul.mubr.bf16.gmra.mxu0 %v1020
        %v1193 = vpop.f32.mrf.mxu0
        %v1194 = vadd.f32 0.0, %v1193
        %v1195 = vpop.f32.mrf.mxu0
        %v1196 = vpop.f32.mrf.mxu0
        %v1197 = vpop.f32.mrf.mxu0
        %1198 = vdwg.mxu0
        %v1199 = vld [vmem:[%s7] sm:$0xf]
        %v1200 = vld [vmem:[%s7 + $0x4] sm:$0xf]
        %v1201 = vld [vmem:[%s7 + $0x8] sm:$0xf]
        %v1202 = vld [vmem:[%s7 + $0xc] sm:$0xf]
        %v1203 = vld [vmem:[%s7 + $0x10] sm:$0xf]
        %v1204 = vld [vmem:[%s7 + $0x14] sm:$0xf]
        %v1205 = vld [vmem:[%s7 + $0x18] sm:$0xf]
        %v1206 = vld [vmem:[%s7 + $0x1c] sm:$0xf]
        %v1215 = vunpack.c.l.b16 %v1199
        %v1216 = vunpack.c.l.b16 %v1200
        %v1217 = vunpack.c.l.b16 %v1201
        %v1218 = vunpack.c.l.b16 %v1202
        %v1219 = vunpack.c.l.b16 %v1203
        %v1220 = vunpack.c.l.b16 %v1204
        %v1221 = vunpack.c.l.b16 %v1205
        %v1222 = vunpack.c.l.b16 %v1206
        %v1223 = vpack.c.b16 %v1216, %v1215
        %v1224 = vpack.c.b16 %v1218, %v1217
        %v1225 = vpack.c.b16 %v1220, %v1219
        %v1226 = vpack.c.b16 %v1222, %v1221
        %1231 = vmatprep.subr.bf16.mxu0 0
        %1232 = vmatpush1.bf16.msra.mxu0 0
        %1233 = vmatprep.subr.bf16.mxu0 0
        %1234 = vmatpush1.bf16.msra.mxu0 0
        %1235 = vmatprep.subr.bf16.mxu0 0
        %1236 = vmatpush1.bf16.msra.mxu0 0
        %1237 = vmatprep.subr.bf16.mxu0 0
        %1238 = vmatpush1.bf16.msra.mxu0 0
        %1239 = vmatprep.subr.bf16.mxu0 0
        %1240 = vmatpush1.bf16.msra.mxu0 %v1226
        %1241 = vmatprep.subr.bf16.mxu0 0
        %1242 = vmatpush1.bf16.msra.mxu0 %v1225
        %1243 = vmatprep.subr.bf16.mxu0 0
        %1244 = vmatpush1.bf16.msra.mxu0 %v1224
        %1245 = vmatprep.subr.bf16.mxu0 0
        %1246 = vmatpush1.bf16.msra.mxu0 %v1223
        %1247 = vmatprep.subr.bf16.mxu0 0
        %1248 = vmatpush2.bf16.msra.mxu0 0
        %1249 = vmatprep.subr.bf16.mxu0 0
        %1250 = vmatpush2.bf16.msra.mxu0 0
        %1251 = vmatprep.subr.bf16.mxu0 0
        %1252 = vmatpush2.bf16.msra.mxu0 0
        %1253 = vmatprep.subr.bf16.mxu0 0
        %1254 = vmatpush2.bf16.msra.mxu0 0
        %1255 = vmatprep.subr.bf16.mxu0 0
        %1256 = vmatpush2.bf16.msra.mxu0 0
        %1257 = vmatprep.subr.bf16.mxu0 0
        %1258 = vmatpush2.bf16.msra.mxu0 0
        %1259 = vmatprep.subr.bf16.mxu0 0
        %1260 = vmatpush2.bf16.msra.mxu0 0
        %1261 = vmatprep.subr.bf16.mxu0 0
        %1262 = vmatpush2.bf16.msra.mxu0 0
        %1263 = vmatprep.mubr.bf16.mxu0 0
        %1264 = vmatmul.mubr.bf16.gmra.mxu0 %v1020
        %v1265 = vpop.f32.mrf.mxu0
        %v1266 = vadd.f32 0.0, %v1265
        %v1267 = vpop.f32.mrf.mxu0
        %v1268 = vpop.f32.mrf.mxu0
        %v1269 = vpop.f32.mrf.mxu0
        %1270 = vdwg.mxu0
        %v1271 = vld [vmem:[%s10] sm:$0xff]
        %v1272 = vld [vmem:[%s10 + $0x8] sm:$0xff]
        %v1273 = vmul.f32 %v1271, 1.442695
        %v1274 = vpow.pop %v1273
        %v1275 = vmul.f32 %v1272, 1.442695
        %v1276 = vpow.pop %v1275
        %v1277 = vsub.f32 0.0, %v1274
        %v1278 = vsub.f32 0.0, %v1276
        %1279 = vxpose.xlu0.b32.start [1/16] %v1194, 128
        %1280 = vxpose.xlu0.b32.cont [2/16] 0.0, 128
        %1281 = vxpose.xlu0.b32.cont [3/16] 0.0, 128
        %1282 = vxpose.xlu0.b32.cont [4/16] 0.0, 128
        %1283 = vxpose.xlu0.b32.cont [5/16] 0.0, 128
        %1284 = vxpose.xlu0.b32.cont [6/16] 0.0, 128
        %1285 = vxpose.xlu0.b32.cont [7/16] 0.0, 128
        %1286 = vxpose.xlu0.b32.cont [8/16] 0.0, 128
        %1287 = vxpose.xlu0.b32.cont [9/16] 0.0, 128
        %1288 = vxpose.xlu0.b32.cont [10/16] 0.0, 128
        %1289 = vxpose.xlu0.b32.cont [11/16] 0.0, 128
        %1290 = vxpose.xlu0.b32.cont [12/16] 0.0, 128
        %1291 = vxpose.xlu0.b32.cont [13/16] 0.0, 128
        %1292 = vxpose.xlu0.b32.cont [14/16] 0.0, 128
        %1293 = vxpose.xlu0.b32.cont [15/16] 0.0, 128
        %1294 = vxpose.xlu0.b32.end [16/16] 0.0, 128
        %v1295 = vpop.trf.xlu0
        %v1296 = vpop.trf.xlu0
        %v1297 = vpop.trf.xlu0
        %v1298 = vpop.trf.xlu0
        %v1299 = vpop.trf.xlu0
        %v1300 = vpop.trf.xlu0
        %v1301 = vpop.trf.xlu0
        %v1302 = vpop.trf.xlu0
        %v1303 = vpop.trf.xlu0
        %v1304 = vpop.trf.xlu0
        %v1305 = vpop.trf.xlu0
        %v1306 = vpop.trf.xlu0
        %v1307 = vpop.trf.xlu0
        %v1308 = vpop.trf.xlu0
        %v1309 = vpop.trf.xlu0
        %v1310 = vpop.trf.xlu0
        %v1311 = vmul.f32 %v1126, %v984
        %v1312 = vlaneseq
        %v1313 = vshrl.u32 %v1312, 7
        %v1314 = vsub.s32 0, %v1313
        %v1315 = vrot.slane %v1126, %v1314
        %v1316 = vmul.f32 %v1315, %v1277
        %v1317 = vmul.f32 %v1315, %v1278
        %v1318 = vmul.f32 %v1316, 1.442695
        %v1319 = vpow.pop %v1318
        %v1320 = vmul.f32 %v1317, 1.442695
        %v1321 = vpow.pop %v1320
        %v1322 = vmul.f32 %v1319, 0.0
        %v1323 = vmul.f32 %v1321, 0.0
        %1325 = vset.pattern.permute.xlu0 0
        %1326 = vperm.xlu0 %1325, %v1295
        %v1327 = vpop.permute.xlu0 %1326
        %1330 = vset.pattern.permute.xlu0 0
        %1331 = vperm.xlu0 %1330, %v1296
        %v1332 = vpop.permute.xlu0 %1331
        %v1334 = vlaneseq
        %v1335 = vshrl.u32 %v1334, 7
        %v1336 = vsub.s32 0, %v1335
        %v1337 = vrot.slane %v1311, %v1336
        %v1338 = vmul.f32 %v1327, %v1337
        %v1339 = vmul.f32 %v1332, %v1337
        %v1340 = vadd.f32 %v1322, %v1338
        %v1341 = vadd.f32 %v1323, %v1339
        %vm1342 = vcmask 130048
        %v1344 = vsel %vm1342, %v1266, 0
        %1346 = vmatprep.subr.mxu0 0.0
        %1347 = vmatpush1.msra.mxu0 0.0
        %1348 = vmatprep.subr.mxu0 0.0
        %1349 = vmatpush1.msra.mxu0 0.0
        %1350 = vmatprep.subr.mxu0 0.0
        %1351 = vmatpush1.msra.mxu0 0.0
        %1352 = vmatprep.subr.mxu0 0.0
        %1353 = vmatpush1.msra.mxu0 0.0
        %1354 = vmatprep.subr.mxu0 0.0
        %1355 = vmatpush1.msra.mxu0 0.0
        %1356 = vmatprep.subr.mxu0 0.0
        %1357 = vmatpush1.msra.mxu0 0.0
        %1358 = vmatprep.subr.mxu0 0.0
        %1359 = vmatpush1.msra.mxu0 0.0
        %1360 = vmatprep.subr.mxu0 0.0
        %1361 = vmatpush1.msra.mxu0 0.0
        %1362 = vmatprep.subr.mxu0 0.0
        %1363 = vmatpush1.msra.mxu0 0.0
        %1364 = vmatprep.subr.mxu0 0.0
        %1365 = vmatpush1.msra.mxu0 0.0
        %1366 = vmatprep.subr.mxu0 0.0
        %1367 = vmatpush1.msra.mxu0 0.0
        %1368 = vmatprep.subr.mxu0 0.0
        %1369 = vmatpush1.msra.mxu0 0.0
        %1370 = vmatprep.subr.mxu0 0.0
        %1371 = vmatpush1.msra.mxu0 0.0
        %1372 = vmatprep.subr.mxu0 0.0
        %1373 = vmatpush1.msra.mxu0 0.0
        %1374 = vmatprep.subr.mxu0 0.0
        %1375 = vmatpush1.msra.mxu0 %v1341
        %1376 = vmatprep.subr.mxu0 0.0
        %1377 = vmatpush1.msra.mxu0 %v1340
        %1378 = vmatprep.subr.mxu0 0.0
        %1379 = vmatpush2.msra.mxu0 0.0
        %1380 = vmatprep.subr.mxu0 0.0
        %1381 = vmatpush2.msra.mxu0 0.0
        %1382 = vmatprep.subr.mxu0 0.0
        %1383 = vmatpush2.msra.mxu0 0.0
        %1384 = vmatprep.subr.mxu0 0.0
        %1385 = vmatpush2.msra.mxu0 0.0
        %1386 = vmatprep.subr.mxu0 0.0
        %1387 = vmatpush2.msra.mxu0 0.0
        %1388 = vmatprep.subr.mxu0 0.0
        %1389 = vmatpush2.msra.mxu0 0.0
        %1390 = vmatprep.subr.mxu0 0.0
        %1391 = vmatpush2.msra.mxu0 0.0
        %1392 = vmatprep.subr.mxu0 0.0
        %1393 = vmatpush2.msra.mxu0 0.0
        %1394 = vmatprep.subr.mxu0 0.0
        %1395 = vmatpush2.msra.mxu0 0.0
        %1396 = vmatprep.subr.mxu0 0.0
        %1397 = vmatpush2.msra.mxu0 0.0
        %1398 = vmatprep.subr.mxu0 0.0
        %1399 = vmatpush2.msra.mxu0 0.0
        %1400 = vmatprep.subr.mxu0 0.0
        %1401 = vmatpush2.msra.mxu0 0.0
        %1402 = vmatprep.subr.mxu0 0.0
        %1403 = vmatpush2.msra.mxu0 0.0
        %1404 = vmatprep.subr.mxu0 0.0
        %1405 = vmatpush2.msra.mxu0 0.0
        %1406 = vmatprep.subr.mxu0 0.0
        %1407 = vmatpush2.msra.mxu0 0.0
        %1408 = vmatprep.subr.mxu0 0.0
        %1409 = vmatpush2.msra.mxu0 0.0
        %1410 = vmatprep.mubr.f32.mxu0 0.0
        %1411 = vmatmul.mubr.f32.gmra.mxu0 %v1344
        %v1412 = vpop.f32.mrf.mxu0
        %v1413 = vadd.f32 0.0, %v1412
        %v1414 = vpop.f32.mrf.mxu0
        %1415 = vdwg.mxu0
        %v1416 = vlaneseq
        %v1417 = vshrl.u32 %v1416, 7
        %v1418 = vsub.s32 1, %v1417
        %v1419 = vrot.slane %v1126, %v1418
        %v1420 = vmul.f32 %v1419, %v1277
        %v1421 = vmul.f32 %v1419, %v1278
        %v1422 = vmul.f32 %v1420, 1.442695
        %v1423 = vpow.pop %v1422
        %v1424 = vmul.f32 %v1421, 1.442695
        %v1425 = vpow.pop %v1424
        %v1426 = vmul.f32 %v1423, %v1340
        %v1427 = vmul.f32 %v1425, %v1341
        %1428 = vset.pattern.permute.xlu0 1
        %1429 = vperm.xlu0 %1428, %v1295
        %v1430 = vpop.permute.xlu0 %1429
        %1432 = vset.pattern.permute.xlu0 1
        %1433 = vperm.xlu0 %1432, %v1296
        %v1434 = vpop.permute.xlu0 %1433
        %v1436 = vlaneseq
        %v1437 = vshrl.u32 %v1436, 7
        %v1438 = vsub.s32 1, %v1437
        %v1439 = vrot.slane %v1311, %v1438
        %v1440 = vmul.f32 %v1430, %v1439
        %v1441 = vmul.f32 %v1434, %v1439
        %v1442 = vadd.f32 %v1426, %v1440
        %v1443 = vadd.f32 %v1427, %v1441
        %v1444 = vrot.slane %v1266, 1
        %v1445 = vsel %vm1342, %v1444, 0
        %1447 = vmatprep.subr.mxu0 0.0
        %1448 = vmatpush1.msra.mxu0 0.0
        %1449 = vmatprep.subr.mxu0 0.0
        %1450 = vmatpush1.msra.mxu0 0.0
        %1451 = vmatprep.subr.mxu0 0.0
        %1452 = vmatpush1.msra.mxu0 0.0
        %1453 = vmatprep.subr.mxu0 0.0
        %1454 = vmatpush1.msra.mxu0 0.0
        %1455 = vmatprep.subr.mxu0 0.0
        %1456 = vmatpush1.msra.mxu0 0.0
        %1457 = vmatprep.subr.mxu0 0.0
        %1458 = vmatpush1.msra.mxu0 0.0
        %1459 = vmatprep.subr.mxu0 0.0
        %1460 = vmatpush1.msra.mxu0 0.0
        %1461 = vmatprep.subr.mxu0 0.0
        %1462 = vmatpush1.msra.mxu0 0.0
        %1463 = vmatprep.subr.mxu0 0.0
        %1464 = vmatpush1.msra.mxu0 0.0
        %1465 = vmatprep.subr.mxu0 0.0
        %1466 = vmatpush1.msra.mxu0 0.0
        %1467 = vmatprep.subr.mxu0 0.0
        %1468 = vmatpush1.msra.mxu0 0.0
        %1469 = vmatprep.subr.mxu0 0.0
        %1470 = vmatpush1.msra.mxu0 0.0
        %1471 = vmatprep.subr.mxu0 0.0
        %1472 = vmatpush1.msra.mxu0 0.0
        %1473 = vmatprep.subr.mxu0 0.0
        %1474 = vmatpush1.msra.mxu0 0.0
        %1475 = vmatprep.subr.mxu0 0.0
        %1476 = vmatpush1.msra.mxu0 %v1443
        %1477 = vmatprep.subr.mxu0 0.0
        %1478 = vmatpush1.msra.mxu0 %v1442
        %1479 = vmatprep.subr.mxu0 0.0
        %1480 = vmatpush2.msra.mxu0 0.0
        %1481 = vmatprep.subr.mxu0 0.0
        %1482 = vmatpush2.msra.mxu0 0.0
        %1483 = vmatprep.subr.mxu0 0.0
        %1484 = vmatpush2.msra.mxu0 0.0
        %1485 = vmatprep.subr.mxu0 0.0
        %1486 = vmatpush2.msra.mxu0 0.0
        %1487 = vmatprep.subr.mxu0 0.0
        %1488 = vmatpush2.msra.mxu0 0.0
        %1489 = vmatprep.subr.mxu0 0.0
        %1490 = vmatpush2.msra.mxu0 0.0
        %1491 = vmatprep.subr.mxu0 0.0
        %1492 = vmatpush2.msra.mxu0 0.0
        %1493 = vmatprep.subr.mxu0 0.0
        %1494 = vmatpush2.msra.mxu0 0.0
        %1495 = vmatprep.subr.mxu0 0.0
        %1496 = vmatpush2.msra.mxu0 0.0
        %1497 = vmatprep.subr.mxu0 0.0
        %1498 = vmatpush2.msra.mxu0 0.0
        %1499 = vmatprep.subr.mxu0 0.0
        %1500 = vmatpush2.msra.mxu0 0.0
        %1501 = vmatprep.subr.mxu0 0.0
        %1502 = vmatpush2.msra.mxu0 0.0
        %1503 = vmatprep.subr.mxu0 0.0
        %1504 = vmatpush2.msra.mxu0 0.0
        %1505 = vmatprep.subr.mxu0 0.0
        %1506 = vmatpush2.msra.mxu0 0.0
        %1507 = vmatprep.subr.mxu0 0.0
        %1508 = vmatpush2.msra.mxu0 0.0
        %1509 = vmatprep.subr.mxu0 0.0
        %1510 = vmatpush2.msra.mxu0 0.0
        %1511 = vmatprep.mubr.f32.mxu0 0.0
        %1512 = vmatmul.mubr.f32.gmra.mxu0 %v1445
        %v1513 = vpop.f32.mrf.mxu0
        %v1514 = vadd.f32 0.0, %v1513
        %v1515 = vpop.f32.mrf.mxu0
        %1516 = vdwg.mxu0
        %v1517 = vlaneseq
        %v1518 = vshrl.u32 %v1517, 7
        %v1519 = vsub.s32 2, %v1518
        %v1520 = vrot.slane %v1126, %v1519
        %v1521 = vmul.f32 %v1520, %v1277
        %v1522 = vmul.f32 %v1520, %v1278
        %v1523 = vmul.f32 %v1521, 1.442695
        %v1524 = vpow.pop %v1523
        %v1525 = vmul.f32 %v1522, 1.442695
        %v1526 = vpow.pop %v1525
        %v1527 = vmul.f32 %v1524, %v1442
        %v1528 = vmul.f32 %v1526, %v1443
        %1529 = vset.pattern.permute.xlu0 2
        %1530 = vperm.xlu0 %1529, %v1295
        %v1531 = vpop.permute.xlu0 %1530
        %1533 = vset.pattern.permute.xlu0 2
        %1534 = vperm.xlu0 %1533, %v1296
        %v1535 = vpop.permute.xlu0 %1534
        %v1537 = vlaneseq
        %v1538 = vshrl.u32 %v1537, 7
        %v1539 = vsub.s32 2, %v1538
        %v1540 = vrot.slane %v1311, %v1539
        %v1541 = vmul.f32 %v1531, %v1540
        %v1542 = vmul.f32 %v1535, %v1540
        %v1543 = vadd.f32 %v1527, %v1541
        %v1544 = vadd.f32 %v1528, %v1542
        %v1545 = vrot.slane %v1266, 2
        %v1546 = vsel %vm1342, %v1545, 0
        %1548 = vmatprep.subr.mxu0 0.0
        %1549 = vmatpush1.msra.mxu0 0.0
        %1550 = vmatprep.subr.mxu0 0.0
        %1551 = vmatpush1.msra.mxu0 0.0
        %1552 = vmatprep.subr.mxu0 0.0
        %1553 = vmatpush1.msra.mxu0 0.0
        %1554 = vmatprep.subr.mxu0 0.0
        %1555 = vmatpush1.msra.mxu0 0.0
        %1556 = vmatprep.subr.mxu0 0.0
        %1557 = vmatpush1.msra.mxu0 0.0
        %1558 = vmatprep.subr.mxu0 0.0
        %1559 = vmatpush1.msra.mxu0 0.0
        %1560 = vmatprep.subr.mxu0 0.0
        %1561 = vmatpush1.msra.mxu0 0.0
        %1562 = vmatprep.subr.mxu0 0.0
        %1563 = vmatpush1.msra.mxu0 0.0
        %1564 = vmatprep.subr.mxu0 0.0
        %1565 = vmatpush1.msra.mxu0 0.0
        %1566 = vmatprep.subr.mxu0 0.0
        %1567 = vmatpush1.msra.mxu0 0.0
        %1568 = vmatprep.subr.mxu0 0.0
        %1569 = vmatpush1.msra.mxu0 0.0
        %1570 = vmatprep.subr.mxu0 0.0
        %1571 = vmatpush1.msra.mxu0 0.0
        %1572 = vmatprep.subr.mxu0 0.0
        %1573 = vmatpush1.msra.mxu0 0.0
        %1574 = vmatprep.subr.mxu0 0.0
        %1575 = vmatpush1.msra.mxu0 0.0
        %1576 = vmatprep.subr.mxu0 0.0
        %1577 = vmatpush1.msra.mxu0 %v1544
        %1578 = vmatprep.subr.mxu0 0.0
        %1579 = vmatpush1.msra.mxu0 %v1543
        %1580 = vmatprep.subr.mxu0 0.0
        %1581 = vmatpush2.msra.mxu0 0.0
        %1582 = vmatprep.subr.mxu0 0.0
        %1583 = vmatpush2.msra.mxu0 0.0
        %1584 = vmatprep.subr.mxu0 0.0
        %1585 = vmatpush2.msra.mxu0 0.0
        %1586 = vmatprep.subr.mxu0 0.0
        %1587 = vmatpush2.msra.mxu0 0.0
        %1588 = vmatprep.subr.mxu0 0.0
        %1589 = vmatpush2.msra.mxu0 0.0
        %1590 = vmatprep.subr.mxu0 0.0
        %1591 = vmatpush2.msra.mxu0 0.0
        %1592 = vmatprep.subr.mxu0 0.0
        %1593 = vmatpush2.msra.mxu0 0.0
        %1594 = vmatprep.subr.mxu0 0.0
        %1595 = vmatpush2.msra.mxu0 0.0
        %1596 = vmatprep.subr.mxu0 0.0
        %1597 = vmatpush2.msra.mxu0 0.0
        %1598 = vmatprep.subr.mxu0 0.0
        %1599 = vmatpush2.msra.mxu0 0.0
        %1600 = vmatprep.subr.mxu0 0.0
        %1601 = vmatpush2.msra.mxu0 0.0
        %1602 = vmatprep.subr.mxu0 0.0
        %1603 = vmatpush2.msra.mxu0 0.0
        %1604 = vmatprep.subr.mxu0 0.0
        %1605 = vmatpush2.msra.mxu0 0.0
        %1606 = vmatprep.subr.mxu0 0.0
        %1607 = vmatpush2.msra.mxu0 0.0
        %1608 = vmatprep.subr.mxu0 0.0
        %1609 = vmatpush2.msra.mxu0 0.0
        %1610 = vmatprep.subr.mxu0 0.0
        %1611 = vmatpush2.msra.mxu0 0.0
        %1612 = vmatprep.mubr.f32.mxu0 0.0
        %1613 = vmatmul.mubr.f32.gmra.mxu0 %v1546
        %v1614 = vpop.f32.mrf.mxu0
        %v1615 = vadd.f32 0.0, %v1614
        %v1616 = vpop.f32.mrf.mxu0
        %1617 = vdwg.mxu0
        %v1618 = vlaneseq
        %v1619 = vshrl.u32 %v1618, 7
        %v1620 = vsub.s32 3, %v1619
        %v1621 = vrot.slane %v1126, %v1620
        %v1622 = vmul.f32 %v1621, %v1277
        %v1623 = vmul.f32 %v1621, %v1278
        %v1624 = vmul.f32 %v1622, 1.442695
        %v1625 = vpow.pop %v1624
        %v1626 = vmul.f32 %v1623, 1.442695
        %v1627 = vpow.pop %v1626
        %v1628 = vmul.f32 %v1625, %v1543
        %v1629 = vmul.f32 %v1627, %v1544
        %1630 = vset.pattern.permute.xlu0 3
        %1631 = vperm.xlu0 %1630, %v1295
        %v1632 = vpop.permute.xlu0 %1631
        %1634 = vset.pattern.permute.xlu0 3
        %1635 = vperm.xlu0 %1634, %v1296
        %v1636 = vpop.permute.xlu0 %1635
        %v1638 = vlaneseq
        %v1639 = vshrl.u32 %v1638, 7
        %v1640 = vsub.s32 3, %v1639
        %v1641 = vrot.slane %v1311, %v1640
        %v1642 = vmul.f32 %v1632, %v1641
        %v1643 = vmul.f32 %v1636, %v1641
        %v1644 = vadd.f32 %v1628, %v1642
        %v1645 = vadd.f32 %v1629, %v1643
        %v1646 = vrot.slane %v1266, 3
        %v1647 = vsel %vm1342, %v1646, 0
        %1649 = vmatprep.subr.mxu0 0.0
        %1650 = vmatpush1.msra.mxu0 0.0
        %1651 = vmatprep.subr.mxu0 0.0
        %1652 = vmatpush1.msra.mxu0 0.0
        %1653 = vmatprep.subr.mxu0 0.0
        %1654 = vmatpush1.msra.mxu0 0.0
        %1655 = vmatprep.subr.mxu0 0.0
        %1656 = vmatpush1.msra.mxu0 0.0
        %1657 = vmatprep.subr.mxu0 0.0
        %1658 = vmatpush1.msra.mxu0 0.0
        %1659 = vmatprep.subr.mxu0 0.0
        %1660 = vmatpush1.msra.mxu0 0.0
        %1661 = vmatprep.subr.mxu0 0.0
        %1662 = vmatpush1.msra.mxu0 0.0
        %1663 = vmatprep.subr.mxu0 0.0
        %1664 = vmatpush1.msra.mxu0 0.0
        %1665 = vmatprep.subr.mxu0 0.0
        %1666 = vmatpush1.msra.mxu0 0.0
        %1667 = vmatprep.subr.mxu0 0.0
        %1668 = vmatpush1.msra.mxu0 0.0
        %1669 = vmatprep.subr.mxu0 0.0
        %1670 = vmatpush1.msra.mxu0 0.0
        %1671 = vmatprep.subr.mxu0 0.0
        %1672 = vmatpush1.msra.mxu0 0.0
        %1673 = vmatprep.subr.mxu0 0.0
        %1674 = vmatpush1.msra.mxu0 0.0
        %1675 = vmatprep.subr.mxu0 0.0
        %1676 = vmatpush1.msra.mxu0 0.0
        %1677 = vmatprep.subr.mxu0 0.0
        %1678 = vmatpush1.msra.mxu0 %v1645
        %1679 = vmatprep.subr.mxu0 0.0
        %1680 = vmatpush1.msra.mxu0 %v1644
        %1681 = vmatprep.subr.mxu0 0.0
        %1682 = vmatpush2.msra.mxu0 0.0
        %1683 = vmatprep.subr.mxu0 0.0
        %1684 = vmatpush2.msra.mxu0 0.0
        %1685 = vmatprep.subr.mxu0 0.0
        %1686 = vmatpush2.msra.mxu0 0.0
        %1687 = vmatprep.subr.mxu0 0.0
        %1688 = vmatpush2.msra.mxu0 0.0
        %1689 = vmatprep.subr.mxu0 0.0
        %1690 = vmatpush2.msra.mxu0 0.0
        %1691 = vmatprep.subr.mxu0 0.0
        %1692 = vmatpush2.msra.mxu0 0.0
        %1693 = vmatprep.subr.mxu0 0.0
        %1694 = vmatpush2.msra.mxu0 0.0
        %1695 = vmatprep.subr.mxu0 0.0
        %1696 = vmatpush2.msra.mxu0 0.0
        %1697 = vmatprep.subr.mxu0 0.0
        %1698 = vmatpush2.msra.mxu0 0.0
        %1699 = vmatprep.subr.mxu0 0.0
        %1700 = vmatpush2.msra.mxu0 0.0
        %1701 = vmatprep.subr.mxu0 0.0
        %1702 = vmatpush2.msra.mxu0 0.0
        %1703 = vmatprep.subr.mxu0 0.0
        %1704 = vmatpush2.msra.mxu0 0.0
        %1705 = vmatprep.subr.mxu0 0.0
        %1706 = vmatpush2.msra.mxu0 0.0
        %1707 = vmatprep.subr.mxu0 0.0
        %1708 = vmatpush2.msra.mxu0 0.0
        %1709 = vmatprep.subr.mxu0 0.0
        %1710 = vmatpush2.msra.mxu0 0.0
        %1711 = vmatprep.subr.mxu0 0.0
        %1712 = vmatpush2.msra.mxu0 0.0
        %1713 = vmatprep.mubr.f32.mxu0 0.0
        %1714 = vmatmul.mubr.f32.gmra.mxu0 %v1647
        %v1715 = vpop.f32.mrf.mxu0
        %v1716 = vadd.f32 0.0, %v1715
        %v1717 = vpop.f32.mrf.mxu0
        %1718 = vdwg.mxu0
        %v1719 = vlaneseq
        %v1720 = vshrl.u32 %v1719, 7
        %v1721 = vsub.s32 4, %v1720
        %v1722 = vrot.slane %v1126, %v1721
        %v1723 = vmul.f32 %v1722, %v1277
        %v1724 = vmul.f32 %v1722, %v1278
        %v1725 = vmul.f32 %v1723, 1.442695
        %v1726 = vpow.pop %v1725
        %v1727 = vmul.f32 %v1724, 1.442695
        %v1728 = vpow.pop %v1727
        %v1729 = vmul.f32 %v1726, %v1644
        %v1730 = vmul.f32 %v1728, %v1645
        %1731 = vset.pattern.permute.xlu0 4
        %1732 = vperm.xlu0 %1731, %v1295
        %v1733 = vpop.permute.xlu0 %1732
        %1735 = vset.pattern.permute.xlu0 4
        %1736 = vperm.xlu0 %1735, %v1296
        %v1737 = vpop.permute.xlu0 %1736
        %v1739 = vlaneseq
        %v1740 = vshrl.u32 %v1739, 7
        %v1741 = vsub.s32 4, %v1740
        %v1742 = vrot.slane %v1311, %v1741
        %v1743 = vmul.f32 %v1733, %v1742
        %v1744 = vmul.f32 %v1737, %v1742
        %v1745 = vadd.f32 %v1729, %v1743
        %v1746 = vadd.f32 %v1730, %v1744
        %v1747 = vrot.slane %v1266, 4
        %v1748 = vsel %vm1342, %v1747, 0
        %1750 = vmatprep.subr.mxu0 0.0
        %1751 = vmatpush1.msra.mxu0 0.0
        %1752 = vmatprep.subr.mxu0 0.0
        %1753 = vmatpush1.msra.mxu0 0.0
        %1754 = vmatprep.subr.mxu0 0.0
        %1755 = vmatpush1.msra.mxu0 0.0
        %1756 = vmatprep.subr.mxu0 0.0
        %1757 = vmatpush1.msra.mxu0 0.0
        %1758 = vmatprep.subr.mxu0 0.0
        %1759 = vmatpush1.msra.mxu0 0.0
        %1760 = vmatprep.subr.mxu0 0.0
        %1761 = vmatpush1.msra.mxu0 0.0
        %1762 = vmatprep.subr.mxu0 0.0
        %1763 = vmatpush1.msra.mxu0 0.0
        %1764 = vmatprep.subr.mxu0 0.0
        %1765 = vmatpush1.msra.mxu0 0.0
        %1766 = vmatprep.subr.mxu0 0.0
        %1767 = vmatpush1.msra.mxu0 0.0
        %1768 = vmatprep.subr.mxu0 0.0
        %1769 = vmatpush1.msra.mxu0 0.0
        %1770 = vmatprep.subr.mxu0 0.0
        %1771 = vmatpush1.msra.mxu0 0.0
        %1772 = vmatprep.subr.mxu0 0.0
        %1773 = vmatpush1.msra.mxu0 0.0
        %1774 = vmatprep.subr.mxu0 0.0
        %1775 = vmatpush1.msra.mxu0 0.0
        %1776 = vmatprep.subr.mxu0 0.0
        %1777 = vmatpush1.msra.mxu0 0.0
        %1778 = vmatprep.subr.mxu0 0.0
        %1779 = vmatpush1.msra.mxu0 %v1746
        %1780 = vmatprep.subr.mxu0 0.0
        %1781 = vmatpush1.msra.mxu0 %v1745
        %1782 = vmatprep.subr.mxu0 0.0
        %1783 = vmatpush2.msra.mxu0 0.0
        %1784 = vmatprep.subr.mxu0 0.0
        %1785 = vmatpush2.msra.mxu0 0.0
        %1786 = vmatprep.subr.mxu0 0.0
        %1787 = vmatpush2.msra.mxu0 0.0
        %1788 = vmatprep.subr.mxu0 0.0
        %1789 = vmatpush2.msra.mxu0 0.0
        %1790 = vmatprep.subr.mxu0 0.0
        %1791 = vmatpush2.msra.mxu0 0.0
        %1792 = vmatprep.subr.mxu0 0.0
        %1793 = vmatpush2.msra.mxu0 0.0
        %1794 = vmatprep.subr.mxu0 0.0
        %1795 = vmatpush2.msra.mxu0 0.0
        %1796 = vmatprep.subr.mxu0 0.0
        %1797 = vmatpush2.msra.mxu0 0.0
        %1798 = vmatprep.subr.mxu0 0.0
        %1799 = vmatpush2.msra.mxu0 0.0
        %1800 = vmatprep.subr.mxu0 0.0
        %1801 = vmatpush2.msra.mxu0 0.0
        %1802 = vmatprep.subr.mxu0 0.0
        %1803 = vmatpush2.msra.mxu0 0.0
        %1804 = vmatprep.subr.mxu0 0.0
        %1805 = vmatpush2.msra.mxu0 0.0
        %1806 = vmatprep.subr.mxu0 0.0
        %1807 = vmatpush2.msra.mxu0 0.0
        %1808 = vmatprep.subr.mxu0 0.0
        %1809 = vmatpush2.msra.mxu0 0.0
        %1810 = vmatprep.subr.mxu0 0.0
        %1811 = vmatpush2.msra.mxu0 0.0
        %1812 = vmatprep.subr.mxu0 0.0
        %1813 = vmatpush2.msra.mxu0 0.0
        %1814 = vmatprep.mubr.f32.mxu0 0.0
        %1815 = vmatmul.mubr.f32.gmra.mxu0 %v1748
        %v1816 = vpop.f32.mrf.mxu0
        %v1817 = vadd.f32 0.0, %v1816
        %v1818 = vpop.f32.mrf.mxu0
        %1819 = vdwg.mxu0
        %v1820 = vlaneseq
        %v1821 = vshrl.u32 %v1820, 7
        %v1822 = vsub.s32 5, %v1821
        %v1823 = vrot.slane %v1126, %v1822
        %v1824 = vmul.f32 %v1823, %v1277
        %v1825 = vmul.f32 %v1823, %v1278
        %v1826 = vmul.f32 %v1824, 1.442695
        %v1827 = vpow.pop %v1826
        %v1828 = vmul.f32 %v1825, 1.442695
        %v1829 = vpow.pop %v1828
        %v1830 = vmul.f32 %v1827, %v1745
        %v1831 = vmul.f32 %v1829, %v1746
        %1832 = vset.pattern.permute.xlu0 5
        %1833 = vperm.xlu0 %1832, %v1295
        %v1834 = vpop.permute.xlu0 %1833
        %1836 = vset.pattern.permute.xlu0 5
        %1837 = vperm.xlu0 %1836, %v1296
        %v1838 = vpop.permute.xlu0 %1837
        %v1840 = vlaneseq
        %v1841 = vshrl.u32 %v1840, 7
        %v1842 = vsub.s32 5, %v1841
        %v1843 = vrot.slane %v1311, %v1842
        %v1844 = vmul.f32 %v1834, %v1843
        %v1845 = vmul.f32 %v1838, %v1843
        %v1846 = vadd.f32 %v1830, %v1844
        %v1847 = vadd.f32 %v1831, %v1845
        %v1848 = vrot.slane %v1266, 5
        %v1849 = vsel %vm1342, %v1848, 0
        %1851 = vmatprep.subr.mxu0 0.0
        %1852 = vmatpush1.msra.mxu0 0.0
        %1853 = vmatprep.subr.mxu0 0.0
        %1854 = vmatpush1.msra.mxu0 0.0
        %1855 = vmatprep.subr.mxu0 0.0
        %1856 = vmatpush1.msra.mxu0 0.0
        %1857 = vmatprep.subr.mxu0 0.0
        %1858 = vmatpush1.msra.mxu0 0.0
        %1859 = vmatprep.subr.mxu0 0.0
        %1860 = vmatpush1.msra.mxu0 0.0
        %1861 = vmatprep.subr.mxu0 0.0
        %1862 = vmatpush1.msra.mxu0 0.0
        %1863 = vmatprep.subr.mxu0 0.0
        %1864 = vmatpush1.msra.mxu0 0.0
        %1865 = vmatprep.subr.mxu0 0.0
        %1866 = vmatpush1.msra.mxu0 0.0
        %1867 = vmatprep.subr.mxu0 0.0
        %1868 = vmatpush1.msra.mxu0 0.0
        %1869 = vmatprep.subr.mxu0 0.0
        %1870 = vmatpush1.msra.mxu0 0.0
        %1871 = vmatprep.subr.mxu0 0.0
        %1872 = vmatpush1.msra.mxu0 0.0
        %1873 = vmatprep.subr.mxu0 0.0
        %1874 = vmatpush1.msra.mxu0 0.0
        %1875 = vmatprep.subr.mxu0 0.0
        %1876 = vmatpush1.msra.mxu0 0.0
        %1877 = vmatprep.subr.mxu0 0.0
        %1878 = vmatpush1.msra.mxu0 0.0
        %1879 = vmatprep.subr.mxu0 0.0
        %1880 = vmatpush1.msra.mxu0 %v1847
        %1881 = vmatprep.subr.mxu0 0.0
        %1882 = vmatpush1.msra.mxu0 %v1846
        %1883 = vmatprep.subr.mxu0 0.0
        %1884 = vmatpush2.msra.mxu0 0.0
        %1885 = vmatprep.subr.mxu0 0.0
        %1886 = vmatpush2.msra.mxu0 0.0
        %1887 = vmatprep.subr.mxu0 0.0
        %1888 = vmatpush2.msra.mxu0 0.0
        %1889 = vmatprep.subr.mxu0 0.0
        %1890 = vmatpush2.msra.mxu0 0.0
        %1891 = vmatprep.subr.mxu0 0.0
        %1892 = vmatpush2.msra.mxu0 0.0
        %1893 = vmatprep.subr.mxu0 0.0
        %1894 = vmatpush2.msra.mxu0 0.0
        %1895 = vmatprep.subr.mxu0 0.0
        %1896 = vmatpush2.msra.mxu0 0.0
        %1897 = vmatprep.subr.mxu0 0.0
        %1898 = vmatpush2.msra.mxu0 0.0
        %1899 = vmatprep.subr.mxu0 0.0
        %1900 = vmatpush2.msra.mxu0 0.0
        %1901 = vmatprep.subr.mxu0 0.0
        %1902 = vmatpush2.msra.mxu0 0.0
        %1903 = vmatprep.subr.mxu0 0.0
        %1904 = vmatpush2.msra.mxu0 0.0
        %1905 = vmatprep.subr.mxu0 0.0
        %1906 = vmatpush2.msra.mxu0 0.0
        %1907 = vmatprep.subr.mxu0 0.0
        %1908 = vmatpush2.msra.mxu0 0.0
        %1909 = vmatprep.subr.mxu0 0.0
        %1910 = vmatpush2.msra.mxu0 0.0
        %1911 = vmatprep.subr.mxu0 0.0
        %1912 = vmatpush2.msra.mxu0 0.0
        %1913 = vmatprep.subr.mxu0 0.0
        %1914 = vmatpush2.msra.mxu0 0.0
        %1915 = vmatprep.mubr.f32.mxu0 0.0
        %1916 = vmatmul.mubr.f32.gmra.mxu0 %v1849
        %v1917 = vpop.f32.mrf.mxu0
        %v1918 = vadd.f32 0.0, %v1917
        %v1919 = vpop.f32.mrf.mxu0
        %1920 = vdwg.mxu0
        %v1921 = vlaneseq
        %v1922 = vshrl.u32 %v1921, 7
        %v1923 = vsub.s32 6, %v1922
        %v1924 = vrot.slane %v1126, %v1923
        %v1925 = vmul.f32 %v1924, %v1277
        %v1926 = vmul.f32 %v1924, %v1278
        %v1927 = vmul.f32 %v1925, 1.442695
        %v1928 = vpow.pop %v1927
        %v1929 = vmul.f32 %v1926, 1.442695
        %v1930 = vpow.pop %v1929
        %v1931 = vmul.f32 %v1928, %v1846
        %v1932 = vmul.f32 %v1930, %v1847
        %1933 = vset.pattern.permute.xlu0 6
        %1934 = vperm.xlu0 %1933, %v1295
        %v1935 = vpop.permute.xlu0 %1934
        %1937 = vset.pattern.permute.xlu0 6
        %1938 = vperm.xlu0 %1937, %v1296
        %v1939 = vpop.permute.xlu0 %1938
        %v1941 = vlaneseq
        %v1942 = vshrl.u32 %v1941, 7
        %v1943 = vsub.s32 6, %v1942
        %v1944 = vrot.slane %v1311, %v1943
        %v1945 = vmul.f32 %v1935, %v1944
        %v1946 = vmul.f32 %v1939, %v1944
        %v1947 = vadd.f32 %v1931, %v1945
        %v1948 = vadd.f32 %v1932, %v1946
        %v1949 = vrot.slane %v1266, 6
        %v1950 = vsel %vm1342, %v1949, 0
        %1952 = vmatprep.subr.mxu0 0.0
        %1953 = vmatpush1.msra.mxu0 0.0
        %1954 = vmatprep.subr.mxu0 0.0
        %1955 = vmatpush1.msra.mxu0 0.0
        %1956 = vmatprep.subr.mxu0 0.0
        %1957 = vmatpush1.msra.mxu0 0.0
        %1958 = vmatprep.subr.mxu0 0.0
        %1959 = vmatpush1.msra.mxu0 0.0
        %1960 = vmatprep.subr.mxu0 0.0
        %1961 = vmatpush1.msra.mxu0 0.0
        %1962 = vmatprep.subr.mxu0 0.0
        %1963 = vmatpush1.msra.mxu0 0.0
        %1964 = vmatprep.subr.mxu0 0.0
        %1965 = vmatpush1.msra.mxu0 0.0
        %1966 = vmatprep.subr.mxu0 0.0
        %1967 = vmatpush1.msra.mxu0 0.0
        %1968 = vmatprep.subr.mxu0 0.0
        %1969 = vmatpush1.msra.mxu0 0.0
        %1970 = vmatprep.subr.mxu0 0.0
        %1971 = vmatpush1.msra.mxu0 0.0
        %1972 = vmatprep.subr.mxu0 0.0
        %1973 = vmatpush1.msra.mxu0 0.0
        %1974 = vmatprep.subr.mxu0 0.0
        %1975 = vmatpush1.msra.mxu0 0.0
        %1976 = vmatprep.subr.mxu0 0.0
        %1977 = vmatpush1.msra.mxu0 0.0
        %1978 = vmatprep.subr.mxu0 0.0
        %1979 = vmatpush1.msra.mxu0 0.0
        %1980 = vmatprep.subr.mxu0 0.0
        %1981 = vmatpush1.msra.mxu0 %v1948
        %1982 = vmatprep.subr.mxu0 0.0
        %1983 = vmatpush1.msra.mxu0 %v1947
        %1984 = vmatprep.subr.mxu0 0.0
        %1985 = vmatpush2.msra.mxu0 0.0
        %1986 = vmatprep.subr.mxu0 0.0
        %1987 = vmatpush2.msra.mxu0 0.0
        %1988 = vmatprep.subr.mxu0 0.0
        %1989 = vmatpush2.msra.mxu0 0.0
        %1990 = vmatprep.subr.mxu0 0.0
        %1991 = vmatpush2.msra.mxu0 0.0
        %1992 = vmatprep.subr.mxu0 0.0
        %1993 = vmatpush2.msra.mxu0 0.0
        %1994 = vmatprep.subr.mxu0 0.0
        %1995 = vmatpush2.msra.mxu0 0.0
        %1996 = vmatprep.subr.mxu0 0.0
        %1997 = vmatpush2.msra.mxu0 0.0
        %1998 = vmatprep.subr.mxu0 0.0
        %1999 = vmatpush2.msra.mxu0 0.0
        %2000 = vmatprep.subr.mxu0 0.0
        %2001 = vmatpush2.msra.mxu0 0.0
        %2002 = vmatprep.subr.mxu0 0.0
        %2003 = vmatpush2.msra.mxu0 0.0
        %2004 = vmatprep.subr.mxu0 0.0
        %2005 = vmatpush2.msra.mxu0 0.0
        %2006 = vmatprep.subr.mxu0 0.0
        %2007 = vmatpush2.msra.mxu0 0.0
        %2008 = vmatprep.subr.mxu0 0.0
        %2009 = vmatpush2.msra.mxu0 0.0
        %2010 = vmatprep.subr.mxu0 0.0
        %2011 = vmatpush2.msra.mxu0 0.0
        %2012 = vmatprep.subr.mxu0 0.0
        %2013 = vmatpush2.msra.mxu0 0.0
        %2014 = vmatprep.subr.mxu0 0.0
        %2015 = vmatpush2.msra.mxu0 0.0
        %2016 = vmatprep.mubr.f32.mxu0 0.0
        %2017 = vmatmul.mubr.f32.gmra.mxu0 %v1950
        %v2018 = vpop.f32.mrf.mxu0
        %v2019 = vadd.f32 0.0, %v2018
        %v2020 = vpop.f32.mrf.mxu0
        %2021 = vdwg.mxu0
        %v2022 = vlaneseq
        %v2023 = vshrl.u32 %v2022, 7
        %v2024 = vsub.s32 7, %v2023
        %v2025 = vrot.slane %v1126, %v2024
        %v2026 = vmul.f32 %v2025, %v1277
        %v2027 = vmul.f32 %v2025, %v1278
        %v2028 = vmul.f32 %v2026, 1.442695
        %v2029 = vpow.pop %v2028
        %v2030 = vmul.f32 %v2027, 1.442695
        %v2031 = vpow.pop %v2030
        %v2032 = vmul.f32 %v2029, %v1947
        %v2033 = vmul.f32 %v2031, %v1948
        %2034 = vset.pattern.permute.xlu0 7
        %2035 = vperm.xlu0 %2034, %v1295
        %v2036 = vpop.permute.xlu0 %2035
        %2038 = vset.pattern.permute.xlu0 7
        %2039 = vperm.xlu0 %2038, %v1296
        %v2040 = vpop.permute.xlu0 %2039
        %v2042 = vlaneseq
        %v2043 = vshrl.u32 %v2042, 7
        %v2044 = vsub.s32 7, %v2043
        %v2045 = vrot.slane %v1311, %v2044
        %v2046 = vmul.f32 %v2036, %v2045
        %v2047 = vmul.f32 %v2040, %v2045
        %v2048 = vadd.f32 %v2032, %v2046
        %v2049 = vadd.f32 %v2033, %v2047
        %v2050 = vrot.slane %v1266, 7
        %v2051 = vsel %vm1342, %v2050, 0
        %2053 = vmatprep.subr.mxu0 0.0
        %2054 = vmatpush1.msra.mxu0 0.0
        %2055 = vmatprep.subr.mxu0 0.0
        %2056 = vmatpush1.msra.mxu0 0.0
        %2057 = vmatprep.subr.mxu0 0.0
        %2058 = vmatpush1.msra.mxu0 0.0
        %2059 = vmatprep.subr.mxu0 0.0
        %2060 = vmatpush1.msra.mxu0 0.0
        %2061 = vmatprep.subr.mxu0 0.0
        %2062 = vmatpush1.msra.mxu0 0.0
        %2063 = vmatprep.subr.mxu0 0.0
        %2064 = vmatpush1.msra.mxu0 0.0
        %2065 = vmatprep.subr.mxu0 0.0
        %2066 = vmatpush1.msra.mxu0 0.0
        %2067 = vmatprep.subr.mxu0 0.0
        %2068 = vmatpush1.msra.mxu0 0.0
        %2069 = vmatprep.subr.mxu0 0.0
        %2070 = vmatpush1.msra.mxu0 0.0
        %2071 = vmatprep.subr.mxu0 0.0
        %2072 = vmatpush1.msra.mxu0 0.0
        %2073 = vmatprep.subr.mxu0 0.0
        %2074 = vmatpush1.msra.mxu0 0.0
        %2075 = vmatprep.subr.mxu0 0.0
        %2076 = vmatpush1.msra.mxu0 0.0
        %2077 = vmatprep.subr.mxu0 0.0
        %2078 = vmatpush1.msra.mxu0 0.0
        %2079 = vmatprep.subr.mxu0 0.0
        %2080 = vmatpush1.msra.mxu0 0.0
        %2081 = vmatprep.subr.mxu0 0.0
        %2082 = vmatpush1.msra.mxu0 %v2049
        %2083 = vmatprep.subr.mxu0 0.0
        %2084 = vmatpush1.msra.mxu0 %v2048
        %2085 = vmatprep.subr.mxu0 0.0
        %2086 = vmatpush2.msra.mxu0 0.0
        %2087 = vmatprep.subr.mxu0 0.0
        %2088 = vmatpush2.msra.mxu0 0.0
        %2089 = vmatprep.subr.mxu0 0.0
        %2090 = vmatpush2.msra.mxu0 0.0
        %2091 = vmatprep.subr.mxu0 0.0
        %2092 = vmatpush2.msra.mxu0 0.0
        %2093 = vmatprep.subr.mxu0 0.0
        %2094 = vmatpush2.msra.mxu0 0.0
        %2095 = vmatprep.subr.mxu0 0.0
        %2096 = vmatpush2.msra.mxu0 0.0
        %2097 = vmatprep.subr.mxu0 0.0
        %2098 = vmatpush2.msra.mxu0 0.0
        %2099 = vmatprep.subr.mxu0 0.0
        %2100 = vmatpush2.msra.mxu0 0.0
        %2101 = vmatprep.subr.mxu0 0.0
        %2102 = vmatpush2.msra.mxu0 0.0
        %2103 = vmatprep.subr.mxu0 0.0
        %2104 = vmatpush2.msra.mxu0 0.0
        %2105 = vmatprep.subr.mxu0 0.0
        %2106 = vmatpush2.msra.mxu0 0.0
        %2107 = vmatprep.subr.mxu0 0.0
        %2108 = vmatpush2.msra.mxu0 0.0
        %2109 = vmatprep.subr.mxu0 0.0
        %2110 = vmatpush2.msra.mxu0 0.0
        %2111 = vmatprep.subr.mxu0 0.0
        %2112 = vmatpush2.msra.mxu0 0.0
        %2113 = vmatprep.subr.mxu0 0.0
        %2114 = vmatpush2.msra.mxu0 0.0
        %2115 = vmatprep.subr.mxu0 0.0
        %2116 = vmatpush2.msra.mxu0 0.0
        %2117 = vmatprep.mubr.f32.mxu0 0.0
        %2118 = vmatmul.mubr.f32.gmra.mxu0 %v2051
        %v2119 = vpop.f32.mrf.mxu0
        %v2120 = vadd.f32 0.0, %v2119
        %v2121 = vpop.f32.mrf.mxu0
        %2122 = vdwg.mxu0
        %v2124 = vrot.slane %v1514, 7
        %v2127 = vrot.slane %v1615, 6
        %v2130 = vrot.slane %v1716, 5
        %v2133 = vrot.slane %v1817, 4
        %v2136 = vrot.slane %v1918, 3
        %v2139 = vrot.slane %v2019, 2
        %v2142 = vrot.slane %v2120, 1
        %v2144 = vsel %vm963, %v1413, %v2124
        %v2145 = vsel %vm953, %v2144, %v2127
        %v2146 = vsel %vm943, %v2145, %v2130
        %vm2147 = vcmask 1043456
        %v2148 = vsel %vm2147, %v2146, %v2133
        %vm2149 = vcmask 1044480
        %v2150 = vsel %vm2149, %v2148, %v2136
        %vm2151 = vcmask 1045504
        %v2152 = vsel %vm2151, %v2150, %v2139
        %vm2153 = vcmask 1046528
        %v2154 = vsel %vm2153, %v2152, %v2142
        %v2155 = vld [vmem:[%s11] sm:$0x1]
        %v2157 = vlaneseq
        %v2158 = vshrl.u32 %v2157, 7
        %v2159 = vsub.s32 0, %v2158
        %v2160 = vrot.slane %v2155, %v2159
        %v2162 = vmul.f32 %v984, %v2160
        %v2163 = vadd.f32 %v2154, %v2162
        %v2164 = vsub.f32 0.0, %v929
        %v2165 = vmul.f32 %v2164, 1.442695
        %v2166 = vpow.pop %v2165
        %v2167 = vadd.f32 %v2166, 1.0
        %v2168 = vrcp.pop %v2167
        %v2169 = vmul.f32 %v929, %v2168
        %v2170 = vmul.f32 %v2163, %v2169
        %v2171 = vld [vmem:[%s12] sm:$0xf]
        %v2172 = vld [vmem:[%s12 + $0x4] sm:$0xf]
        %v2173 = vld [vmem:[%s12 + $0x8] sm:$0xf]
        %v2174 = vld [vmem:[%s12 + $0xc] sm:$0xf]
        %v2175 = vld [vmem:[%s12 + $0x10] sm:$0xf]
        %v2176 = vld [vmem:[%s12 + $0x14] sm:$0xf]
        %v2177 = vld [vmem:[%s12 + $0x18] sm:$0xf]
        %v2178 = vld [vmem:[%s12 + $0x1c] sm:$0xf]
        %v2179 = vpack.c.bf16 %v2170, %v2170
        %v2188 = vunpack.c.l.b16 %v2171
        %v2189 = vunpack.c.l.b16 %v2172
        %v2190 = vunpack.c.l.b16 %v2173
        %v2191 = vunpack.c.l.b16 %v2174
        %v2192 = vunpack.c.l.b16 %v2175
        %v2193 = vunpack.c.l.b16 %v2176
        %v2194 = vunpack.c.l.b16 %v2177
        %v2195 = vunpack.c.l.b16 %v2178
        %v2196 = vpack.c.b16 %v2189, %v2188
        %v2197 = vpack.c.b16 %v2191, %v2190
        %v2198 = vpack.c.b16 %v2193, %v2192
        %v2199 = vpack.c.b16 %v2195, %v2194
        %v2205 = vsel %vm1018, %v2179, 0
        %2207 = vmatprep.subr.bf16.mxu0 0
        %2208 = vmatpush1.bf16.msra.mxu0 0
        %2209 = vmatprep.subr.bf16.mxu0 0
        %2210 = vmatpush1.bf16.msra.mxu0 0
        %2211 = vmatprep.subr.bf16.mxu0 0
        %2212 = vmatpush1.bf16.msra.mxu0 0
        %2213 = vmatprep.subr.bf16.mxu0 0
        %2214 = vmatpush1.bf16.msra.mxu0 0
        %2215 = vmatprep.subr.bf16.mxu0 0
        %2216 = vmatpush1.bf16.msra.mxu0 %v2199
        %2217 = vmatprep.subr.bf16.mxu0 0
        %2218 = vmatpush1.bf16.msra.mxu0 %v2198
        %2219 = vmatprep.subr.bf16.mxu0 0
        %2220 = vmatpush1.bf16.msra.mxu0 %v2197
        %2221 = vmatprep.subr.bf16.mxu0 0
        %2222 = vmatpush1.bf16.msra.mxu0 %v2196
        %2223 = vmatprep.subr.bf16.mxu0 0
        %2224 = vmatpush2.bf16.msra.mxu0 0
        %2225 = vmatprep.subr.bf16.mxu0 0
        %2226 = vmatpush2.bf16.msra.mxu0 0
        %2227 = vmatprep.subr.bf16.mxu0 0
        %2228 = vmatpush2.bf16.msra.mxu0 0
        %2229 = vmatprep.subr.bf16.mxu0 0
        %2230 = vmatpush2.bf16.msra.mxu0 0
        %2231 = vmatprep.subr.bf16.mxu0 0
        %2232 = vmatpush2.bf16.msra.mxu0 0
        %2233 = vmatprep.subr.bf16.mxu0 0
        %2234 = vmatpush2.bf16.msra.mxu0 0
        %2235 = vmatprep.subr.bf16.mxu0 0
        %2236 = vmatpush2.bf16.msra.mxu0 0
        %2237 = vmatprep.subr.bf16.mxu0 0
        %2238 = vmatpush2.bf16.msra.mxu0 0
        %2239 = vmatprep.mubr.bf16.mxu0 0
        %2240 = vmatmul.mubr.bf16.gmra.mxu0 %v2205
        %v2241 = vpop.f32.mrf.mxu0
        %v2242 = vadd.f32 %v816, %v2241
        %v2243 = vpop.f32.mrf.mxu0
        %v2244 = vpop.f32.mrf.mxu0
        %v2245 = vpop.f32.mrf.mxu0
        %2246 = vdwg.mxu0
        %v2247 = vld [vmem:[%s17] sm:$0x1]
        %v2248 = vld [vmem:[%s18] sm:$0x1]
        %v2249 = vsel %vm834, %v2242, 0.0
        %2250 = vadd.xlane.f32.xlu0 %v2249
        %v2251 = vpop.xlane.xlu0 %2250
        %v2252 = vrcp.pop 32.0
        %v2253 = vmul.f32 %v2251, %v2252
        %v2254 = vsub.f32 %v2242, %v2253
        %v2255 = vmul.f32 %v2254, %v2254
        %v2256 = vsel %vm834, %v2255, 0.0
        %2257 = vadd.xlane.f32.xlu0 %v2256
        %v2258 = vpop.xlane.xlu0 %2257
        %v2259 = vmul.f32 %v2258, %v2252
        %v2260 = vadd.f32 %v2259, 1e-05
        %v2261 = vrsqrt.pop %v2260
        %v2262 = vmul.f32 %v2254, %v2261
        %v2264 = vlaneseq
        %v2265 = vshrl.u32 %v2264, 7
        %v2266 = vsub.s32 0, %v2265
        %v2267 = vrot.slane %v2247, %v2266
        %v2269 = vmul.f32 %v2262, %v2267
        %v2271 = vlaneseq
        %v2272 = vshrl.u32 %v2271, 7
        %v2273 = vsub.s32 0, %v2272
        %v2274 = vrot.slane %v2248, %v2273
        %v2276 = vadd.f32 %v2269, %v2274
        %v2277 = vld [vmem:[%s13] sm:$0xf]
        %v2278 = vld [vmem:[%s13 + $0x4] sm:$0xf]
        %v2279 = vld [vmem:[%s13 + $0x8] sm:$0xf]
        %v2280 = vld [vmem:[%s13 + $0xc] sm:$0xf]
        %v2281 = vpack.c.bf16 %v2276, %v2276
        %v2282 = vld [vmem:[%s14] sm:$0x1]
        %v2284 = vlaneseq
        %v2285 = vshrl.u32 %v2284, 7
        %v2286 = vsub.s32 0, %v2285
        %v2287 = vrot.slane %v2282, %v2286
        %v2293 = vunpack.c.l.b16 %v2277
        %v2294 = vunpack.c.l.b16 %v2278
        %v2295 = vunpack.c.l.b16 %v2279
        %v2296 = vunpack.c.l.b16 %v2280
        %v2297 = vpack.c.b16 %v2294, %v2293
        %v2298 = vpack.c.b16 %v2296, %v2295
        %v2302 = vsel %vm834, %v2281, 0
        %2304 = vmatprep.subr.bf16.mxu0 0
        %2305 = vmatpush1.bf16.msra.mxu0 0
        %2306 = vmatprep.subr.bf16.mxu0 0
        %2307 = vmatpush1.bf16.msra.mxu0 0
        %2308 = vmatprep.subr.bf16.mxu0 0
        %2309 = vmatpush1.bf16.msra.mxu0 0
        %2310 = vmatprep.subr.bf16.mxu0 0
        %2311 = vmatpush1.bf16.msra.mxu0 0
        %2312 = vmatprep.subr.bf16.mxu0 0
        %2313 = vmatpush1.bf16.msra.mxu0 0
        %2314 = vmatprep.subr.bf16.mxu0 0
        %2315 = vmatpush1.bf16.msra.mxu0 0
        %2316 = vmatprep.subr.bf16.mxu0 0
        %2317 = vmatpush1.bf16.msra.mxu0 %v2298
        %2318 = vmatprep.subr.bf16.mxu0 0
        %2319 = vmatpush1.bf16.msra.mxu0 %v2297
        %2320 = vmatprep.subr.bf16.mxu0 0
        %2321 = vmatpush2.bf16.msra.mxu0 0
        %2322 = vmatprep.subr.bf16.mxu0 0
        %2323 = vmatpush2.bf16.msra.mxu0 0
        %2324 = vmatprep.subr.bf16.mxu0 0
        %2325 = vmatpush2.bf16.msra.mxu0 0
        %2326 = vmatprep.subr.bf16.mxu0 0
        %2327 = vmatpush2.bf16.msra.mxu0 0
        %2328 = vmatprep.subr.bf16.mxu0 0
        %2329 = vmatpush2.bf16.msra.mxu0 0
        %2330 = vmatprep.subr.bf16.mxu0 0
        %2331 = vmatpush2.bf16.msra.mxu0 0
        %2332 = vmatprep.subr.bf16.mxu0 0
        %2333 = vmatpush2.bf16.msra.mxu0 0
        %2334 = vmatprep.subr.bf16.mxu0 0
        %2335 = vmatpush2.bf16.msra.mxu0 0
        %2336 = vmatprep.mubr.bf16.mxu0 0
        %2337 = vmatmul.mubr.bf16.gmra.mxu0 %v2302
        %v2338 = vpop.f32.mrf.mxu0
        %v2339 = vadd.f32 %v2287, %v2338
        %v2340 = vpop.f32.mrf.mxu0
        %v2341 = vpop.f32.mrf.mxu0
        %v2342 = vpop.f32.mrf.mxu0
        %2343 = vdwg.mxu0
        %v2344 = vpack.c.bf16 %v2339, %v2339
        %2346 = vrot.lane.b32.xlu0 %v2344, 120
        %v2347 = vpop.permute.xlu0 %2346
        %2348 = vrot.lane.b32.xlu0 %v2344, 112
        %v2349 = vpop.permute.xlu0 %2348
        %2350 = vrot.lane.b32.xlu0 %v2344, 104
        %v2351 = vpop.permute.xlu0 %2350
        %2352 = vrot.lane.b32.xlu0 %v2344, 96
        %v2353 = vpop.permute.xlu0 %2352
        %vm2354 = vcmask 64512
        %v2356 = vsel %vm2354, %v2344, 0
        %v2359 = vsel %vm2354, %v2353, 0
        %2361 = vmatprep.subr.bf16.mxu0 0
        %2362 = vmatpush1.bf16.xpose.msra.mxu0 0
        %2363 = vmatprep.subr.bf16.mxu0 0
        %2364 = vmatpush1.bf16.xpose.msra.mxu0 0
        %2365 = vmatprep.subr.bf16.mxu0 0
        %2366 = vmatpush1.bf16.xpose.msra.mxu0 0
        %2367 = vmatprep.subr.bf16.mxu0 0
        %2368 = vmatpush1.bf16.xpose.msra.mxu0 0
        %2369 = vmatprep.subr.bf16.mxu0 0
        %2370 = vmatpush1.bf16.xpose.msra.mxu0 0
        %2371 = vmatprep.subr.bf16.mxu0 0
        %2372 = vmatpush1.bf16.xpose.msra.mxu0 0
        %2373 = vmatprep.subr.bf16.mxu0 0
        %2374 = vmatpush1.bf16.xpose.msra.mxu0 0
        %2375 = vmatprep.subr.bf16.mxu0 0
        %2376 = vmatpush1.bf16.xpose.msra.mxu0 %v2359
        %2377 = vmatprep.subr.bf16.mxu0 0
        %2378 = vmatpush2.bf16.xpose.msra.mxu0 0
        %2379 = vmatprep.subr.bf16.mxu0 0
        %2380 = vmatpush2.bf16.xpose.msra.mxu0 0
        %2381 = vmatprep.subr.bf16.mxu0 0
        %2382 = vmatpush2.bf16.xpose.msra.mxu0 0
        %2383 = vmatprep.subr.bf16.mxu0 0
        %2384 = vmatpush2.bf16.xpose.msra.mxu0 0
        %2385 = vmatprep.subr.bf16.mxu0 0
        %2386 = vmatpush2.bf16.xpose.msra.mxu0 0
        %2387 = vmatprep.subr.bf16.mxu0 0
        %2388 = vmatpush2.bf16.xpose.msra.mxu0 0
        %2389 = vmatprep.subr.bf16.mxu0 0
        %2390 = vmatpush2.bf16.xpose.msra.mxu0 0
        %2391 = vmatprep.subr.bf16.mxu0 0
        %2392 = vmatpush2.bf16.xpose.msra.mxu0 0
        %2393 = vmatprep.mubr.bf16.mxu0 0
        %2394 = vmatmul.mubr.bf16.gmra.mxu0 %v2356
        %v2395 = vpop.f32.mrf.mxu0
        %v2396 = vadd.f32 0.0, %v2395
        %v2397 = vpop.f32.mrf.mxu0
        %v2398 = vpop.f32.mrf.mxu0
        %v2399 = vpop.f32.mrf.mxu0
        %2400 = vdwg.mxu0
        %2401 = vrot.lane.b32.xlu0 %v2347, 96
        %v2402 = vpop.permute.xlu0 %2401
        %v2404 = vsel %vm2354, %v2347, 0
        %v2407 = vsel %vm2354, %v2402, 0
        %2409 = vmatprep.subr.bf16.mxu0 0
        %2410 = vmatpush1.bf16.xpose.msra.mxu0 0
        %2411 = vmatprep.subr.bf16.mxu0 0
        %2412 = vmatpush1.bf16.xpose.msra.mxu0 0
        %2413 = vmatprep.subr.bf16.mxu0 0
        %2414 = vmatpush1.bf16.xpose.msra.mxu0 0
        %2415 = vmatprep.subr.bf16.mxu0 0
        %2416 = vmatpush1.bf16.xpose.msra.mxu0 0
        %2417 = vmatprep.subr.bf16.mxu0 0
        %2418 = vmatpush1.bf16.xpose.msra.mxu0 0
        %2419 = vmatprep.subr.bf16.mxu0 0
        %2420 = vmatpush1.bf16.xpose.msra.mxu0 0
        %2421 = vmatprep.subr.bf16.mxu0 0
        %2422 = vmatpush1.bf16.xpose.msra.mxu0 0
        %2423 = vmatprep.subr.bf16.mxu0 0
        %2424 = vmatpush1.bf16.xpose.msra.mxu0 %v2407
        %2425 = vmatprep.subr.bf16.mxu0 0
        %2426 = vmatpush2.bf16.xpose.msra.mxu0 0
        %2427 = vmatprep.subr.bf16.mxu0 0
        %2428 = vmatpush2.bf16.xpose.msra.mxu0 0
        %2429 = vmatprep.subr.bf16.mxu0 0
        %2430 = vmatpush2.bf16.xpose.msra.mxu0 0
        %2431 = vmatprep.subr.bf16.mxu0 0
        %2432 = vmatpush2.bf16.xpose.msra.mxu0 0
        %2433 = vmatprep.subr.bf16.mxu0 0
        %2434 = vmatpush2.bf16.xpose.msra.mxu0 0
        %2435 = vmatprep.subr.bf16.mxu0 0
        %2436 = vmatpush2.bf16.xpose.msra.mxu0 0
        %2437 = vmatprep.subr.bf16.mxu0 0
        %2438 = vmatpush2.bf16.xpose.msra.mxu0 0
        %2439 = vmatprep.subr.bf16.mxu0 0
        %2440 = vmatpush2.bf16.xpose.msra.mxu0 0
        %2441 = vmatprep.mubr.bf16.mxu0 0
        %2442 = vmatmul.mubr.bf16.gmra.mxu0 %v2404
        %v2443 = vpop.f32.mrf.mxu0
        %v2444 = vadd.f32 0.0, %v2443
        %v2445 = vpop.f32.mrf.mxu0
        %v2446 = vpop.f32.mrf.mxu0
        %v2447 = vpop.f32.mrf.mxu0
        %2448 = vdwg.mxu0
        %2449 = vrot.lane.b32.xlu0 %v2349, 96
        %v2450 = vpop.permute.xlu0 %2449
        %v2452 = vsel %vm2354, %v2349, 0
        %v2455 = vsel %vm2354, %v2450, 0
        %2457 = vmatprep.subr.bf16.mxu0 0
        %2458 = vmatpush1.bf16.xpose.msra.mxu0 0
        %2459 = vmatprep.subr.bf16.mxu0 0
        %2460 = vmatpush1.bf16.xpose.msra.mxu0 0
        %2461 = vmatprep.subr.bf16.mxu0 0
        %2462 = vmatpush1.bf16.xpose.msra.mxu0 0
        %2463 = vmatprep.subr.bf16.mxu0 0
        %2464 = vmatpush1.bf16.xpose.msra.mxu0 0
        %2465 = vmatprep.subr.bf16.mxu0 0
        %2466 = vmatpush1.bf16.xpose.msra.mxu0 0
        %2467 = vmatprep.subr.bf16.mxu0 0
        %2468 = vmatpush1.bf16.xpose.msra.mxu0 0
        %2469 = vmatprep.subr.bf16.mxu0 0
        %2470 = vmatpush1.bf16.xpose.msra.mxu0 0
        %2471 = vmatprep.subr.bf16.mxu0 0
        %2472 = vmatpush1.bf16.xpose.msra.mxu0 %v2455
        %2473 = vmatprep.subr.bf16.mxu0 0
        %2474 = vmatpush2.bf16.xpose.msra.mxu0 0
        %2475 = vmatprep.subr.bf16.mxu0 0
        %2476 = vmatpush2.bf16.xpose.msra.mxu0 0
        %2477 = vmatprep.subr.bf16.mxu0 0
        %2478 = vmatpush2.bf16.xpose.msra.mxu0 0
        %2479 = vmatprep.subr.bf16.mxu0 0
        %2480 = vmatpush2.bf16.xpose.msra.mxu0 0
        %2481 = vmatprep.subr.bf16.mxu0 0
        %2482 = vmatpush2.bf16.xpose.msra.mxu0 0
        %2483 = vmatprep.subr.bf16.mxu0 0
        %2484 = vmatpush2.bf16.xpose.msra.mxu0 0
        %2485 = vmatprep.subr.bf16.mxu0 0
        %2486 = vmatpush2.bf16.xpose.msra.mxu0 0
        %2487 = vmatprep.subr.bf16.mxu0 0
        %2488 = vmatpush2.bf16.xpose.msra.mxu0 0
        %2489 = vmatprep.mubr.bf16.mxu0 0
        %2490 = vmatmul.mubr.bf16.gmra.mxu0 %v2452
        %v2491 = vpop.f32.mrf.mxu0
        %v2492 = vadd.f32 0.0, %v2491
        %v2493 = vpop.f32.mrf.mxu0
        %v2494 = vpop.f32.mrf.mxu0
        %v2495 = vpop.f32.mrf.mxu0
        %2496 = vdwg.mxu0
        %2497 = vrot.lane.b32.xlu0 %v2351, 96
        %v2498 = vpop.permute.xlu0 %2497
        %v2500 = vsel %vm2354, %v2351, 0
        %v2503 = vsel %vm2354, %v2498, 0
        %2505 = vmatprep.subr.bf16.mxu0 0
        %2506 = vmatpush1.bf16.xpose.msra.mxu0 0
        %2507 = vmatprep.subr.bf16.mxu0 0
        %2508 = vmatpush1.bf16.xpose.msra.mxu0 0
        %2509 = vmatprep.subr.bf16.mxu0 0
        %2510 = vmatpush1.bf16.xpose.msra.mxu0 0
        %2511 = vmatprep.subr.bf16.mxu0 0
        %2512 = vmatpush1.bf16.xpose.msra.mxu0 0
        %2513 = vmatprep.subr.bf16.mxu0 0
        %2514 = vmatpush1.bf16.xpose.msra.mxu0 0
        %2515 = vmatprep.subr.bf16.mxu0 0
        %2516 = vmatpush1.bf16.xpose.msra.mxu0 0
        %2517 = vmatprep.subr.bf16.mxu0 0
        %2518 = vmatpush1.bf16.xpose.msra.mxu0 0
        %2519 = vmatprep.subr.bf16.mxu0 0
        %2520 = vmatpush1.bf16.xpose.msra.mxu0 %v2503
        %2521 = vmatprep.subr.bf16.mxu0 0
        %2522 = vmatpush2.bf16.xpose.msra.mxu0 0
        %2523 = vmatprep.subr.bf16.mxu0 0
        %2524 = vmatpush2.bf16.xpose.msra.mxu0 0
        %2525 = vmatprep.subr.bf16.mxu0 0
        %2526 = vmatpush2.bf16.xpose.msra.mxu0 0
        %2527 = vmatprep.subr.bf16.mxu0 0
        %2528 = vmatpush2.bf16.xpose.msra.mxu0 0
        %2529 = vmatprep.subr.bf16.mxu0 0
        %2530 = vmatpush2.bf16.xpose.msra.mxu0 0
        %2531 = vmatprep.subr.bf16.mxu0 0
        %2532 = vmatpush2.bf16.xpose.msra.mxu0 0
        %2533 = vmatprep.subr.bf16.mxu0 0
        %2534 = vmatpush2.bf16.xpose.msra.mxu0 0
        %2535 = vmatprep.subr.bf16.mxu0 0
        %2536 = vmatpush2.bf16.xpose.msra.mxu0 0
        %2537 = vmatprep.mubr.bf16.mxu0 0
        %2538 = vmatmul.mubr.bf16.gmra.mxu0 %v2500
        %v2539 = vpop.f32.mrf.mxu0
        %v2540 = vadd.f32 0.0, %v2539
        %v2541 = vpop.f32.mrf.mxu0
        %v2542 = vpop.f32.mrf.mxu0
        %v2543 = vpop.f32.mrf.mxu0
        %2544 = vdwg.mxu0
        %v2545 = vmul.f32 %v2396, 0.35355338
        %v2546 = vmul.f32 %v2444, 0.35355338
        %v2547 = vmul.f32 %v2492, 0.35355338
        %v2548 = vmul.f32 %v2540, 0.35355338
        %v2549 = vsel %vm2354, %v2545, -inf
        %2550 = vmax.xlane.f32.xlu0 %v2549
        %v2551 = vpop.xlane.xlu0 %2550
        %v2552 = vsel %vm2354, %v2546, -inf
        %2553 = vmax.xlane.f32.xlu0 %v2552
        %v2554 = vpop.xlane.xlu0 %2553
        %v2555 = vsel %vm2354, %v2547, -inf
        %2556 = vmax.xlane.f32.xlu0 %v2555
        %v2557 = vpop.xlane.xlu0 %2556
        %v2558 = vsel %vm2354, %v2548, -inf
        %2559 = vmax.xlane.f32.xlu0 %v2558
        %v2560 = vpop.xlane.xlu0 %2559
        %v2561 = vsub.f32 %v2545, %v2551
        %v2562 = vsub.f32 %v2546, %v2554
        %v2563 = vsub.f32 %v2547, %v2557
        %v2564 = vsub.f32 %v2548, %v2560
        %v2565 = vmul.f32 %v2561, 1.442695
        %v2566 = vpow.pop %v2565
        %v2567 = vmul.f32 %v2562, 1.442695
        %v2568 = vpow.pop %v2567
        %v2569 = vmul.f32 %v2563, 1.442695
        %v2570 = vpow.pop %v2569
        %v2571 = vmul.f32 %v2564, 1.442695
        %v2572 = vpow.pop %v2571
        %v2573 = vsel %vm2354, %v2566, 0.0
        %2574 = vadd.xlane.f32.xlu0 %v2573
        %v2575 = vpop.xlane.xlu0 %2574
        %v2576 = vsel %vm2354, %v2568, 0.0
        %2577 = vadd.xlane.f32.xlu0 %v2576
        %v2578 = vpop.xlane.xlu0 %2577
        %v2579 = vsel %vm2354, %v2570, 0.0
        %2580 = vadd.xlane.f32.xlu0 %v2579
        %v2581 = vpop.xlane.xlu0 %2580
        %v2582 = vsel %vm2354, %v2572, 0.0
        %2583 = vadd.xlane.f32.xlu0 %v2582
        %v2584 = vpop.xlane.xlu0 %2583
        %v2585 = vrcp.pop %v2575
        %v2586 = vmul.f32 %v2566, %v2585
        %v2587 = vrcp.pop %v2578
        %v2588 = vmul.f32 %v2568, %v2587
        %v2589 = vrcp.pop %v2581
        %v2590 = vmul.f32 %v2570, %v2589
        %v2591 = vrcp.pop %v2584
        %v2592 = vmul.f32 %v2572, %v2591
        %v2593 = vpack.c.bf16 %v2586, %v2586
        %v2594 = vpack.c.bf16 %v2588, %v2588
        %v2595 = vpack.c.bf16 %v2590, %v2590
        %v2596 = vpack.c.bf16 %v2592, %v2592
        %2597 = vrot.lane.b32.xlu0 %v2344, 64
        %v2598 = vpop.permute.xlu0 %2597
        %v2600 = vsel %vm2354, %v2593, 0
        %v2603 = vsel %vm2147, %v2598, 0
        %2605 = vmatprep.subr.bf16.mxu0 0
        %2606 = vmatpush1.bf16.msra.mxu0 0
        %2607 = vmatprep.subr.bf16.mxu0 0
        %2608 = vmatpush1.bf16.msra.mxu0 0
        %2609 = vmatprep.subr.bf16.mxu0 0
        %2610 = vmatpush1.bf16.msra.mxu0 0
        %2611 = vmatprep.subr.bf16.mxu0 0
        %2612 = vmatpush1.bf16.msra.mxu0 0
        %2613 = vmatprep.subr.bf16.mxu0 0
        %2614 = vmatpush1.bf16.msra.mxu0 0
        %2615 = vmatprep.subr.bf16.mxu0 0
        %2616 = vmatpush1.bf16.msra.mxu0 0
        %2617 = vmatprep.subr.bf16.mxu0 0
        %2618 = vmatpush1.bf16.msra.mxu0 0
        %2619 = vmatprep.subr.bf16.mxu0 0
        %2620 = vmatpush1.bf16.msra.mxu0 %v2603
        %2621 = vmatprep.subr.bf16.mxu0 0
        %2622 = vmatpush2.bf16.msra.mxu0 0
        %2623 = vmatprep.subr.bf16.mxu0 0
        %2624 = vmatpush2.bf16.msra.mxu0 0
        %2625 = vmatprep.subr.bf16.mxu0 0
        %2626 = vmatpush2.bf16.msra.mxu0 0
        %2627 = vmatprep.subr.bf16.mxu0 0
        %2628 = vmatpush2.bf16.msra.mxu0 0
        %2629 = vmatprep.subr.bf16.mxu0 0
        %2630 = vmatpush2.bf16.msra.mxu0 0
        %2631 = vmatprep.subr.bf16.mxu0 0
        %2632 = vmatpush2.bf16.msra.mxu0 0
        %2633 = vmatprep.subr.bf16.mxu0 0
        %2634 = vmatpush2.bf16.msra.mxu0 0
        %2635 = vmatprep.subr.bf16.mxu0 0
        %2636 = vmatpush2.bf16.msra.mxu0 0
        %2637 = vmatprep.mubr.bf16.mxu0 0
        %2638 = vmatmul.mubr.bf16.gmra.mxu0 %v2600
        %v2639 = vpop.f32.mrf.mxu0
        %v2640 = vadd.f32 0.0, %v2639
        %v2641 = vpop.f32.mrf.mxu0
        %v2642 = vpop.f32.mrf.mxu0
        %v2643 = vpop.f32.mrf.mxu0
        %2644 = vdwg.mxu0
        %2645 = vrot.lane.b32.xlu0 %v2347, 64
        %v2646 = vpop.permute.xlu0 %2645
        %v2648 = vsel %vm2354, %v2594, 0
        %v2651 = vsel %vm2147, %v2646, 0
        %2653 = vmatprep.subr.bf16.mxu0 0
        %2654 = vmatpush1.bf16.msra.mxu0 0
        %2655 = vmatprep.subr.bf16.mxu0 0
        %2656 = vmatpush1.bf16.msra.mxu0 0
        %2657 = vmatprep.subr.bf16.mxu0 0
        %2658 = vmatpush1.bf16.msra.mxu0 0
        %2659 = vmatprep.subr.bf16.mxu0 0
        %2660 = vmatpush1.bf16.msra.mxu0 0
        %2661 = vmatprep.subr.bf16.mxu0 0
        %2662 = vmatpush1.bf16.msra.mxu0 0
        %2663 = vmatprep.subr.bf16.mxu0 0
        %2664 = vmatpush1.bf16.msra.mxu0 0
        %2665 = vmatprep.subr.bf16.mxu0 0
        %2666 = vmatpush1.bf16.msra.mxu0 0
        %2667 = vmatprep.subr.bf16.mxu0 0
        %2668 = vmatpush1.bf16.msra.mxu0 %v2651
        %2669 = vmatprep.subr.bf16.mxu0 0
        %2670 = vmatpush2.bf16.msra.mxu0 0
        %2671 = vmatprep.subr.bf16.mxu0 0
        %2672 = vmatpush2.bf16.msra.mxu0 0
        %2673 = vmatprep.subr.bf16.mxu0 0
        %2674 = vmatpush2.bf16.msra.mxu0 0
        %2675 = vmatprep.subr.bf16.mxu0 0
        %2676 = vmatpush2.bf16.msra.mxu0 0
        %2677 = vmatprep.subr.bf16.mxu0 0
        %2678 = vmatpush2.bf16.msra.mxu0 0
        %2679 = vmatprep.subr.bf16.mxu0 0
        %2680 = vmatpush2.bf16.msra.mxu0 0
        %2681 = vmatprep.subr.bf16.mxu0 0
        %2682 = vmatpush2.bf16.msra.mxu0 0
        %2683 = vmatprep.subr.bf16.mxu0 0
        %2684 = vmatpush2.bf16.msra.mxu0 0
        %2685 = vmatprep.mubr.bf16.mxu0 0
        %2686 = vmatmul.mubr.bf16.gmra.mxu0 %v2648
        %v2687 = vpop.f32.mrf.mxu0
        %v2688 = vadd.f32 0.0, %v2687
        %v2689 = vpop.f32.mrf.mxu0
        %v2690 = vpop.f32.mrf.mxu0
        %v2691 = vpop.f32.mrf.mxu0
        %2692 = vdwg.mxu0
        %2693 = vrot.lane.b32.xlu0 %v2349, 64
        %v2694 = vpop.permute.xlu0 %2693
        %v2696 = vsel %vm2354, %v2595, 0
        %v2699 = vsel %vm2147, %v2694, 0
        %2701 = vmatprep.subr.bf16.mxu0 0
        %2702 = vmatpush1.bf16.msra.mxu0 0
        %2703 = vmatprep.subr.bf16.mxu0 0
        %2704 = vmatpush1.bf16.msra.mxu0 0
        %2705 = vmatprep.subr.bf16.mxu0 0
        %2706 = vmatpush1.bf16.msra.mxu0 0
        %2707 = vmatprep.subr.bf16.mxu0 0
        %2708 = vmatpush1.bf16.msra.mxu0 0
        %2709 = vmatprep.subr.bf16.mxu0 0
        %2710 = vmatpush1.bf16.msra.mxu0 0
        %2711 = vmatprep.subr.bf16.mxu0 0
        %2712 = vmatpush1.bf16.msra.mxu0 0
        %2713 = vmatprep.subr.bf16.mxu0 0
        %2714 = vmatpush1.bf16.msra.mxu0 0
        %2715 = vmatprep.subr.bf16.mxu0 0
        %2716 = vmatpush1.bf16.msra.mxu0 %v2699
        %2717 = vmatprep.subr.bf16.mxu0 0
        %2718 = vmatpush2.bf16.msra.mxu0 0
        %2719 = vmatprep.subr.bf16.mxu0 0
        %2720 = vmatpush2.bf16.msra.mxu0 0
        %2721 = vmatprep.subr.bf16.mxu0 0
        %2722 = vmatpush2.bf16.msra.mxu0 0
        %2723 = vmatprep.subr.bf16.mxu0 0
        %2724 = vmatpush2.bf16.msra.mxu0 0
        %2725 = vmatprep.subr.bf16.mxu0 0
        %2726 = vmatpush2.bf16.msra.mxu0 0
        %2727 = vmatprep.subr.bf16.mxu0 0
        %2728 = vmatpush2.bf16.msra.mxu0 0
        %2729 = vmatprep.subr.bf16.mxu0 0
        %2730 = vmatpush2.bf16.msra.mxu0 0
        %2731 = vmatprep.subr.bf16.mxu0 0
        %2732 = vmatpush2.bf16.msra.mxu0 0
        %2733 = vmatprep.mubr.bf16.mxu0 0
        %2734 = vmatmul.mubr.bf16.gmra.mxu0 %v2696
        %v2735 = vpop.f32.mrf.mxu0
        %v2736 = vadd.f32 0.0, %v2735
        %v2737 = vpop.f32.mrf.mxu0
        %v2738 = vpop.f32.mrf.mxu0
        %v2739 = vpop.f32.mrf.mxu0
        %2740 = vdwg.mxu0
        %2741 = vrot.lane.b32.xlu0 %v2351, 64
        %v2742 = vpop.permute.xlu0 %2741
        %v2744 = vsel %vm2354, %v2596, 0
        %v2747 = vsel %vm2147, %v2742, 0
        %2749 = vmatprep.subr.bf16.mxu0 0
        %2750 = vmatpush1.bf16.msra.mxu0 0
        %2751 = vmatprep.subr.bf16.mxu0 0
        %2752 = vmatpush1.bf16.msra.mxu0 0
        %2753 = vmatprep.subr.bf16.mxu0 0
        %2754 = vmatpush1.bf16.msra.mxu0 0
        %2755 = vmatprep.subr.bf16.mxu0 0
        %2756 = vmatpush1.bf16.msra.mxu0 0
        %2757 = vmatprep.subr.bf16.mxu0 0
        %2758 = vmatpush1.bf16.msra.mxu0 0
        %2759 = vmatprep.subr.bf16.mxu0 0
        %2760 = vmatpush1.bf16.msra.mxu0 0
        %2761 = vmatprep.subr.bf16.mxu0 0
        %2762 = vmatpush1.bf16.msra.mxu0 0
        %2763 = vmatprep.subr.bf16.mxu0 0
        %2764 = vmatpush1.bf16.msra.mxu0 %v2747
        %2765 = vmatprep.subr.bf16.mxu0 0
        %2766 = vmatpush2.bf16.msra.mxu0 0
        %2767 = vmatprep.subr.bf16.mxu0 0
        %2768 = vmatpush2.bf16.msra.mxu0 0
        %2769 = vmatprep.subr.bf16.mxu0 0
        %2770 = vmatpush2.bf16.msra.mxu0 0
        %2771 = vmatprep.subr.bf16.mxu0 0
        %2772 = vmatpush2.bf16.msra.mxu0 0
        %2773 = vmatprep.subr.bf16.mxu0 0
        %2774 = vmatpush2.bf16.msra.mxu0 0
        %2775 = vmatprep.subr.bf16.mxu0 0
        %2776 = vmatpush2.bf16.msra.mxu0 0
        %2777 = vmatprep.subr.bf16.mxu0 0
        %2778 = vmatpush2.bf16.msra.mxu0 0
        %2779 = vmatprep.subr.bf16.mxu0 0
        %2780 = vmatpush2.bf16.msra.mxu0 0
        %2781 = vmatprep.mubr.bf16.mxu0 0
        %2782 = vmatmul.mubr.bf16.gmra.mxu0 %v2744
        %v2783 = vpop.f32.mrf.mxu0
        %v2784 = vadd.f32 0.0, %v2783
        %v2785 = vpop.f32.mrf.mxu0
        %v2786 = vpop.f32.mrf.mxu0
        %v2787 = vpop.f32.mrf.mxu0
        %2788 = vdwg.mxu0
        %2790 = vrot.lane.b32.xlu0 %v2688, 8
        %v2791 = vpop.permute.xlu0 %2790
        %2794 = vrot.lane.b32.xlu0 %v2736, 16
        %v2795 = vpop.permute.xlu0 %2794
        %2798 = vrot.lane.b32.xlu0 %v2784, 24
        %v2799 = vpop.permute.xlu0 %2798
        %v2801 = vsel %vm2354, %v2640, %v2791
        %v2802 = vsel %vm1342, %v2801, %v2795
        %vm2803 = vcmask 195584
        %v2804 = vsel %vm2803, %v2802, %v2799
        %v2805 = vld [vmem:[%s15] sm:$0xf]
        %v2806 = vld [vmem:[%s15 + $0x4] sm:$0xf]
        %v2807 = vld [vmem:[%s15 + $0x8] sm:$0xf]
        %v2808 = vld [vmem:[%s15 + $0xc] sm:$0xf]
        %v2809 = vpack.c.bf16 %v2804, %v2804
        %v2810 = vld [vmem:[%s16] sm:$0x1]
        %v2812 = vlaneseq
        %v2813 = vshrl.u32 %v2812, 7
        %v2814 = vsub.s32 0, %v2813
        %v2815 = vrot.slane %v2810, %v2814
        %v2821 = vunpack.c.l.b16 %v2805
        %v2822 = vunpack.c.l.b16 %v2806
        %v2823 = vunpack.c.l.b16 %v2807
        %v2824 = vunpack.c.l.b16 %v2808
        %v2825 = vpack.c.b16 %v2822, %v2821
        %v2826 = vpack.c.b16 %v2824, %v2823
        %v2830 = vsel %vm834, %v2809, 0
        %2832 = vmatprep.subr.bf16.mxu0 0
        %2833 = vmatpush1.bf16.msra.mxu0 0
        %2834 = vmatprep.subr.bf16.mxu0 0
        %2835 = vmatpush1.bf16.msra.mxu0 0
        %2836 = vmatprep.subr.bf16.mxu0 0
        %2837 = vmatpush1.bf16.msra.mxu0 0
        %2838 = vmatprep.subr.bf16.mxu0 0
        %2839 = vmatpush1.bf16.msra.mxu0 0
        %2840 = vmatprep.subr.bf16.mxu0 0
        %2841 = vmatpush1.bf16.msra.mxu0 0
        %2842 = vmatprep.subr.bf16.mxu0 0
        %2843 = vmatpush1.bf16.msra.mxu0 0
        %2844 = vmatprep.subr.bf16.mxu0 0
        %2845 = vmatpush1.bf16.msra.mxu0 %v2826
        %2846 = vmatprep.subr.bf16.mxu0 0
        %2847 = vmatpush1.bf16.msra.mxu0 %v2825
        %2848 = vmatprep.subr.bf16.mxu0 0
        %2849 = vmatpush2.bf16.msra.mxu0 0
        %2850 = vmatprep.subr.bf16.mxu0 0
        %2851 = vmatpush2.bf16.msra.mxu0 0
        %2852 = vmatprep.subr.bf16.mxu0 0
        %2853 = vmatpush2.bf16.msra.mxu0 0
        %2854 = vmatprep.subr.bf16.mxu0 0
        %2855 = vmatpush2.bf16.msra.mxu0 0
        %2856 = vmatprep.subr.bf16.mxu0 0
        %2857 = vmatpush2.bf16.msra.mxu0 0
        %2858 = vmatprep.subr.bf16.mxu0 0
        %2859 = vmatpush2.bf16.msra.mxu0 0
        %2860 = vmatprep.subr.bf16.mxu0 0
        %2861 = vmatpush2.bf16.msra.mxu0 0
        %2862 = vmatprep.subr.bf16.mxu0 0
        %2863 = vmatpush2.bf16.msra.mxu0 0
        %2864 = vmatprep.mubr.bf16.mxu0 0
        %2865 = vmatmul.mubr.bf16.gmra.mxu0 %v2830
        %v2866 = vpop.f32.mrf.mxu0
        %v2867 = vadd.f32 %v2815, %v2866
        %v2868 = vpop.f32.mrf.mxu0
        %v2869 = vpop.f32.mrf.mxu0
        %v2870 = vpop.f32.mrf.mxu0
        %2871 = vdwg.mxu0
        %v2872 = vadd.f32 %v2867, %v2276
        %v2873 = vld [vmem:[%s19] sm:$0x1]
        %v2874 = vld [vmem:[%s20] sm:$0x1]
        %v2875 = vsel %vm834, %v2872, 0.0
        %2876 = vadd.xlane.f32.xlu0 %v2875
        %v2877 = vpop.xlane.xlu0 %2876
        %v2878 = vmul.f32 %v2877, %v2252
        %v2879 = vsub.f32 %v2872, %v2878
        %v2880 = vmul.f32 %v2879, %v2879
        %v2881 = vsel %vm834, %v2880, 0.0
        %2882 = vadd.xlane.f32.xlu0 %v2881
        %v2883 = vpop.xlane.xlu0 %2882
        %v2884 = vmul.f32 %v2883, %v2252
        %v2885 = vadd.f32 %v2884, 1e-05
        %v2886 = vrsqrt.pop %v2885
        %v2887 = vmul.f32 %v2879, %v2886
        %v2889 = vlaneseq
        %v2890 = vshrl.u32 %v2889, 7
        %v2891 = vsub.s32 0, %v2890
        %v2892 = vrot.slane %v2873, %v2891
        %v2894 = vmul.f32 %v2887, %v2892
        %v2896 = vlaneseq
        %v2897 = vshrl.u32 %v2896, 7
        %v2898 = vsub.s32 0, %v2897
        %v2899 = vrot.slane %v2874, %v2898
        %v2901 = vadd.f32 %v2894, %v2899
        %v2902 = vld [vmem:[%s23] sm:$0xf]
        %v2903 = vld [vmem:[%s23 + $0x4] sm:$0xf]
        %v2904 = vld [vmem:[%s23 + $0x8] sm:$0xf]
        %v2905 = vld [vmem:[%s23 + $0xc] sm:$0xf]
        %v2906 = vpack.c.bf16 %v2901, %v2901
        %v2907 = vld [vmem:[%s24] sm:$0x1]
        %v2909 = vlaneseq
        %v2910 = vshrl.u32 %v2909, 7
        %v2911 = vsub.s32 0, %v2910
        %v2912 = vrot.slane %v2907, %v2911
        %v2918 = vunpack.c.l.b16 %v2902
        %v2919 = vunpack.c.l.b16 %v2903
        %v2920 = vunpack.c.l.b16 %v2904
        %v2921 = vunpack.c.l.b16 %v2905
        %v2922 = vpack.c.b16 %v2919, %v2918
        %v2923 = vpack.c.b16 %v2921, %v2920
        %v2927 = vsel %vm834, %v2906, 0
        %2929 = vmatprep.subr.bf16.mxu0 0
        %2930 = vmatpush1.bf16.msra.mxu0 0
        %2931 = vmatprep.subr.bf16.mxu0 0
        %2932 = vmatpush1.bf16.msra.mxu0 0
        %2933 = vmatprep.subr.bf16.mxu0 0
        %2934 = vmatpush1.bf16.msra.mxu0 0
        %2935 = vmatprep.subr.bf16.mxu0 0
        %2936 = vmatpush1.bf16.msra.mxu0 0
        %2937 = vmatprep.subr.bf16.mxu0 0
        %2938 = vmatpush1.bf16.msra.mxu0 0
        %2939 = vmatprep.subr.bf16.mxu0 0
        %2940 = vmatpush1.bf16.msra.mxu0 0
        %2941 = vmatprep.subr.bf16.mxu0 0
        %2942 = vmatpush1.bf16.msra.mxu0 %v2923
        %2943 = vmatprep.subr.bf16.mxu0 0
        %2944 = vmatpush1.bf16.msra.mxu0 %v2922
        %2945 = vmatprep.subr.bf16.mxu0 0
        %2946 = vmatpush2.bf16.msra.mxu0 0
        %2947 = vmatprep.subr.bf16.mxu0 0
        %2948 = vmatpush2.bf16.msra.mxu0 0
        %2949 = vmatprep.subr.bf16.mxu0 0
        %2950 = vmatpush2.bf16.msra.mxu0 0
        %2951 = vmatprep.subr.bf16.mxu0 0
        %2952 = vmatpush2.bf16.msra.mxu0 0
        %2953 = vmatprep.subr.bf16.mxu0 0
        %2954 = vmatpush2.bf16.msra.mxu0 0
        %2955 = vmatprep.subr.bf16.mxu0 0
        %2956 = vmatpush2.bf16.msra.mxu0 0
        %2957 = vmatprep.subr.bf16.mxu0 0
        %2958 = vmatpush2.bf16.msra.mxu0 0
        %2959 = vmatprep.subr.bf16.mxu0 0
        %2960 = vmatpush2.bf16.msra.mxu0 0
        %2961 = vmatprep.mubr.bf16.mxu0 0
        %2962 = vmatmul.mubr.bf16.gmra.mxu0 %v2927
        %v2963 = vpop.f32.mrf.mxu0
        %v2964 = vadd.f32 %v2912, %v2963
        %v2965 = vpop.f32.mrf.mxu0
        %v2966 = vpop.f32.mrf.mxu0
        %v2967 = vpop.f32.mrf.mxu0
        %2968 = vdwg.mxu0
        %v2969 = vmul.f32 %v2964, 0.5
        %v2970 = vmul.f32 %v2964, 0.044715
        %v2971 = vmul.f32 %v2970, %v2964
        %v2972 = vmul.f32 %v2971, %v2964
        %v2973 = vadd.f32 %v2964, %v2972
        %v2974 = vmul.f32 %v2973, 0.7978846
        %v2975 = vtanh.pop %v2974
        %v2976 = vadd.f32 %v2975, 1.0
        %v2977 = vmul.f32 %v2969, %v2976
        %v2978 = vld [vmem:[%s25] sm:$0xf]
        %v2979 = vld [vmem:[%s25 + $0x4] sm:$0xf]
        %v2980 = vld [vmem:[%s25 + $0x8] sm:$0xf]
        %v2981 = vld [vmem:[%s25 + $0xc] sm:$0xf]
        %v2982 = vld [vmem:[%s25 + $0x10] sm:$0xf]
        %v2983 = vld [vmem:[%s25 + $0x14] sm:$0xf]
        %v2984 = vld [vmem:[%s25 + $0x18] sm:$0xf]
        %v2985 = vld [vmem:[%s25 + $0x1c] sm:$0xf]
        %v2986 = vld [vmem:[%s25 + $0x20] sm:$0xf]
        %v2987 = vld [vmem:[%s25 + $0x24] sm:$0xf]
        %v2988 = vld [vmem:[%s25 + $0x28] sm:$0xf]
        %v2989 = vld [vmem:[%s25 + $0x2c] sm:$0xf]
        %v2990 = vld [vmem:[%s25 + $0x30] sm:$0xf]
        %v2991 = vld [vmem:[%s25 + $0x34] sm:$0xf]
        %v2992 = vld [vmem:[%s25 + $0x38] sm:$0xf]
        %v2993 = vld [vmem:[%s25 + $0x3c] sm:$0xf]
        %v2994 = vpack.c.bf16 %v2977, %v2977
        %v2995 = vld [vmem:[%s26] sm:$0x1]
        %v2997 = vlaneseq
        %v2998 = vshrl.u32 %v2997, 7
        %v2999 = vsub.s32 0, %v2998
        %v3000 = vrot.slane %v2995, %v2999
        %v3018 = vunpack.c.l.b16 %v2978
        %v3019 = vunpack.c.l.b16 %v2979
        %v3020 = vunpack.c.l.b16 %v2980
        %v3021 = vunpack.c.l.b16 %v2981
        %v3022 = vunpack.c.l.b16 %v2982
        %v3023 = vunpack.c.l.b16 %v2983
        %v3024 = vunpack.c.l.b16 %v2984
        %v3025 = vunpack.c.l.b16 %v2985
        %v3026 = vunpack.c.l.b16 %v2986
        %v3027 = vunpack.c.l.b16 %v2987
        %v3028 = vunpack.c.l.b16 %v2988
        %v3029 = vunpack.c.l.b16 %v2989
        %v3030 = vunpack.c.l.b16 %v2990
        %v3031 = vunpack.c.l.b16 %v2991
        %v3032 = vunpack.c.l.b16 %v2992
        %v3033 = vunpack.c.l.b16 %v2993
        %v3034 = vpack.c.b16 %v3019, %v3018
        %v3035 = vpack.c.b16 %v3021, %v3020
        %v3036 = vpack.c.b16 %v3023, %v3022
        %v3037 = vpack.c.b16 %v3025, %v3024
        %v3038 = vpack.c.b16 %v3027, %v3026
        %v3039 = vpack.c.b16 %v3029, %v3028
        %v3040 = vpack.c.b16 %v3031, %v3030
        %v3041 = vpack.c.b16 %v3033, %v3032
        %3050 = vmatprep.subr.bf16.mxu0 0
        %3051 = vmatpush1.bf16.msra.mxu0 %v3041
        %3052 = vmatprep.subr.bf16.mxu0 0
        %3053 = vmatpush1.bf16.msra.mxu0 %v3040
        %3054 = vmatprep.subr.bf16.mxu0 0
        %3055 = vmatpush1.bf16.msra.mxu0 %v3039
        %3056 = vmatprep.subr.bf16.mxu0 0
        %3057 = vmatpush1.bf16.msra.mxu0 %v3038
        %3058 = vmatprep.subr.bf16.mxu0 0
        %3059 = vmatpush1.bf16.msra.mxu0 %v3037
        %3060 = vmatprep.subr.bf16.mxu0 0
        %3061 = vmatpush1.bf16.msra.mxu0 %v3036
        %3062 = vmatprep.subr.bf16.mxu0 0
        %3063 = vmatpush1.bf16.msra.mxu0 %v3035
        %3064 = vmatprep.subr.bf16.mxu0 0
        %3065 = vmatpush1.bf16.msra.mxu0 %v3034
        %3066 = vmatprep.subr.bf16.mxu0 0
        %3067 = vmatpush2.bf16.msra.mxu0 0
        %3068 = vmatprep.subr.bf16.mxu0 0
        %3069 = vmatpush2.bf16.msra.mxu0 0
        %3070 = vmatprep.subr.bf16.mxu0 0
        %3071 = vmatpush2.bf16.msra.mxu0 0
        %3072 = vmatprep.subr.bf16.mxu0 0
        %3073 = vmatpush2.bf16.msra.mxu0 0
        %3074 = vmatprep.subr.bf16.mxu0 0
        %3075 = vmatpush2.bf16.msra.mxu0 0
        %3076 = vmatprep.subr.bf16.mxu0 0
        %3077 = vmatpush2.bf16.msra.mxu0 0
        %3078 = vmatprep.subr.bf16.mxu0 0
        %3079 = vmatpush2.bf16.msra.mxu0 0
        %3080 = vmatprep.subr.bf16.mxu0 0
        %3081 = vmatpush2.bf16.msra.mxu0 0
        %3082 = vmatprep.mubr.bf16.mxu0 0
        %3083 = vmatmul.mubr.bf16.gmra.mxu0 %v2994
        %v3084 = vpop.f32.mrf.mxu0
        %v3085 = vadd.f32 %v3000, %v3084
        %v3086 = vpop.f32.mrf.mxu0
        %v3087 = vpop.f32.mrf.mxu0
        %v3088 = vpop.f32.mrf.mxu0
        %3089 = vdwg.mxu0
        %v3090 = vadd.f32 %v3085, %v2901
        %v3091 = vld [vmem:[%s21] sm:$0x1]
        %v3092 = vld [vmem:[%s22] sm:$0x1]
        %v3093 = vsel %vm834, %v3090, 0.0
        %3094 = vadd.xlane.f32.xlu0 %v3093
        %v3095 = vpop.xlane.xlu0 %3094
        %v3096 = vmul.f32 %v3095, %v2252
        %v3097 = vsub.f32 %v3090, %v3096
        %v3098 = vmul.f32 %v3097, %v3097
        %v3099 = vsel %vm834, %v3098, 0.0
        %3100 = vadd.xlane.f32.xlu0 %v3099
        %v3101 = vpop.xlane.xlu0 %3100
        %v3102 = vmul.f32 %v3101, %v2252
        %v3103 = vadd.f32 %v3102, 1e-05
        %v3104 = vrsqrt.pop %v3103
        %v3105 = vmul.f32 %v3097, %v3104
        %v3107 = vlaneseq
        %v3108 = vshrl.u32 %v3107, 7
        %v3109 = vsub.s32 0, %v3108
        %v3110 = vrot.slane %v3091, %v3109
        %v3112 = vmul.f32 %v3105, %v3110
        %v3114 = vlaneseq
        %v3115 = vshrl.u32 %v3114, 7
        %v3116 = vsub.s32 0, %v3115
        %v3117 = vrot.slane %v3092, %v3116
        %v3119 = vadd.f32 %v3112, %v3117
        %3120 = vst.msk [vmem:[%s809] sm:$0xff] %vm834, %v3119
        %s3121 = sand.u32 %s621, 1
        %s3122 = scalar_lea.sflag [#allocation3], %s3121
        %s3123 = sand.u32 %s621, 1
        %s3124 = smul.addr %s3123, 8
        %s3125 = scalar_lea.vmem [#allocation2], %s3124
        // Predicated region
        $region129: #{tpu_custom_call.1} parent=127 // pred_check
          %p3126 = pneg %p631
        $region130: #{tpu_custom_call.1} parent=127 // pred_check_branch
          %3128 = sbr.rel (%p3126) target = $region132
        $region131: #{tpu_custom_call.1} parent=127 // pred_region
          %s3130 = ssub.s32 128, 128
          %3131 = vsyncadd %s3122, %s3130
          %s3132 = smul.addr %s41, 128
          %s3133 = scalar_lea.hbm %s27, %s3132
          %s3135 = sshll.u32 %s3125, 4
          %s3136 = int_to_ptr.vmem [resolvable:$true] %s3135
          %3138 = dma.vmem_to_hbm [thread:$0]  %s3136, 128, %s3133, %s3122
        $region132: #{tpu_custom_call.1} parent=127 // pred_fallthru
          _
      $region128: #{tpu_custom_call.1} parent=5 // pred_fallthru
        _
      %p3139 = scmp.le.s32.totalorder 2, %s36
      // Predicated region
      $region133: #{tpu_custom_call.1} parent=5 // pred_check
        %p3140 = pneg %p3139
      $region134: #{tpu_custom_call.1} parent=5 // pred_check_branch
        %3142 = sbr.rel (%p3140) target = $region136
      $region135: #{tpu_custom_call.1} parent=5 // pred_region
        %s3143 = ssub.s32 %s36, 2
        // Predicated region
        $region137: #{tpu_custom_call.1} parent=135 // pred_check
          %p3144 = pneg %p637
        $region138: #{tpu_custom_call.1} parent=135 // pred_check_branch
          %3146 = sbr.rel (%p3144) target = $region140
        $region139: #{tpu_custom_call.1} parent=135 // pred_region
          %s3147 = sand.u32 %s622, 1
          %s3148 = scalar_lea.sflag [#allocation3], %s3147
          %s3149 = sand.u32 %s622, 1
          %s3150 = smul.addr %s3149, 8
          %s3151 = scalar_lea.vmem [#allocation2], %s3150
          %3152 = dma.done %s3148, 128
        $region140: #{tpu_custom_call.1} parent=135 // pred_fallthru
          _
      $region136: #{tpu_custom_call.1} parent=5 // pred_fallthru
        _
    $region6: #{tpu_custom_call.1} parent=1 // loop_footer
      %s40 = sadd.s32 1, %s36
    $region7: #{tpu_custom_call.1} parent=1 // loop_footer_branch
      %35 = sbr.rel target = $region3
    $region8: #{tpu_custom_call.1} parent=1 // loop_exit
      _
    %3153 = vsyncpa [#allocation3], 1
    %s3154 = scalar_lea.sflag [#allocation3], 1
    %3155 = vsyncpa %s3154, 1

</llo_original>
